<compile_context>
chip_gen: v7x
topology: tpu7x:2x2x1
jax: 0.10.0
libtpu: 0.0.40
codegen_flags: <defaults>
</compile_context>

<pallas_src>
import functools

import jax
import jax.numpy as jnp
from jax import lax
from jax.experimental import pallas as pl
from jax.experimental.pallas import tpu as pltpu

LN_EPS = 1e-5


# ----------------------------------------------------------------------------
# Pallas kernel
# ----------------------------------------------------------------------------
def _base_rnn_kernel(x_ref,      # (T, B, I)      time-major inputs
                     wxf_ref,    # (I, 4H)        fused x-path weights (f, i, o, c_hat)
                     whe_ref,    # (H, 4H + T)    fused h-path weights ++ wo replicated T times
                     vec_ref,    # (8, 4H)        packed: bx, gx, betx, bh, gh, beth, bo_row, 0
                     out_ref,    # (B, T)         lane-dense output
                     *, T, B, H, temperature, return_logits):
    f32 = jnp.float32
    G = 4 * H

    # ---- one-time prologue ---------------------------------------------------
    # Block-diagonal mean operator D (G,G): z @ D = per-gate (H-wide) mean broadcast
    # back across that gate's lanes.  Built with compares/selects only (VPU, no int
    # division), so the per-step LN moments ride the idle MXU instead of XLU
    # lane-reduce trees on the serial recurrence.
    row = lax.broadcasted_iota(jnp.int32, (G, G), 0)
    col = lax.broadcasted_iota(jnp.int32, (G, G), 1)
    D = jnp.zeros((G, G), f32)
    for g in range(4):
        in_blk = ((row >= g * H) & (row < (g + 1) * H) &
                  (col >= g * H) & (col < (g + 1) * H))
        D = D + jnp.where(in_blk, f32(1.0 / H), f32(0.0))

    def seg_layernorm(z, gamma, beta):
        """Per-gate LayerNorm on a (N, 4H) tile via block-diag moment matmuls."""
        mu = jnp.dot(z, D, preferred_element_type=f32)          # per-gate mean
        cen = z - mu
        var = jnp.dot(cen * cen, D, preferred_element_type=f32)  # two-pass: no cancellation
        return cen * lax.rsqrt(var + LN_EPS) * gamma + beta

    # Packed parameter rows (single (8,4H) slab -> one prologue DMA).
    bx = vec_ref[0:1, :]
    gx = vec_ref[1:2, :]
    bex = vec_ref[2:3, :]
    bh = vec_ref[3:4, :]
    gh = vec_ref[4:5, :]
    beh = vec_ref[5:6, :]
    bo = vec_ref[6:7, 0:T]           # bo replicated across the row by the wrapper

    wxf = wxf_ref[...]               # (I, 4H)
    whf = whe_ref[:, 0:G]            # (H, 4H)
    woT = whe_ref[:, G:G + T]        # (H, T)  -- every column equals wo

    # ---- phase 1: x path for every timestep (independent of the recurrence) ----
    # Each x_ref[t] is a sublane-0 aligned (B,I) tile -> aligned (B,4H) result, so
    # the per-step `zx[t] + zh` add in phase 2 needs no sublane shuffles.
    zx = [seg_layernorm(jnp.dot(x_ref[t], wxf, preferred_element_type=f32) + bx,
                        gx, bex)
          for t in range(T)]

    # ---- phase 2: recurrence (fully unrolled; T is small & static) -------------
    # TODO(synk): for T >~ 32 switch to lax.fori_loop(unroll=4..8) carrying (h, c)
    # and a (T, B, H) VMEM scratch to bound vreg live ranges.
    t_iota = lax.broadcasted_iota(jnp.int32, (B, T), 1)
    h = jnp.zeros((B, H), f32)
    c = jnp.zeros((B, H), f32)
    logits = jnp.zeros((B, T), f32)
    for t in range(T):
        zh = seg_layernorm(jnp.dot(h, whf, preferred_element_type=f32) + bh,
                           gh, beh)
        gates = zx[t] + zh                               # (B, 4H)
        sg = jax.nn.sigmoid(gates)                       # one full-width EUP pass
        f_t = sg[:, 0:H]
        i_t = sg[:, H:2 * H]
        o_t = sg[:, 2 * H:3 * H]
        c_hat = jnp.tanh(gates[:, 3 * H:4 * H])
        c = f_t * c + i_t * c_hat
        h = o_t * jnp.tanh(c)
        # Output head on the idle MXU; every column of the result is the logit.
        # Scatter it into lane t of the lane-dense (B,T) logit tile with a one-hot
        # VPU mask (no per-step masked 1-lane store, no epilogue concatenate).
        logit_bt = jnp.dot(h, woT, preferred_element_type=f32)   # (B, T)
        logits = logits + logit_bt * (t_iota == t).astype(f32)

    # ---- phase 3: head epilogue + single lane-dense writeback ------------------
    out = (logits + bo) / temperature
    if not return_logits:
        # Matches PyTorch BaseRnn.forward exactly: temperature is applied to the
        # logit AND again inside the sigmoid on the probability path.
        out = jax.nn.sigmoid(out / temperature)
    out_ref[...] = out                                   # (B, T)


# ----------------------------------------------------------------------------
# Wrapper
# ----------------------------------------------------------------------------
def base_rnn_forward(x, params, *, temperature=1.0, return_logits=False):
    """x: (B, T, I) float32, batch-first. Returns (B, T)."""
    (wx, bx, gx, betx, wh, bh, gh, beth, wo, bo) = params
    x = x.astype(jnp.float32)
    B, T, I = x.shape
    H = wh.shape[-1]
    G = 4 * H

    # Fuse the 4 per-gate weight matrices along the output (lane) dim.
    wxf = jnp.transpose(wx, (1, 0, 2)).reshape(I, G)                   # (I, 4H)
    whf = jnp.transpose(wh, (1, 0, 2)).reshape(H, G)                   # (H, 4H)
    # Pack the output head column (replicated T times) next to the recurrent
    # weights -> one fewer input, and the per-step head matmul lands directly on
    # a (B, T) tile.
    whe = jnp.concatenate(
        [whf, jnp.broadcast_to(wo.reshape(H, 1), (H, T))], axis=1)     # (H, 4H+T)

    # Pack the six per-gate vectors + bo into ONE (8, 4H) slab (one DMA).
    bo_row = jnp.broadcast_to(bo.reshape(1, 1), (1, G))
    vec = jnp.concatenate(
        [bx.reshape(1, G), gx.reshape(1, G), betx.reshape(1, G),
         bh.reshape(1, G), gh.reshape(1, G), beth.reshape(1, G),
         bo_row, jnp.zeros((1, G), jnp.float32)], axis=0)              # (8, 4H)

    x_tm = jnp.transpose(x, (1, 0, 2))                                 # (T, B, I)

    kernel = functools.partial(_base_rnn_kernel, T=T, B=B, H=H,
                               temperature=float(temperature),
                               return_logits=bool(return_logits))

    vmem_spec = pl.BlockSpec(memory_space=pltpu.MemorySpace.VMEM)
    out = pl.pallas_call(
        kernel,
        out_shape=jax.ShapeDtypeStruct((B, T), jnp.float32),
        in_specs=[vmem_spec, vmem_spec, vmem_spec, vmem_spec],
        out_specs=vmem_spec,
    )(x_tm, wxf, whe, vec)

    # TODO(synk): for production shapes add (a) a batch-parallel grid axis with
    # dimension_semantics=("parallel",) on v7x (2 TensorCores), and (b) a time-chunk
    # grid + double-buffered zx blocks sized against v7x's 64 MiB VMEM.
    return out                                                          # (B, T)


# ----------------------------------------------------------------------------
# Parameter init (Linear ~ U(-1/sqrt(fan_in), 1/sqrt(fan_in)); LayerNorm affine
# params are slightly perturbed from the PyTorch defaults (1, 0) so the
# gamma/beta path is actually exercised by the correctness check).
# ----------------------------------------------------------------------------
def init_params(key, input_size, hidden_dim):
    ks = jax.random.split(key, 10)
    I, H = input_size, hidden_dim
    lim_x = 1.0 / jnp.sqrt(jnp.float32(I))
    lim_h = 1.0 / jnp.sqrt(jnp.float32(H))

    wx = jax.random.uniform(ks[0], (4, I, H), jnp.float32, -lim_x, lim_x)
    bx = jax.random.uniform(ks[1], (4, H), jnp.float32, -lim_x, lim_x)
    gx = 1.0 + 0.1 * jax.random.normal(ks[2], (4, H), jnp.float32)
    betx = 0.1 * jax.random.normal(ks[3], (4, H), jnp.float32)

    wh = jax.random.uniform(ks[4], (4, H, H), jnp.float32, -lim_h, lim_h)
    bh = jax.random.uniform(ks[5], (4, H), jnp.float32, -lim_h, lim_h)
    gh = 1.0 + 0.1 * jax.random.normal(ks[6], (4, H), jnp.float32)
    beth = 0.1 * jax.random.normal(ks[7], (4, H), jnp.float32)

    wo = jax.random.uniform(ks[8], (H, 1), jnp.float32, -lim_h, lim_h)
    bo = jax.random.uniform(ks[9], (1, 1), jnp.float32, -lim_h, lim_h)
    return (wx, bx, gx, betx, wh, bh, gh, beth, wo, bo)


# ----------------------------------------------------------------------------
# Pure-JAX reference (mirrors the PyTorch forward exactly) for validation.
# ----------------------------------------------------------------------------
def base_rnn_reference(x, params, *, temperature=1.0, return_logits=False):
    (wx, bx, gx, betx, wh, bh, gh, beth, wo, bo) = params
    x = x.astype(jnp.float32)
    B, T, _ = x.shape
    H = wh.shape[-1]

    def ln(z, gamma, beta):
        mu = z.mean(-1, keepdims=True)
        var = ((z - mu) ** 2).mean(-1, keepdims=True)
        return (z - mu) / jnp.sqrt(var + LN_EPS) * gamma + beta

    dot = functools.partial(jnp.dot, precision=lax.Precision.HIGHEST)
    h = jnp.zeros((B, H), jnp.float32)
    c = jnp.zeros((B, H), jnp.float32)
    outs = []
    for t in range(T):
        x_t = x[:, t, :]
        gates = []
        for g in range(4):
            zx = ln(dot(x_t, wx[g]) + bx[g], gx[g], betx[g])
            zh = ln(dot(h, wh[g]) + bh[g], gh[g], beth[g])
            gates.append(zx + zh)
        f_t = jax.nn.sigmoid(gates[0])
        i_t = jax.nn.sigmoid(gates[1])
        o_t = jax.nn.sigmoid(gates[2])
        c_hat = jnp.tanh(gates[3])
        c = f_t * c + i_t * c_hat
        h = o_t * jnp.tanh(c)
        logit = dot(h, wo) + bo                 # (B, 1)
        out = logit / temperature
        if not return_logits:
            out = jax.nn.sigmoid(out / temperature)
        outs.append(out[:, 0])
    return jnp.stack(outs, axis=1)              # (B, T)


if __name__ == "__main__":
    # Small shapes consistent with the module: batch=2, seq=8, input_size=4, hidden=32
    B, T, INPUT_SIZE, HIDDEN = 2, 8, 4, 32
    TEMPERATURE = 1.5

    key = jax.random.PRNGKey(0)
    k_in, k_par = jax.random.split(key)
    x = jax.random.normal(k_in, (B, T, INPUT_SIZE), dtype=jnp.float32)
    params = init_params(k_par, INPUT_SIZE, HIDDEN)

    out = base_rnn_forward(x, params, temperature=TEMPERATURE, return_logits=False)
    out = jax.block_until_ready(out)
    assert out.shape == (B, T), out.shape

    ref = base_rnn_reference(x, params, temperature=TEMPERATURE, return_logits=False)
    assert jnp.allclose(out, ref, atol=1e-2, rtol=1e-2), (
        float(jnp.max(jnp.abs(out - ref))))

    print("KERNEL_OK")
</pallas_src>

<mosaic_0001>
module attributes {stable_mosaic.version = 11 : i64} {
  func.func @_base_rnn_kernel(%arg0: memref<8x2x4xf32, #tpu.memory_space<vmem>>, %arg1: memref<4x128xf32, #tpu.memory_space<vmem>>, %arg2: memref<32x136xf32, #tpu.memory_space<vmem>>, %arg3: memref<8x128xf32, #tpu.memory_space<vmem>>, %arg4: memref<2x8xf32, #tpu.memory_space<vmem>>) attributes {dimension_semantics = [], scalar_prefetch = 0 : i64, scratch_operands = 0 : i64, tpu.core_type = #tpu.core_type<tc>} {
    %0 = tpu.iota {dimensions = array<i32: 0>} : vector<128x128xi32>
    %1 = tpu.iota {dimensions = array<i32: 1>} : vector<128x128xi32>
    %cst = arith.constant 0.000000e+00 : f32
    %2 = vector.broadcast %cst : f32 to vector<128x128xf32>
    %c0_i32 = arith.constant 0 : i32
    %3 = vector.broadcast %c0_i32 : i32 to vector<128x128xi32>
    %4 = arith.cmpi sge, %0, %3 : vector<128x128xi32>
    %c32_i32 = arith.constant 32 : i32
    %5 = vector.broadcast %c32_i32 : i32 to vector<128x128xi32>
    %6 = arith.cmpi slt, %0, %5 : vector<128x128xi32>
    %7 = arith.andi %4, %6 : vector<128x128xi1>
    %c0_i32_0 = arith.constant 0 : i32
    %8 = vector.broadcast %c0_i32_0 : i32 to vector<128x128xi32>
    %9 = arith.cmpi sge, %1, %8 : vector<128x128xi32>
    %10 = arith.andi %7, %9 : vector<128x128xi1>
    %c32_i32_1 = arith.constant 32 : i32
    %11 = vector.broadcast %c32_i32_1 : i32 to vector<128x128xi32>
    %12 = arith.cmpi slt, %1, %11 : vector<128x128xi32>
    %13 = arith.andi %10, %12 : vector<128x128xi1>
    %cst_2 = arith.constant 3.125000e-02 : f32
    %cst_3 = arith.constant 0.000000e+00 : f32
    %14 = vector.broadcast %cst_2 : f32 to vector<128x128xf32>
    %15 = vector.broadcast %cst_3 : f32 to vector<128x128xf32>
    %16 = arith.select %13, %14, %15 : vector<128x128xi1>, vector<128x128xf32>
    %17 = arith.addf %2, %16 : vector<128x128xf32>
    %c32_i32_4 = arith.constant 32 : i32
    %18 = vector.broadcast %c32_i32_4 : i32 to vector<128x128xi32>
    %19 = arith.cmpi sge, %0, %18 : vector<128x128xi32>
    %c64_i32 = arith.constant 64 : i32
    %20 = vector.broadcast %c64_i32 : i32 to vector<128x128xi32>
    %21 = arith.cmpi slt, %0, %20 : vector<128x128xi32>
    %22 = arith.andi %19, %21 : vector<128x128xi1>
    %c32_i32_5 = arith.constant 32 : i32
    %23 = vector.broadcast %c32_i32_5 : i32 to vector<128x128xi32>
    %24 = arith.cmpi sge, %1, %23 : vector<128x128xi32>
    %25 = arith.andi %22, %24 : vector<128x128xi1>
    %c64_i32_6 = arith.constant 64 : i32
    %26 = vector.broadcast %c64_i32_6 : i32 to vector<128x128xi32>
    %27 = arith.cmpi slt, %1, %26 : vector<128x128xi32>
    %28 = arith.andi %25, %27 : vector<128x128xi1>
    %cst_7 = arith.constant 3.125000e-02 : f32
    %cst_8 = arith.constant 0.000000e+00 : f32
    %29 = vector.broadcast %cst_7 : f32 to vector<128x128xf32>
    %30 = vector.broadcast %cst_8 : f32 to vector<128x128xf32>
    %31 = arith.select %28, %29, %30 : vector<128x128xi1>, vector<128x128xf32>
    %32 = arith.addf %17, %31 : vector<128x128xf32>
    %c64_i32_9 = arith.constant 64 : i32
    %33 = vector.broadcast %c64_i32_9 : i32 to vector<128x128xi32>
    %34 = arith.cmpi sge, %0, %33 : vector<128x128xi32>
    %c96_i32 = arith.constant 96 : i32
    %35 = vector.broadcast %c96_i32 : i32 to vector<128x128xi32>
    %36 = arith.cmpi slt, %0, %35 : vector<128x128xi32>
    %37 = arith.andi %34, %36 : vector<128x128xi1>
    %c64_i32_10 = arith.constant 64 : i32
    %38 = vector.broadcast %c64_i32_10 : i32 to vector<128x128xi32>
    %39 = arith.cmpi sge, %1, %38 : vector<128x128xi32>
    %40 = arith.andi %37, %39 : vector<128x128xi1>
    %c96_i32_11 = arith.constant 96 : i32
    %41 = vector.broadcast %c96_i32_11 : i32 to vector<128x128xi32>
    %42 = arith.cmpi slt, %1, %41 : vector<128x128xi32>
    %43 = arith.andi %40, %42 : vector<128x128xi1>
    %cst_12 = arith.constant 3.125000e-02 : f32
    %cst_13 = arith.constant 0.000000e+00 : f32
    %44 = vector.broadcast %cst_12 : f32 to vector<128x128xf32>
    %45 = vector.broadcast %cst_13 : f32 to vector<128x128xf32>
    %46 = arith.select %43, %44, %45 : vector<128x128xi1>, vector<128x128xf32>
    %47 = arith.addf %32, %46 : vector<128x128xf32>
    %c96_i32_14 = arith.constant 96 : i32
    %48 = vector.broadcast %c96_i32_14 : i32 to vector<128x128xi32>
    %49 = arith.cmpi sge, %0, %48 : vector<128x128xi32>
    %c128_i32 = arith.constant 128 : i32
    %50 = vector.broadcast %c128_i32 : i32 to vector<128x128xi32>
    %51 = arith.cmpi slt, %0, %50 : vector<128x128xi32>
    %52 = arith.andi %49, %51 : vector<128x128xi1>
    %c96_i32_15 = arith.constant 96 : i32
    %53 = vector.broadcast %c96_i32_15 : i32 to vector<128x128xi32>
    %54 = arith.cmpi sge, %1, %53 : vector<128x128xi32>
    %55 = arith.andi %52, %54 : vector<128x128xi1>
    %c128_i32_16 = arith.constant 128 : i32
    %56 = vector.broadcast %c128_i32_16 : i32 to vector<128x128xi32>
    %57 = arith.cmpi slt, %1, %56 : vector<128x128xi32>
    %58 = arith.andi %55, %57 : vector<128x128xi1>
    %cst_17 = arith.constant 3.125000e-02 : f32
    %cst_18 = arith.constant 0.000000e+00 : f32
    %59 = vector.broadcast %cst_17 : f32 to vector<128x128xf32>
    %60 = vector.broadcast %cst_18 : f32 to vector<128x128xf32>
    %61 = arith.select %58, %59, %60 : vector<128x128xi1>, vector<128x128xf32>
    %62 = arith.addf %47, %61 : vector<128x128xf32>
    %c0 = arith.constant 0 : index
    %c0_19 = arith.constant 0 : index
    %63 = vector.load %arg3[%c0, %c0_19] : memref<8x128xf32, #tpu.memory_space<vmem>>, vector<1x128xf32>
    %c1 = arith.constant 1 : index
    %c0_20 = arith.constant 0 : index
    %64 = vector.load %arg3[%c1, %c0_20] : memref<8x128xf32, #tpu.memory_space<vmem>>, vector<1x128xf32>
    %c2 = arith.constant 2 : index
    %c0_21 = arith.constant 0 : index
    %65 = vector.load %arg3[%c2, %c0_21] : memref<8x128xf32, #tpu.memory_space<vmem>>, vector<1x128xf32>
    %c3 = arith.constant 3 : index
    %c0_22 = arith.constant 0 : index
    %66 = vector.load %arg3[%c3, %c0_22] : memref<8x128xf32, #tpu.memory_space<vmem>>, vector<1x128xf32>
    %c4 = arith.constant 4 : index
    %c0_23 = arith.constant 0 : index
    %67 = vector.load %arg3[%c4, %c0_23] : memref<8x128xf32, #tpu.memory_space<vmem>>, vector<1x128xf32>
    %c5 = arith.constant 5 : index
    %c0_24 = arith.constant 0 : index
    %68 = vector.load %arg3[%c5, %c0_24] : memref<8x128xf32, #tpu.memory_space<vmem>>, vector<1x128xf32>
    %c6 = arith.constant 6 : index
    %c0_25 = arith.constant 0 : index
    %69 = vector.load %arg3[%c6, %c0_25] : memref<8x128xf32, #tpu.memory_space<vmem>>, vector<1x8xf32>
    %c0_26 = arith.constant 0 : index
    %c0_27 = arith.constant 0 : index
    %70 = vector.load %arg1[%c0_26, %c0_27] : memref<4x128xf32, #tpu.memory_space<vmem>>, vector<4x128xf32>
    %c0_28 = arith.constant 0 : index
    %c0_29 = arith.constant 0 : index
    %71 = vector.load %arg2[%c0_28, %c0_29] : memref<32x136xf32, #tpu.memory_space<vmem>>, vector<32x128xf32>
    %c0_30 = arith.constant 0 : index
    %c128 = arith.constant 128 : index
    %72 = vector.load %arg2[%c0_30, %c128] : memref<32x136xf32, #tpu.memory_space<vmem>>, vector<32x8xf32>
    %c0_31 = arith.constant 0 : index
    %c0_32 = arith.constant 0 : index
    %c0_33 = arith.constant 0 : index
    %73 = vector.load %arg0[%c0_31, %c0_32, %c0_33] : memref<8x2x4xf32, #tpu.memory_space<vmem>>, vector<1x2x4xf32>
    %74 = vector.shape_cast %73 : vector<1x2x4xf32> to vector<2x4xf32>
    %cst_34 = arith.constant dense<0.000000e+00> : vector<2x128xf32>
    %75 = tpu.matmul %74, %70, %cst_34 {dimension_numbers = #tpu.dot_dimension_numbers<[1], [0], [0], [1], [0, 0, 1, 1], [], []>} : vector<2x4xf32>, vector<4x128xf32>, vector<2x128xf32> -> vector<2x128xf32>
    %76 = vector.broadcast %63 : vector<1x128xf32> to vector<2x128xf32>
    %77 = arith.addf %75, %76 : vector<2x128xf32>
    %cst_35 = arith.constant dense<0.000000e+00> : vector<2x128xf32>
    %78 = tpu.matmul %77, %62, %cst_35 {dimension_numbers = #tpu.dot_dimension_numbers<[1], [0], [0], [1], [0, 0, 1, 1], [], []>} : vector<2x128xf32>, vector<128x128xf32>, vector<2x128xf32> -> vector<2x128xf32>
    %79 = arith.subf %77, %78 : vector<2x128xf32>
    %80 = arith.mulf %79, %79 : vector<2x128xf32>
    %cst_36 = arith.constant dense<0.000000e+00> : vector<2x128xf32>
    %81 = tpu.matmul %80, %62, %cst_36 {dimension_numbers = #tpu.dot_dimension_numbers<[1], [0], [0], [1], [0, 0, 1, 1], [], []>} : vector<2x128xf32>, vector<128x128xf32>, vector<2x128xf32> -> vector<2x128xf32>
    %cst_37 = arith.constant 9.99999974E-6 : f32
    %82 = vector.broadcast %cst_37 : f32 to vector<2x128xf32>
    %83 = arith.addf %81, %82 : vector<2x128xf32>
    %84 = math.rsqrt %83 : vector<2x128xf32>
    %85 = arith.mulf %79, %84 : vector<2x128xf32>
    %86 = vector.broadcast %64 : vector<1x128xf32> to vector<2x128xf32>
    %87 = arith.mulf %85, %86 : vector<2x128xf32>
    %88 = vector.broadcast %65 : vector<1x128xf32> to vector<2x128xf32>
    %89 = arith.addf %87, %88 : vector<2x128xf32>
    %c1_38 = arith.constant 1 : index
    %c0_39 = arith.constant 0 : index
    %c0_40 = arith.constant 0 : index
    %90 = vector.load %arg0[%c1_38, %c0_39, %c0_40] : memref<8x2x4xf32, #tpu.memory_space<vmem>>, vector<1x2x4xf32>
    %91 = vector.shape_cast %90 : vector<1x2x4xf32> to vector<2x4xf32>
    %cst_41 = arith.constant dense<0.000000e+00> : vector<2x128xf32>
    %92 = tpu.matmul %91, %70, %cst_41 {dimension_numbers = #tpu.dot_dimension_numbers<[1], [0], [0], [1], [0, 0, 1, 1], [], []>} : vector<2x4xf32>, vector<4x128xf32>, vector<2x128xf32> -> vector<2x128xf32>
    %93 = vector.broadcast %63 : vector<1x128xf32> to vector<2x128xf32>
    %94 = arith.addf %92, %93 : vector<2x128xf32>
    %cst_42 = arith.constant dense<0.000000e+00> : vector<2x128xf32>
    %95 = tpu.matmul %94, %62, %cst_42 {dimension_numbers = #tpu.dot_dimension_numbers<[1], [0], [0], [1], [0, 0, 1, 1], [], []>} : vector<2x128xf32>, vector<128x128xf32>, vector<2x128xf32> -> vector<2x128xf32>
    %96 = arith.subf %94, %95 : vector<2x128xf32>
    %97 = arith.mulf %96, %96 : vector<2x128xf32>
    %cst_43 = arith.constant dense<0.000000e+00> : vector<2x128xf32>
    %98 = tpu.matmul %97, %62, %cst_43 {dimension_numbers = #tpu.dot_dimension_numbers<[1], [0], [0], [1], [0, 0, 1, 1], [], []>} : vector<2x128xf32>, vector<128x128xf32>, vector<2x128xf32> -> vector<2x128xf32>
    %cst_44 = arith.constant 9.99999974E-6 : f32
    %99 = vector.broadcast %cst_44 : f32 to vector<2x128xf32>
    %100 = arith.addf %98, %99 : vector<2x128xf32>
    %101 = math.rsqrt %100 : vector<2x128xf32>
    %102 = arith.mulf %96, %101 : vector<2x128xf32>
    %103 = vector.broadcast %64 : vector<1x128xf32> to vector<2x128xf32>
    %104 = arith.mulf %102, %103 : vector<2x128xf32>
    %105 = vector.broadcast %65 : vector<1x128xf32> to vector<2x128xf32>
    %106 = arith.addf %104, %105 : vector<2x128xf32>
    %c2_45 = arith.constant 2 : index
    %c0_46 = arith.constant 0 : index
    %c0_47 = arith.constant 0 : index
    %107 = vector.load %arg0[%c2_45, %c0_46, %c0_47] : memref<8x2x4xf32, #tpu.memory_space<vmem>>, vector<1x2x4xf32>
    %108 = vector.shape_cast %107 : vector<1x2x4xf32> to vector<2x4xf32>
    %cst_48 = arith.constant dense<0.000000e+00> : vector<2x128xf32>
    %109 = tpu.matmul %108, %70, %cst_48 {dimension_numbers = #tpu.dot_dimension_numbers<[1], [0], [0], [1], [0, 0, 1, 1], [], []>} : vector<2x4xf32>, vector<4x128xf32>, vector<2x128xf32> -> vector<2x128xf32>
    %110 = vector.broadcast %63 : vector<1x128xf32> to vector<2x128xf32>
    %111 = arith.addf %109, %110 : vector<2x128xf32>
    %cst_49 = arith.constant dense<0.000000e+00> : vector<2x128xf32>
    %112 = tpu.matmul %111, %62, %cst_49 {dimension_numbers = #tpu.dot_dimension_numbers<[1], [0], [0], [1], [0, 0, 1, 1], [], []>} : vector<2x128xf32>, vector<128x128xf32>, vector<2x128xf32> -> vector<2x128xf32>
    %113 = arith.subf %111, %112 : vector<2x128xf32>
    %114 = arith.mulf %113, %113 : vector<2x128xf32>
    %cst_50 = arith.constant dense<0.000000e+00> : vector<2x128xf32>
    %115 = tpu.matmul %114, %62, %cst_50 {dimension_numbers = #tpu.dot_dimension_numbers<[1], [0], [0], [1], [0, 0, 1, 1], [], []>} : vector<2x128xf32>, vector<128x128xf32>, vector<2x128xf32> -> vector<2x128xf32>
    %cst_51 = arith.constant 9.99999974E-6 : f32
    %116 = vector.broadcast %cst_51 : f32 to vector<2x128xf32>
    %117 = arith.addf %115, %116 : vector<2x128xf32>
    %118 = math.rsqrt %117 : vector<2x128xf32>
    %119 = arith.mulf %113, %118 : vector<2x128xf32>
    %120 = vector.broadcast %64 : vector<1x128xf32> to vector<2x128xf32>
    %121 = arith.mulf %119, %120 : vector<2x128xf32>
    %122 = vector.broadcast %65 : vector<1x128xf32> to vector<2x128xf32>
    %123 = arith.addf %121, %122 : vector<2x128xf32>
    %c3_52 = arith.constant 3 : index
    %c0_53 = arith.constant 0 : index
    %c0_54 = arith.constant 0 : index
    %124 = vector.load %arg0[%c3_52, %c0_53, %c0_54] : memref<8x2x4xf32, #tpu.memory_space<vmem>>, vector<1x2x4xf32>
    %125 = vector.shape_cast %124 : vector<1x2x4xf32> to vector<2x4xf32>
    %cst_55 = arith.constant dense<0.000000e+00> : vector<2x128xf32>
    %126 = tpu.matmul %125, %70, %cst_55 {dimension_numbers = #tpu.dot_dimension_numbers<[1], [0], [0], [1], [0, 0, 1, 1], [], []>} : vector<2x4xf32>, vector<4x128xf32>, vector<2x128xf32> -> vector<2x128xf32>
    %127 = vector.broadcast %63 : vector<1x128xf32> to vector<2x128xf32>
    %128 = arith.addf %126, %127 : vector<2x128xf32>
    %cst_56 = arith.constant dense<0.000000e+00> : vector<2x128xf32>
    %129 = tpu.matmul %128, %62, %cst_56 {dimension_numbers = #tpu.dot_dimension_numbers<[1], [0], [0], [1], [0, 0, 1, 1], [], []>} : vector<2x128xf32>, vector<128x128xf32>, vector<2x128xf32> -> vector<2x128xf32>
    %130 = arith.subf %128, %129 : vector<2x128xf32>
    %131 = arith.mulf %130, %130 : vector<2x128xf32>
    %cst_57 = arith.constant dense<0.000000e+00> : vector<2x128xf32>
    %132 = tpu.matmul %131, %62, %cst_57 {dimension_numbers = #tpu.dot_dimension_numbers<[1], [0], [0], [1], [0, 0, 1, 1], [], []>} : vector<2x128xf32>, vector<128x128xf32>, vector<2x128xf32> -> vector<2x128xf32>
    %cst_58 = arith.constant 9.99999974E-6 : f32
    %133 = vector.broadcast %cst_58 : f32 to vector<2x128xf32>
    %134 = arith.addf %132, %133 : vector<2x128xf32>
    %135 = math.rsqrt %134 : vector<2x128xf32>
    %136 = arith.mulf %130, %135 : vector<2x128xf32>
    %137 = vector.broadcast %64 : vector<1x128xf32> to vector<2x128xf32>
    %138 = arith.mulf %136, %137 : vector<2x128xf32>
    %139 = vector.broadcast %65 : vector<1x128xf32> to vector<2x128xf32>
    %140 = arith.addf %138, %139 : vector<2x128xf32>
    %c4_59 = arith.constant 4 : index
    %c0_60 = arith.constant 0 : index
    %c0_61 = arith.constant 0 : index
    %141 = vector.load %arg0[%c4_59, %c0_60, %c0_61] : memref<8x2x4xf32, #tpu.memory_space<vmem>>, vector<1x2x4xf32>
    %142 = vector.shape_cast %141 : vector<1x2x4xf32> to vector<2x4xf32>
    %cst_62 = arith.constant dense<0.000000e+00> : vector<2x128xf32>
    %143 = tpu.matmul %142, %70, %cst_62 {dimension_numbers = #tpu.dot_dimension_numbers<[1], [0], [0], [1], [0, 0, 1, 1], [], []>} : vector<2x4xf32>, vector<4x128xf32>, vector<2x128xf32> -> vector<2x128xf32>
    %144 = vector.broadcast %63 : vector<1x128xf32> to vector<2x128xf32>
    %145 = arith.addf %143, %144 : vector<2x128xf32>
    %cst_63 = arith.constant dense<0.000000e+00> : vector<2x128xf32>
    %146 = tpu.matmul %145, %62, %cst_63 {dimension_numbers = #tpu.dot_dimension_numbers<[1], [0], [0], [1], [0, 0, 1, 1], [], []>} : vector<2x128xf32>, vector<128x128xf32>, vector<2x128xf32> -> vector<2x128xf32>
    %147 = arith.subf %145, %146 : vector<2x128xf32>
    %148 = arith.mulf %147, %147 : vector<2x128xf32>
    %cst_64 = arith.constant dense<0.000000e+00> : vector<2x128xf32>
    %149 = tpu.matmul %148, %62, %cst_64 {dimension_numbers = #tpu.dot_dimension_numbers<[1], [0], [0], [1], [0, 0, 1, 1], [], []>} : vector<2x128xf32>, vector<128x128xf32>, vector<2x128xf32> -> vector<2x128xf32>
    %cst_65 = arith.constant 9.99999974E-6 : f32
    %150 = vector.broadcast %cst_65 : f32 to vector<2x128xf32>
    %151 = arith.addf %149, %150 : vector<2x128xf32>
    %152 = math.rsqrt %151 : vector<2x128xf32>
    %153 = arith.mulf %147, %152 : vector<2x128xf32>
    %154 = vector.broadcast %64 : vector<1x128xf32> to vector<2x128xf32>
    %155 = arith.mulf %153, %154 : vector<2x128xf32>
    %156 = vector.broadcast %65 : vector<1x128xf32> to vector<2x128xf32>
    %157 = arith.addf %155, %156 : vector<2x128xf32>
    %c5_66 = arith.constant 5 : index
    %c0_67 = arith.constant 0 : index
    %c0_68 = arith.constant 0 : index
    %158 = vector.load %arg0[%c5_66, %c0_67, %c0_68] : memref<8x2x4xf32, #tpu.memory_space<vmem>>, vector<1x2x4xf32>
    %159 = vector.shape_cast %158 : vector<1x2x4xf32> to vector<2x4xf32>
    %cst_69 = arith.constant dense<0.000000e+00> : vector<2x128xf32>
    %160 = tpu.matmul %159, %70, %cst_69 {dimension_numbers = #tpu.dot_dimension_numbers<[1], [0], [0], [1], [0, 0, 1, 1], [], []>} : vector<2x4xf32>, vector<4x128xf32>, vector<2x128xf32> -> vector<2x128xf32>
    %161 = vector.broadcast %63 : vector<1x128xf32> to vector<2x128xf32>
    %162 = arith.addf %160, %161 : vector<2x128xf32>
    %cst_70 = arith.constant dense<0.000000e+00> : vector<2x128xf32>
    %163 = tpu.matmul %162, %62, %cst_70 {dimension_numbers = #tpu.dot_dimension_numbers<[1], [0], [0], [1], [0, 0, 1, 1], [], []>} : vector<2x128xf32>, vector<128x128xf32>, vector<2x128xf32> -> vector<2x128xf32>
    %164 = arith.subf %162, %163 : vector<2x128xf32>
    %165 = arith.mulf %164, %164 : vector<2x128xf32>
    %cst_71 = arith.constant dense<0.000000e+00> : vector<2x128xf32>
    %166 = tpu.matmul %165, %62, %cst_71 {dimension_numbers = #tpu.dot_dimension_numbers<[1], [0], [0], [1], [0, 0, 1, 1], [], []>} : vector<2x128xf32>, vector<128x128xf32>, vector<2x128xf32> -> vector<2x128xf32>
    %cst_72 = arith.constant 9.99999974E-6 : f32
    %167 = vector.broadcast %cst_72 : f32 to vector<2x128xf32>
    %168 = arith.addf %166, %167 : vector<2x128xf32>
    %169 = math.rsqrt %168 : vector<2x128xf32>
    %170 = arith.mulf %164, %169 : vector<2x128xf32>
    %171 = vector.broadcast %64 : vector<1x128xf32> to vector<2x128xf32>
    %172 = arith.mulf %170, %171 : vector<2x128xf32>
    %173 = vector.broadcast %65 : vector<1x128xf32> to vector<2x128xf32>
    %174 = arith.addf %172, %173 : vector<2x128xf32>
    %c6_73 = arith.constant 6 : index
    %c0_74 = arith.constant 0 : index
    %c0_75 = arith.constant 0 : index
    %175 = vector.load %arg0[%c6_73, %c0_74, %c0_75] : memref<8x2x4xf32, #tpu.memory_space<vmem>>, vector<1x2x4xf32>
    %176 = vector.shape_cast %175 : vector<1x2x4xf32> to vector<2x4xf32>
    %cst_76 = arith.constant dense<0.000000e+00> : vector<2x128xf32>
    %177 = tpu.matmul %176, %70, %cst_76 {dimension_numbers = #tpu.dot_dimension_numbers<[1], [0], [0], [1], [0, 0, 1, 1], [], []>} : vector<2x4xf32>, vector<4x128xf32>, vector<2x128xf32> -> vector<2x128xf32>
    %178 = vector.broadcast %63 : vector<1x128xf32> to vector<2x128xf32>
    %179 = arith.addf %177, %178 : vector<2x128xf32>
    %cst_77 = arith.constant dense<0.000000e+00> : vector<2x128xf32>
    %180 = tpu.matmul %179, %62, %cst_77 {dimension_numbers = #tpu.dot_dimension_numbers<[1], [0], [0], [1], [0, 0, 1, 1], [], []>} : vector<2x128xf32>, vector<128x128xf32>, vector<2x128xf32> -> vector<2x128xf32>
    %181 = arith.subf %179, %180 : vector<2x128xf32>
    %182 = arith.mulf %181, %181 : vector<2x128xf32>
    %cst_78 = arith.constant dense<0.000000e+00> : vector<2x128xf32>
    %183 = tpu.matmul %182, %62, %cst_78 {dimension_numbers = #tpu.dot_dimension_numbers<[1], [0], [0], [1], [0, 0, 1, 1], [], []>} : vector<2x128xf32>, vector<128x128xf32>, vector<2x128xf32> -> vector<2x128xf32>
    %cst_79 = arith.constant 9.99999974E-6 : f32
    %184 = vector.broadcast %cst_79 : f32 to vector<2x128xf32>
    %185 = arith.addf %183, %184 : vector<2x128xf32>
    %186 = math.rsqrt %185 : vector<2x128xf32>
    %187 = arith.mulf %181, %186 : vector<2x128xf32>
    %188 = vector.broadcast %64 : vector<1x128xf32> to vector<2x128xf32>
    %189 = arith.mulf %187, %188 : vector<2x128xf32>
    %190 = vector.broadcast %65 : vector<1x128xf32> to vector<2x128xf32>
    %191 = arith.addf %189, %190 : vector<2x128xf32>
    %c7 = arith.constant 7 : index
    %c0_80 = arith.constant 0 : index
    %c0_81 = arith.constant 0 : index
    %192 = vector.load %arg0[%c7, %c0_80, %c0_81] : memref<8x2x4xf32, #tpu.memory_space<vmem>>, vector<1x2x4xf32>
    %193 = vector.shape_cast %192 : vector<1x2x4xf32> to vector<2x4xf32>
    %cst_82 = arith.constant dense<0.000000e+00> : vector<2x128xf32>
    %194 = tpu.matmul %193, %70, %cst_82 {dimension_numbers = #tpu.dot_dimension_numbers<[1], [0], [0], [1], [0, 0, 1, 1], [], []>} : vector<2x4xf32>, vector<4x128xf32>, vector<2x128xf32> -> vector<2x128xf32>
    %195 = vector.broadcast %63 : vector<1x128xf32> to vector<2x128xf32>
    %196 = arith.addf %194, %195 : vector<2x128xf32>
    %cst_83 = arith.constant dense<0.000000e+00> : vector<2x128xf32>
    %197 = tpu.matmul %196, %62, %cst_83 {dimension_numbers = #tpu.dot_dimension_numbers<[1], [0], [0], [1], [0, 0, 1, 1], [], []>} : vector<2x128xf32>, vector<128x128xf32>, vector<2x128xf32> -> vector<2x128xf32>
    %198 = arith.subf %196, %197 : vector<2x128xf32>
    %199 = arith.mulf %198, %198 : vector<2x128xf32>
    %cst_84 = arith.constant dense<0.000000e+00> : vector<2x128xf32>
    %200 = tpu.matmul %199, %62, %cst_84 {dimension_numbers = #tpu.dot_dimension_numbers<[1], [0], [0], [1], [0, 0, 1, 1], [], []>} : vector<2x128xf32>, vector<128x128xf32>, vector<2x128xf32> -> vector<2x128xf32>
    %cst_85 = arith.constant 9.99999974E-6 : f32
    %201 = vector.broadcast %cst_85 : f32 to vector<2x128xf32>
    %202 = arith.addf %200, %201 : vector<2x128xf32>
    %203 = math.rsqrt %202 : vector<2x128xf32>
    %204 = arith.mulf %198, %203 : vector<2x128xf32>
    %205 = vector.broadcast %64 : vector<1x128xf32> to vector<2x128xf32>
    %206 = arith.mulf %204, %205 : vector<2x128xf32>
    %207 = vector.broadcast %65 : vector<1x128xf32> to vector<2x128xf32>
    %208 = arith.addf %206, %207 : vector<2x128xf32>
    %209 = tpu.iota {dimensions = array<i32: 1>} : vector<2x8xi32>
    %cst_86 = arith.constant 0.000000e+00 : f32
    %210 = vector.broadcast %cst_86 : f32 to vector<2x32xf32>
    %cst_87 = arith.constant 0.000000e+00 : f32
    %211 = vector.broadcast %cst_87 : f32 to vector<2x32xf32>
    %cst_88 = arith.constant 0.000000e+00 : f32
    %212 = vector.broadcast %cst_88 : f32 to vector<2x8xf32>
    %cst_89 = arith.constant dense<0.000000e+00> : vector<2x128xf32>
    %213 = tpu.matmul %210, %71, %cst_89 {dimension_numbers = #tpu.dot_dimension_numbers<[1], [0], [0], [1], [0, 0, 1, 1], [], []>} : vector<2x32xf32>, vector<32x128xf32>, vector<2x128xf32> -> vector<2x128xf32>
    %214 = vector.broadcast %66 : vector<1x128xf32> to vector<2x128xf32>
    %215 = arith.addf %213, %214 : vector<2x128xf32>
    %cst_90 = arith.constant dense<0.000000e+00> : vector<2x128xf32>
    %216 = tpu.matmul %215, %62, %cst_90 {dimension_numbers = #tpu.dot_dimension_numbers<[1], [0], [0], [1], [0, 0, 1, 1], [], []>} : vector<2x128xf32>, vector<128x128xf32>, vector<2x128xf32> -> vector<2x128xf32>
    %217 = arith.subf %215, %216 : vector<2x128xf32>
    %218 = arith.mulf %217, %217 : vector<2x128xf32>
    %cst_91 = arith.constant dense<0.000000e+00> : vector<2x128xf32>
    %219 = tpu.matmul %218, %62, %cst_91 {dimension_numbers = #tpu.dot_dimension_numbers<[1], [0], [0], [1], [0, 0, 1, 1], [], []>} : vector<2x128xf32>, vector<128x128xf32>, vector<2x128xf32> -> vector<2x128xf32>
    %cst_92 = arith.constant 9.99999974E-6 : f32
    %220 = vector.broadcast %cst_92 : f32 to vector<2x128xf32>
    %221 = arith.addf %219, %220 : vector<2x128xf32>
    %222 = math.rsqrt %221 : vector<2x128xf32>
    %223 = arith.mulf %217, %222 : vector<2x128xf32>
    %224 = vector.broadcast %67 : vector<1x128xf32> to vector<2x128xf32>
    %225 = arith.mulf %223, %224 : vector<2x128xf32>
    %226 = vector.broadcast %68 : vector<1x128xf32> to vector<2x128xf32>
    %227 = arith.addf %225, %226 : vector<2x128xf32>
    %228 = arith.addf %89, %227 : vector<2x128xf32>
    %229 = arith.negf %228 : vector<2x128xf32>
    %230 = math.exp %229 : vector<2x128xf32>
    %cst_93 = arith.constant 1.000000e+00 : f32
    %231 = vector.broadcast %cst_93 : f32 to vector<2x128xf32>
    %232 = arith.addf %231, %230 : vector<2x128xf32>
    %233 = arith.divf %231, %232 : vector<2x128xf32>
    %234 = vector.extract_strided_slice %233 {offsets = [0, 0], sizes = [2, 32], strides = [1, 1]} : vector<2x128xf32> to vector<2x32xf32>
    %235 = vector.extract_strided_slice %233 {offsets = [0, 32], sizes = [2, 32], strides = [1, 1]} : vector<2x128xf32> to vector<2x32xf32>
    %236 = vector.extract_strided_slice %233 {offsets = [0, 64], sizes = [2, 32], strides = [1, 1]} : vector<2x128xf32> to vector<2x32xf32>
    %237 = vector.extract_strided_slice %228 {offsets = [0, 96], sizes = [2, 32], strides = [1, 1]} : vector<2x128xf32> to vector<2x32xf32>
    %238 = math.tanh %237 : vector<2x32xf32>
    %239 = arith.mulf %234, %211 : vector<2x32xf32>
    %240 = arith.mulf %235, %238 : vector<2x32xf32>
    %241 = arith.addf %239, %240 : vector<2x32xf32>
    %242 = math.tanh %241 : vector<2x32xf32>
    %243 = arith.mulf %236, %242 : vector<2x32xf32>
    %cst_94 = arith.constant dense<0.000000e+00> : vector<2x8xf32>
    %244 = tpu.matmul %243, %72, %cst_94 {dimension_numbers = #tpu.dot_dimension_numbers<[1], [0], [0], [1], [0, 0, 1, 1], [], []>} : vector<2x32xf32>, vector<32x8xf32>, vector<2x8xf32> -> vector<2x8xf32>
    %c0_i32_95 = arith.constant 0 : i32
    %245 = vector.broadcast %c0_i32_95 : i32 to vector<2x8xi32>
    %246 = arith.cmpi eq, %209, %245 : vector<2x8xi32>
    %247 = arith.extui %246 : vector<2x8xi1> to vector<2x8xi32>
    %248 = arith.sitofp %247 : vector<2x8xi32> to vector<2x8xf32>
    %249 = arith.mulf %244, %248 : vector<2x8xf32>
    %250 = arith.addf %212, %249 : vector<2x8xf32>
    %cst_96 = arith.constant dense<0.000000e+00> : vector<2x128xf32>
    %251 = tpu.matmul %243, %71, %cst_96 {dimension_numbers = #tpu.dot_dimension_numbers<[1], [0], [0], [1], [0, 0, 1, 1], [], []>} : vector<2x32xf32>, vector<32x128xf32>, vector<2x128xf32> -> vector<2x128xf32>
    %252 = vector.broadcast %66 : vector<1x128xf32> to vector<2x128xf32>
    %253 = arith.addf %251, %252 : vector<2x128xf32>
    %cst_97 = arith.constant dense<0.000000e+00> : vector<2x128xf32>
    %254 = tpu.matmul %253, %62, %cst_97 {dimension_numbers = #tpu.dot_dimension_numbers<[1], [0], [0], [1], [0, 0, 1, 1], [], []>} : vector<2x128xf32>, vector<128x128xf32>, vector<2x128xf32> -> vector<2x128xf32>
    %255 = arith.subf %253, %254 : vector<2x128xf32>
    %256 = arith.mulf %255, %255 : vector<2x128xf32>
    %cst_98 = arith.constant dense<0.000000e+00> : vector<2x128xf32>
    %257 = tpu.matmul %256, %62, %cst_98 {dimension_numbers = #tpu.dot_dimension_numbers<[1], [0], [0], [1], [0, 0, 1, 1], [], []>} : vector<2x128xf32>, vector<128x128xf32>, vector<2x128xf32> -> vector<2x128xf32>
    %cst_99 = arith.constant 9.99999974E-6 : f32
    %258 = vector.broadcast %cst_99 : f32 to vector<2x128xf32>
    %259 = arith.addf %257, %258 : vector<2x128xf32>
    %260 = math.rsqrt %259 : vector<2x128xf32>
    %261 = arith.mulf %255, %260 : vector<2x128xf32>
    %262 = vector.broadcast %67 : vector<1x128xf32> to vector<2x128xf32>
    %263 = arith.mulf %261, %262 : vector<2x128xf32>
    %264 = vector.broadcast %68 : vector<1x128xf32> to vector<2x128xf32>
    %265 = arith.addf %263, %264 : vector<2x128xf32>
    %266 = arith.addf %106, %265 : vector<2x128xf32>
    %267 = arith.negf %266 : vector<2x128xf32>
    %268 = math.exp %267 : vector<2x128xf32>
    %cst_100 = arith.constant 1.000000e+00 : f32
    %269 = vector.broadcast %cst_100 : f32 to vector<2x128xf32>
    %270 = arith.addf %269, %268 : vector<2x128xf32>
    %271 = arith.divf %269, %270 : vector<2x128xf32>
    %272 = vector.extract_strided_slice %271 {offsets = [0, 0], sizes = [2, 32], strides = [1, 1]} : vector<2x128xf32> to vector<2x32xf32>
    %273 = vector.extract_strided_slice %271 {offsets = [0, 32], sizes = [2, 32], strides = [1, 1]} : vector<2x128xf32> to vector<2x32xf32>
    %274 = vector.extract_strided_slice %271 {offsets = [0, 64], sizes = [2, 32], strides = [1, 1]} : vector<2x128xf32> to vector<2x32xf32>
    %275 = vector.extract_strided_slice %266 {offsets = [0, 96], sizes = [2, 32], strides = [1, 1]} : vector<2x128xf32> to vector<2x32xf32>
    %276 = math.tanh %275 : vector<2x32xf32>
    %277 = arith.mulf %272, %241 : vector<2x32xf32>
    %278 = arith.mulf %273, %276 : vector<2x32xf32>
    %279 = arith.addf %277, %278 : vector<2x32xf32>
    %280 = math.tanh %279 : vector<2x32xf32>
    %281 = arith.mulf %274, %280 : vector<2x32xf32>
    %cst_101 = arith.constant dense<0.000000e+00> : vector<2x8xf32>
    %282 = tpu.matmul %281, %72, %cst_101 {dimension_numbers = #tpu.dot_dimension_numbers<[1], [0], [0], [1], [0, 0, 1, 1], [], []>} : vector<2x32xf32>, vector<32x8xf32>, vector<2x8xf32> -> vector<2x8xf32>
    %c1_i32 = arith.constant 1 : i32
    %283 = vector.broadcast %c1_i32 : i32 to vector<2x8xi32>
    %284 = arith.cmpi eq, %209, %283 : vector<2x8xi32>
    %285 = arith.extui %284 : vector<2x8xi1> to vector<2x8xi32>
    %286 = arith.sitofp %285 : vector<2x8xi32> to vector<2x8xf32>
    %287 = arith.mulf %282, %286 : vector<2x8xf32>
    %288 = arith.addf %250, %287 : vector<2x8xf32>
    %cst_102 = arith.constant dense<0.000000e+00> : vector<2x128xf32>
    %289 = tpu.matmul %281, %71, %cst_102 {dimension_numbers = #tpu.dot_dimension_numbers<[1], [0], [0], [1], [0, 0, 1, 1], [], []>} : vector<2x32xf32>, vector<32x128xf32>, vector<2x128xf32> -> vector<2x128xf32>
    %290 = vector.broadcast %66 : vector<1x128xf32> to vector<2x128xf32>
    %291 = arith.addf %289, %290 : vector<2x128xf32>
    %cst_103 = arith.constant dense<0.000000e+00> : vector<2x128xf32>
    %292 = tpu.matmul %291, %62, %cst_103 {dimension_numbers = #tpu.dot_dimension_numbers<[1], [0], [0], [1], [0, 0, 1, 1], [], []>} : vector<2x128xf32>, vector<128x128xf32>, vector<2x128xf32> -> vector<2x128xf32>
    %293 = arith.subf %291, %292 : vector<2x128xf32>
    %294 = arith.mulf %293, %293 : vector<2x128xf32>
    %cst_104 = arith.constant dense<0.000000e+00> : vector<2x128xf32>
    %295 = tpu.matmul %294, %62, %cst_104 {dimension_numbers = #tpu.dot_dimension_numbers<[1], [0], [0], [1], [0, 0, 1, 1], [], []>} : vector<2x128xf32>, vector<128x128xf32>, vector<2x128xf32> -> vector<2x128xf32>
    %cst_105 = arith.constant 9.99999974E-6 : f32
    %296 = vector.broadcast %cst_105 : f32 to vector<2x128xf32>
    %297 = arith.addf %295, %296 : vector<2x128xf32>
    %298 = math.rsqrt %297 : vector<2x128xf32>
    %299 = arith.mulf %293, %298 : vector<2x128xf32>
    %300 = vector.broadcast %67 : vector<1x128xf32> to vector<2x128xf32>
    %301 = arith.mulf %299, %300 : vector<2x128xf32>
    %302 = vector.broadcast %68 : vector<1x128xf32> to vector<2x128xf32>
    %303 = arith.addf %301, %302 : vector<2x128xf32>
    %304 = arith.addf %123, %303 : vector<2x128xf32>
    %305 = arith.negf %304 : vector<2x128xf32>
    %306 = math.exp %305 : vector<2x128xf32>
    %cst_106 = arith.constant 1.000000e+00 : f32
    %307 = vector.broadcast %cst_106 : f32 to vector<2x128xf32>
    %308 = arith.addf %307, %306 : vector<2x128xf32>
    %309 = arith.divf %307, %308 : vector<2x128xf32>
    %310 = vector.extract_strided_slice %309 {offsets = [0, 0], sizes = [2, 32], strides = [1, 1]} : vector<2x128xf32> to vector<2x32xf32>
    %311 = vector.extract_strided_slice %309 {offsets = [0, 32], sizes = [2, 32], strides = [1, 1]} : vector<2x128xf32> to vector<2x32xf32>
    %312 = vector.extract_strided_slice %309 {offsets = [0, 64], sizes = [2, 32], strides = [1, 1]} : vector<2x128xf32> to vector<2x32xf32>
    %313 = vector.extract_strided_slice %304 {offsets = [0, 96], sizes = [2, 32], strides = [1, 1]} : vector<2x128xf32> to vector<2x32xf32>
    %314 = math.tanh %313 : vector<2x32xf32>
    %315 = arith.mulf %310, %279 : vector<2x32xf32>
    %316 = arith.mulf %311, %314 : vector<2x32xf32>
    %317 = arith.addf %315, %316 : vector<2x32xf32>
    %318 = math.tanh %317 : vector<2x32xf32>
    %319 = arith.mulf %312, %318 : vector<2x32xf32>
    %cst_107 = arith.constant dense<0.000000e+00> : vector<2x8xf32>
    %320 = tpu.matmul %319, %72, %cst_107 {dimension_numbers = #tpu.dot_dimension_numbers<[1], [0], [0], [1], [0, 0, 1, 1], [], []>} : vector<2x32xf32>, vector<32x8xf32>, vector<2x8xf32> -> vector<2x8xf32>
    %c2_i32 = arith.constant 2 : i32
    %321 = vector.broadcast %c2_i32 : i32 to vector<2x8xi32>
    %322 = arith.cmpi eq, %209, %321 : vector<2x8xi32>
    %323 = arith.extui %322 : vector<2x8xi1> to vector<2x8xi32>
    %324 = arith.sitofp %323 : vector<2x8xi32> to vector<2x8xf32>
    %325 = arith.mulf %320, %324 : vector<2x8xf32>
    %326 = arith.addf %288, %325 : vector<2x8xf32>
    %cst_108 = arith.constant dense<0.000000e+00> : vector<2x128xf32>
    %327 = tpu.matmul %319, %71, %cst_108 {dimension_numbers = #tpu.dot_dimension_numbers<[1], [0], [0], [1], [0, 0, 1, 1], [], []>} : vector<2x32xf32>, vector<32x128xf32>, vector<2x128xf32> -> vector<2x128xf32>
    %328 = vector.broadcast %66 : vector<1x128xf32> to vector<2x128xf32>
    %329 = arith.addf %327, %328 : vector<2x128xf32>
    %cst_109 = arith.constant dense<0.000000e+00> : vector<2x128xf32>
    %330 = tpu.matmul %329, %62, %cst_109 {dimension_numbers = #tpu.dot_dimension_numbers<[1], [0], [0], [1], [0, 0, 1, 1], [], []>} : vector<2x128xf32>, vector<128x128xf32>, vector<2x128xf32> -> vector<2x128xf32>
    %331 = arith.subf %329, %330 : vector<2x128xf32>
    %332 = arith.mulf %331, %331 : vector<2x128xf32>
    %cst_110 = arith.constant dense<0.000000e+00> : vector<2x128xf32>
    %333 = tpu.matmul %332, %62, %cst_110 {dimension_numbers = #tpu.dot_dimension_numbers<[1], [0], [0], [1], [0, 0, 1, 1], [], []>} : vector<2x128xf32>, vector<128x128xf32>, vector<2x128xf32> -> vector<2x128xf32>
    %cst_111 = arith.constant 9.99999974E-6 : f32
    %334 = vector.broadcast %cst_111 : f32 to vector<2x128xf32>
    %335 = arith.addf %333, %334 : vector<2x128xf32>
    %336 = math.rsqrt %335 : vector<2x128xf32>
    %337 = arith.mulf %331, %336 : vector<2x128xf32>
    %338 = vector.broadcast %67 : vector<1x128xf32> to vector<2x128xf32>
    %339 = arith.mulf %337, %338 : vector<2x128xf32>
    %340 = vector.broadcast %68 : vector<1x128xf32> to vector<2x128xf32>
    %341 = arith.addf %339, %340 : vector<2x128xf32>
    %342 = arith.addf %140, %341 : vector<2x128xf32>
    %343 = arith.negf %342 : vector<2x128xf32>
    %344 = math.exp %343 : vector<2x128xf32>
    %cst_112 = arith.constant 1.000000e+00 : f32
    %345 = vector.broadcast %cst_112 : f32 to vector<2x128xf32>
    %346 = arith.addf %345, %344 : vector<2x128xf32>
    %347 = arith.divf %345, %346 : vector<2x128xf32>
    %348 = vector.extract_strided_slice %347 {offsets = [0, 0], sizes = [2, 32], strides = [1, 1]} : vector<2x128xf32> to vector<2x32xf32>
    %349 = vector.extract_strided_slice %347 {offsets = [0, 32], sizes = [2, 32], strides = [1, 1]} : vector<2x128xf32> to vector<2x32xf32>
    %350 = vector.extract_strided_slice %347 {offsets = [0, 64], sizes = [2, 32], strides = [1, 1]} : vector<2x128xf32> to vector<2x32xf32>
    %351 = vector.extract_strided_slice %342 {offsets = [0, 96], sizes = [2, 32], strides = [1, 1]} : vector<2x128xf32> to vector<2x32xf32>
    %352 = math.tanh %351 : vector<2x32xf32>
    %353 = arith.mulf %348, %317 : vector<2x32xf32>
    %354 = arith.mulf %349, %352 : vector<2x32xf32>
    %355 = arith.addf %353, %354 : vector<2x32xf32>
    %356 = math.tanh %355 : vector<2x32xf32>
    %357 = arith.mulf %350, %356 : vector<2x32xf32>
    %cst_113 = arith.constant dense<0.000000e+00> : vector<2x8xf32>
    %358 = tpu.matmul %357, %72, %cst_113 {dimension_numbers = #tpu.dot_dimension_numbers<[1], [0], [0], [1], [0, 0, 1, 1], [], []>} : vector<2x32xf32>, vector<32x8xf32>, vector<2x8xf32> -> vector<2x8xf32>
    %c3_i32 = arith.constant 3 : i32
    %359 = vector.broadcast %c3_i32 : i32 to vector<2x8xi32>
    %360 = arith.cmpi eq, %209, %359 : vector<2x8xi32>
    %361 = arith.extui %360 : vector<2x8xi1> to vector<2x8xi32>
    %362 = arith.sitofp %361 : vector<2x8xi32> to vector<2x8xf32>
    %363 = arith.mulf %358, %362 : vector<2x8xf32>
    %364 = arith.addf %326, %363 : vector<2x8xf32>
    %cst_114 = arith.constant dense<0.000000e+00> : vector<2x128xf32>
    %365 = tpu.matmul %357, %71, %cst_114 {dimension_numbers = #tpu.dot_dimension_numbers<[1], [0], [0], [1], [0, 0, 1, 1], [], []>} : vector<2x32xf32>, vector<32x128xf32>, vector<2x128xf32> -> vector<2x128xf32>
    %366 = vector.broadcast %66 : vector<1x128xf32> to vector<2x128xf32>
    %367 = arith.addf %365, %366 : vector<2x128xf32>
    %cst_115 = arith.constant dense<0.000000e+00> : vector<2x128xf32>
    %368 = tpu.matmul %367, %62, %cst_115 {dimension_numbers = #tpu.dot_dimension_numbers<[1], [0], [0], [1], [0, 0, 1, 1], [], []>} : vector<2x128xf32>, vector<128x128xf32>, vector<2x128xf32> -> vector<2x128xf32>
    %369 = arith.subf %367, %368 : vector<2x128xf32>
    %370 = arith.mulf %369, %369 : vector<2x128xf32>
    %cst_116 = arith.constant dense<0.000000e+00> : vector<2x128xf32>
    %371 = tpu.matmul %370, %62, %cst_116 {dimension_numbers = #tpu.dot_dimension_numbers<[1], [0], [0], [1], [0, 0, 1, 1], [], []>} : vector<2x128xf32>, vector<128x128xf32>, vector<2x128xf32> -> vector<2x128xf32>
    %cst_117 = arith.constant 9.99999974E-6 : f32
    %372 = vector.broadcast %cst_117 : f32 to vector<2x128xf32>
    %373 = arith.addf %371, %372 : vector<2x128xf32>
    %374 = math.rsqrt %373 : vector<2x128xf32>
    %375 = arith.mulf %369, %374 : vector<2x128xf32>
    %376 = vector.broadcast %67 : vector<1x128xf32> to vector<2x128xf32>
    %377 = arith.mulf %375, %376 : vector<2x128xf32>
    %378 = vector.broadcast %68 : vector<1x128xf32> to vector<2x128xf32>
    %379 = arith.addf %377, %378 : vector<2x128xf32>
    %380 = arith.addf %157, %379 : vector<2x128xf32>
    %381 = arith.negf %380 : vector<2x128xf32>
    %382 = math.exp %381 : vector<2x128xf32>
    %cst_118 = arith.constant 1.000000e+00 : f32
    %383 = vector.broadcast %cst_118 : f32 to vector<2x128xf32>
    %384 = arith.addf %383, %382 : vector<2x128xf32>
    %385 = arith.divf %383, %384 : vector<2x128xf32>
    %386 = vector.extract_strided_slice %385 {offsets = [0, 0], sizes = [2, 32], strides = [1, 1]} : vector<2x128xf32> to vector<2x32xf32>
    %387 = vector.extract_strided_slice %385 {offsets = [0, 32], sizes = [2, 32], strides = [1, 1]} : vector<2x128xf32> to vector<2x32xf32>
    %388 = vector.extract_strided_slice %385 {offsets = [0, 64], sizes = [2, 32], strides = [1, 1]} : vector<2x128xf32> to vector<2x32xf32>
    %389 = vector.extract_strided_slice %380 {offsets = [0, 96], sizes = [2, 32], strides = [1, 1]} : vector<2x128xf32> to vector<2x32xf32>
    %390 = math.tanh %389 : vector<2x32xf32>
    %391 = arith.mulf %386, %355 : vector<2x32xf32>
    %392 = arith.mulf %387, %390 : vector<2x32xf32>
    %393 = arith.addf %391, %392 : vector<2x32xf32>
    %394 = math.tanh %393 : vector<2x32xf32>
    %395 = arith.mulf %388, %394 : vector<2x32xf32>
    %cst_119 = arith.constant dense<0.000000e+00> : vector<2x8xf32>
    %396 = tpu.matmul %395, %72, %cst_119 {dimension_numbers = #tpu.dot_dimension_numbers<[1], [0], [0], [1], [0, 0, 1, 1], [], []>} : vector<2x32xf32>, vector<32x8xf32>, vector<2x8xf32> -> vector<2x8xf32>
    %c4_i32 = arith.constant 4 : i32
    %397 = vector.broadcast %c4_i32 : i32 to vector<2x8xi32>
    %398 = arith.cmpi eq, %209, %397 : vector<2x8xi32>
    %399 = arith.extui %398 : vector<2x8xi1> to vector<2x8xi32>
    %400 = arith.sitofp %399 : vector<2x8xi32> to vector<2x8xf32>
    %401 = arith.mulf %396, %400 : vector<2x8xf32>
    %402 = arith.addf %364, %401 : vector<2x8xf32>
    %cst_120 = arith.constant dense<0.000000e+00> : vector<2x128xf32>
    %403 = tpu.matmul %395, %71, %cst_120 {dimension_numbers = #tpu.dot_dimension_numbers<[1], [0], [0], [1], [0, 0, 1, 1], [], []>} : vector<2x32xf32>, vector<32x128xf32>, vector<2x128xf32> -> vector<2x128xf32>
    %404 = vector.broadcast %66 : vector<1x128xf32> to vector<2x128xf32>
    %405 = arith.addf %403, %404 : vector<2x128xf32>
    %cst_121 = arith.constant dense<0.000000e+00> : vector<2x128xf32>
    %406 = tpu.matmul %405, %62, %cst_121 {dimension_numbers = #tpu.dot_dimension_numbers<[1], [0], [0], [1], [0, 0, 1, 1], [], []>} : vector<2x128xf32>, vector<128x128xf32>, vector<2x128xf32> -> vector<2x128xf32>
    %407 = arith.subf %405, %406 : vector<2x128xf32>
    %408 = arith.mulf %407, %407 : vector<2x128xf32>
    %cst_122 = arith.constant dense<0.000000e+00> : vector<2x128xf32>
    %409 = tpu.matmul %408, %62, %cst_122 {dimension_numbers = #tpu.dot_dimension_numbers<[1], [0], [0], [1], [0, 0, 1, 1], [], []>} : vector<2x128xf32>, vector<128x128xf32>, vector<2x128xf32> -> vector<2x128xf32>
    %cst_123 = arith.constant 9.99999974E-6 : f32
    %410 = vector.broadcast %cst_123 : f32 to vector<2x128xf32>
    %411 = arith.addf %409, %410 : vector<2x128xf32>
    %412 = math.rsqrt %411 : vector<2x128xf32>
    %413 = arith.mulf %407, %412 : vector<2x128xf32>
    %414 = vector.broadcast %67 : vector<1x128xf32> to vector<2x128xf32>
    %415 = arith.mulf %413, %414 : vector<2x128xf32>
    %416 = vector.broadcast %68 : vector<1x128xf32> to vector<2x128xf32>
    %417 = arith.addf %415, %416 : vector<2x128xf32>
    %418 = arith.addf %174, %417 : vector<2x128xf32>
    %419 = arith.negf %418 : vector<2x128xf32>
    %420 = math.exp %419 : vector<2x128xf32>
    %cst_124 = arith.constant 1.000000e+00 : f32
    %421 = vector.broadcast %cst_124 : f32 to vector<2x128xf32>
    %422 = arith.addf %421, %420 : vector<2x128xf32>
    %423 = arith.divf %421, %422 : vector<2x128xf32>
    %424 = vector.extract_strided_slice %423 {offsets = [0, 0], sizes = [2, 32], strides = [1, 1]} : vector<2x128xf32> to vector<2x32xf32>
    %425 = vector.extract_strided_slice %423 {offsets = [0, 32], sizes = [2, 32], strides = [1, 1]} : vector<2x128xf32> to vector<2x32xf32>
    %426 = vector.extract_strided_slice %423 {offsets = [0, 64], sizes = [2, 32], strides = [1, 1]} : vector<2x128xf32> to vector<2x32xf32>
    %427 = vector.extract_strided_slice %418 {offsets = [0, 96], sizes = [2, 32], strides = [1, 1]} : vector<2x128xf32> to vector<2x32xf32>
    %428 = math.tanh %427 : vector<2x32xf32>
    %429 = arith.mulf %424, %393 : vector<2x32xf32>
    %430 = arith.mulf %425, %428 : vector<2x32xf32>
    %431 = arith.addf %429, %430 : vector<2x32xf32>
    %432 = math.tanh %431 : vector<2x32xf32>
    %433 = arith.mulf %426, %432 : vector<2x32xf32>
    %cst_125 = arith.constant dense<0.000000e+00> : vector<2x8xf32>
    %434 = tpu.matmul %433, %72, %cst_125 {dimension_numbers = #tpu.dot_dimension_numbers<[1], [0], [0], [1], [0, 0, 1, 1], [], []>} : vector<2x32xf32>, vector<32x8xf32>, vector<2x8xf32> -> vector<2x8xf32>
    %c5_i32 = arith.constant 5 : i32
    %435 = vector.broadcast %c5_i32 : i32 to vector<2x8xi32>
    %436 = arith.cmpi eq, %209, %435 : vector<2x8xi32>
    %437 = arith.extui %436 : vector<2x8xi1> to vector<2x8xi32>
    %438 = arith.sitofp %437 : vector<2x8xi32> to vector<2x8xf32>
    %439 = arith.mulf %434, %438 : vector<2x8xf32>
    %440 = arith.addf %402, %439 : vector<2x8xf32>
    %cst_126 = arith.constant dense<0.000000e+00> : vector<2x128xf32>
    %441 = tpu.matmul %433, %71, %cst_126 {dimension_numbers = #tpu.dot_dimension_numbers<[1], [0], [0], [1], [0, 0, 1, 1], [], []>} : vector<2x32xf32>, vector<32x128xf32>, vector<2x128xf32> -> vector<2x128xf32>
    %442 = vector.broadcast %66 : vector<1x128xf32> to vector<2x128xf32>
    %443 = arith.addf %441, %442 : vector<2x128xf32>
    %cst_127 = arith.constant dense<0.000000e+00> : vector<2x128xf32>
    %444 = tpu.matmul %443, %62, %cst_127 {dimension_numbers = #tpu.dot_dimension_numbers<[1], [0], [0], [1], [0, 0, 1, 1], [], []>} : vector<2x128xf32>, vector<128x128xf32>, vector<2x128xf32> -> vector<2x128xf32>
    %445 = arith.subf %443, %444 : vector<2x128xf32>
    %446 = arith.mulf %445, %445 : vector<2x128xf32>
    %cst_128 = arith.constant dense<0.000000e+00> : vector<2x128xf32>
    %447 = tpu.matmul %446, %62, %cst_128 {dimension_numbers = #tpu.dot_dimension_numbers<[1], [0], [0], [1], [0, 0, 1, 1], [], []>} : vector<2x128xf32>, vector<128x128xf32>, vector<2x128xf32> -> vector<2x128xf32>
    %cst_129 = arith.constant 9.99999974E-6 : f32
    %448 = vector.broadcast %cst_129 : f32 to vector<2x128xf32>
    %449 = arith.addf %447, %448 : vector<2x128xf32>
    %450 = math.rsqrt %449 : vector<2x128xf32>
    %451 = arith.mulf %445, %450 : vector<2x128xf32>
    %452 = vector.broadcast %67 : vector<1x128xf32> to vector<2x128xf32>
    %453 = arith.mulf %451, %452 : vector<2x128xf32>
    %454 = vector.broadcast %68 : vector<1x128xf32> to vector<2x128xf32>
    %455 = arith.addf %453, %454 : vector<2x128xf32>
    %456 = arith.addf %191, %455 : vector<2x128xf32>
    %457 = arith.negf %456 : vector<2x128xf32>
    %458 = math.exp %457 : vector<2x128xf32>
    %cst_130 = arith.constant 1.000000e+00 : f32
    %459 = vector.broadcast %cst_130 : f32 to vector<2x128xf32>
    %460 = arith.addf %459, %458 : vector<2x128xf32>
    %461 = arith.divf %459, %460 : vector<2x128xf32>
    %462 = vector.extract_strided_slice %461 {offsets = [0, 0], sizes = [2, 32], strides = [1, 1]} : vector<2x128xf32> to vector<2x32xf32>
    %463 = vector.extract_strided_slice %461 {offsets = [0, 32], sizes = [2, 32], strides = [1, 1]} : vector<2x128xf32> to vector<2x32xf32>
    %464 = vector.extract_strided_slice %461 {offsets = [0, 64], sizes = [2, 32], strides = [1, 1]} : vector<2x128xf32> to vector<2x32xf32>
    %465 = vector.extract_strided_slice %456 {offsets = [0, 96], sizes = [2, 32], strides = [1, 1]} : vector<2x128xf32> to vector<2x32xf32>
    %466 = math.tanh %465 : vector<2x32xf32>
    %467 = arith.mulf %462, %431 : vector<2x32xf32>
    %468 = arith.mulf %463, %466 : vector<2x32xf32>
    %469 = arith.addf %467, %468 : vector<2x32xf32>
    %470 = math.tanh %469 : vector<2x32xf32>
    %471 = arith.mulf %464, %470 : vector<2x32xf32>
    %cst_131 = arith.constant dense<0.000000e+00> : vector<2x8xf32>
    %472 = tpu.matmul %471, %72, %cst_131 {dimension_numbers = #tpu.dot_dimension_numbers<[1], [0], [0], [1], [0, 0, 1, 1], [], []>} : vector<2x32xf32>, vector<32x8xf32>, vector<2x8xf32> -> vector<2x8xf32>
    %c6_i32 = arith.constant 6 : i32
    %473 = vector.broadcast %c6_i32 : i32 to vector<2x8xi32>
    %474 = arith.cmpi eq, %209, %473 : vector<2x8xi32>
    %475 = arith.extui %474 : vector<2x8xi1> to vector<2x8xi32>
    %476 = arith.sitofp %475 : vector<2x8xi32> to vector<2x8xf32>
    %477 = arith.mulf %472, %476 : vector<2x8xf32>
    %478 = arith.addf %440, %477 : vector<2x8xf32>
    %cst_132 = arith.constant dense<0.000000e+00> : vector<2x128xf32>
    %479 = tpu.matmul %471, %71, %cst_132 {dimension_numbers = #tpu.dot_dimension_numbers<[1], [0], [0], [1], [0, 0, 1, 1], [], []>} : vector<2x32xf32>, vector<32x128xf32>, vector<2x128xf32> -> vector<2x128xf32>
    %480 = vector.broadcast %66 : vector<1x128xf32> to vector<2x128xf32>
    %481 = arith.addf %479, %480 : vector<2x128xf32>
    %cst_133 = arith.constant dense<0.000000e+00> : vector<2x128xf32>
    %482 = tpu.matmul %481, %62, %cst_133 {dimension_numbers = #tpu.dot_dimension_numbers<[1], [0], [0], [1], [0, 0, 1, 1], [], []>} : vector<2x128xf32>, vector<128x128xf32>, vector<2x128xf32> -> vector<2x128xf32>
    %483 = arith.subf %481, %482 : vector<2x128xf32>
    %484 = arith.mulf %483, %483 : vector<2x128xf32>
    %cst_134 = arith.constant dense<0.000000e+00> : vector<2x128xf32>
    %485 = tpu.matmul %484, %62, %cst_134 {dimension_numbers = #tpu.dot_dimension_numbers<[1], [0], [0], [1], [0, 0, 1, 1], [], []>} : vector<2x128xf32>, vector<128x128xf32>, vector<2x128xf32> -> vector<2x128xf32>
    %cst_135 = arith.constant 9.99999974E-6 : f32
    %486 = vector.broadcast %cst_135 : f32 to vector<2x128xf32>
    %487 = arith.addf %485, %486 : vector<2x128xf32>
    %488 = math.rsqrt %487 : vector<2x128xf32>
    %489 = arith.mulf %483, %488 : vector<2x128xf32>
    %490 = vector.broadcast %67 : vector<1x128xf32> to vector<2x128xf32>
    %491 = arith.mulf %489, %490 : vector<2x128xf32>
    %492 = vector.broadcast %68 : vector<1x128xf32> to vector<2x128xf32>
    %493 = arith.addf %491, %492 : vector<2x128xf32>
    %494 = arith.addf %208, %493 : vector<2x128xf32>
    %495 = arith.negf %494 : vector<2x128xf32>
    %496 = math.exp %495 : vector<2x128xf32>
    %cst_136 = arith.constant 1.000000e+00 : f32
    %497 = vector.broadcast %cst_136 : f32 to vector<2x128xf32>
    %498 = arith.addf %497, %496 : vector<2x128xf32>
    %499 = arith.divf %497, %498 : vector<2x128xf32>
    %500 = vector.extract_strided_slice %499 {offsets = [0, 0], sizes = [2, 32], strides = [1, 1]} : vector<2x128xf32> to vector<2x32xf32>
    %501 = vector.extract_strided_slice %499 {offsets = [0, 32], sizes = [2, 32], strides = [1, 1]} : vector<2x128xf32> to vector<2x32xf32>
    %502 = vector.extract_strided_slice %499 {offsets = [0, 64], sizes = [2, 32], strides = [1, 1]} : vector<2x128xf32> to vector<2x32xf32>
    %503 = vector.extract_strided_slice %494 {offsets = [0, 96], sizes = [2, 32], strides = [1, 1]} : vector<2x128xf32> to vector<2x32xf32>
    %504 = math.tanh %503 : vector<2x32xf32>
    %505 = arith.mulf %500, %469 : vector<2x32xf32>
    %506 = arith.mulf %501, %504 : vector<2x32xf32>
    %507 = arith.addf %505, %506 : vector<2x32xf32>
    %508 = math.tanh %507 : vector<2x32xf32>
    %509 = arith.mulf %502, %508 : vector<2x32xf32>
    %cst_137 = arith.constant dense<0.000000e+00> : vector<2x8xf32>
    %510 = tpu.matmul %509, %72, %cst_137 {dimension_numbers = #tpu.dot_dimension_numbers<[1], [0], [0], [1], [0, 0, 1, 1], [], []>} : vector<2x32xf32>, vector<32x8xf32>, vector<2x8xf32> -> vector<2x8xf32>
    %c7_i32 = arith.constant 7 : i32
    %511 = vector.broadcast %c7_i32 : i32 to vector<2x8xi32>
    %512 = arith.cmpi eq, %209, %511 : vector<2x8xi32>
    %513 = arith.extui %512 : vector<2x8xi1> to vector<2x8xi32>
    %514 = arith.sitofp %513 : vector<2x8xi32> to vector<2x8xf32>
    %515 = arith.mulf %510, %514 : vector<2x8xf32>
    %516 = arith.addf %478, %515 : vector<2x8xf32>
    %517 = vector.broadcast %69 : vector<1x8xf32> to vector<2x8xf32>
    %518 = arith.addf %516, %517 : vector<2x8xf32>
    %cst_138 = arith.constant 1.500000e+00 : f32
    %519 = vector.broadcast %cst_138 : f32 to vector<2x8xf32>
    %520 = arith.divf %518, %519 : vector<2x8xf32>
    %cst_139 = arith.constant 1.500000e+00 : f32
    %521 = vector.broadcast %cst_139 : f32 to vector<2x8xf32>
    %522 = arith.divf %520, %521 : vector<2x8xf32>
    %523 = arith.negf %522 : vector<2x8xf32>
    %524 = math.exp %523 : vector<2x8xf32>
    %cst_140 = arith.constant 1.000000e+00 : f32
    %525 = vector.broadcast %cst_140 : f32 to vector<2x8xf32>
    %526 = arith.addf %525, %524 : vector<2x8xf32>
    %527 = arith.divf %525, %526 : vector<2x8xf32>
    %c0_141 = arith.constant 0 : index
    %c0_142 = arith.constant 0 : index
    %528 = vector.load %arg4[%c0_141, %c0_142] : memref<2x8xf32, #tpu.memory_space<vmem>>, vector<2x8xf32>
    tpu.vector_store %arg4[%c0_141, %c0_142], %527 {strides = array<i32>} : memref<2x8xf32, #tpu.memory_space<vmem>>, vector<2x8xf32>,
    return
  }
}

</mosaic_0001>

<llo_original>
// kernel: tpu_custom_call.1
$region0: #{tpu_custom_call.1}
  #allocation0 [shape = 'u32[]', space=smem, size = 0x4, offset = 0x4, fixed_abs, tag = 'smem constant byte address 0x4 - core index']
  #allocation1 [shape = 'u32[144,128]{1,0:T(1,128)}', space=vmem, size = 0x12000, scoped, tag = 'internal scratch']
  %s0 = inlined_call_operand.vmem [shape: f32[8,2,4], index: 0, kind: input, shape index: {}]
  %s1 = inlined_call_operand.vmem [shape: f32[4,128], index: 1, kind: input, shape index: {}]
  %s2 = inlined_call_operand.hbm [shape: f32[32,136], index: 2, kind: input, shape index: {}]
  %s3 = inlined_call_operand.vmem [shape: f32[8,128], index: 3, kind: input, shape index: {}]
  %s4 = inlined_call_operand.hbm [shape: f32[2,8], index: 4, kind: output, shape index: {}]
  %s5 = sld [smem:[#allocation0]]
  $region30: #{tpu_custom_call.1} parent=0
    _
  %s7 = ssub.s32 1, %s5
  %s8 = scalar_select 0, %s7, %s5
  $region1: #{tpu_custom_call.1} parent=0
    #allocation2 [shape = 'u8[32768]{0}', space=vmem, size = 0x8000, scoped, tag = 'input window, operand 2, single buffered']
    #allocation3 [shape = 's32[1]{0}', space=sflag, size = 0x4, scoped, tag = 'scoped memory for tpu_custom_call.1']
    #allocation4 [shape = 's32[1]{0}', space=sflag, size = 0x4, scoped, tag = 'scoped memory for tpu_custom_call.1']
    #allocation5 [shape = 'u8[1024]{0}', space=vmem, size = 0x400, scoped, tag = 'output window, operand 0, single buffered']
    %9 = vsyncpa [#allocation3], 0
    %10 = vsyncpa [#allocation4], 0
    // Predicated region
    $region2: #{tpu_custom_call.1} parent=1 // pred_check
      _
    $region3: #{tpu_custom_call.1} parent=1 // pred_check_branch
      %12 = sbr.rel (0) target = $region5
    $region4: #{tpu_custom_call.1} parent=1 // pred_region
      _
    $region5: #{tpu_custom_call.1} parent=1 // pred_fallthru
      _
    // Predicated region
    $region6: #{tpu_custom_call.1} parent=1 // pred_check
      _
    $region7: #{tpu_custom_call.1} parent=1 // pred_check_branch
      %14 = sbr.rel (0) target = $region9
    $region8: #{tpu_custom_call.1} parent=1 // pred_region
      _
    $region9: #{tpu_custom_call.1} parent=1 // pred_fallthru
      _
    // Predicated region
    $region10: #{tpu_custom_call.1} parent=1 // pred_check
      _
    $region11: #{tpu_custom_call.1} parent=1 // pred_check_branch
      %16 = sbr.rel (0) target = $region13
    $region12: #{tpu_custom_call.1} parent=1 // pred_region
      %s18 = ssub.s32 1024, 1024
      %19 = vsyncadd [#allocation3], %s18
      %s20 = sshll.u32 [#allocation2], 4
      %s21 = int_to_ptr.vmem [resolvable:$true] %s20
      %26 = dma.hbm_to_vmem [thread:$0]  %s2, 1024, %s21, [#allocation3], 256, 256, 16
    $region13: #{tpu_custom_call.1} parent=1 // pred_fallthru
      _
    // Predicated region
    $region14: #{tpu_custom_call.1} parent=1 // pred_check
      _
    $region15: #{tpu_custom_call.1} parent=1 // pred_check_branch
      %28 = sbr.rel (0) target = $region17
    $region16: #{tpu_custom_call.1} parent=1 // pred_region
      _
    $region17: #{tpu_custom_call.1} parent=1 // pred_fallthru
      _
    // Predicated region
    $region18: #{tpu_custom_call.1} parent=1 // pred_check
      _
    $region19: #{tpu_custom_call.1} parent=1 // pred_check_branch
      %30 = sbr.rel (0) target = $region21
    $region20: #{tpu_custom_call.1} parent=1 // pred_region
      %31 = dma.done [#allocation3], 1024
    $region21: #{tpu_custom_call.1} parent=1 // pred_fallthru
      _
    %v32 = vlaneseq
    %v33 = vshrl.u32 %v32, 7
    %v34 = vadd.s32 %v33, 8
    %v35 = vadd.s32 %v33, 16
    %v36 = vadd.s32 %v33, 24
    %v37 = vadd.s32 %v33, 32
    %v38 = vadd.s32 %v33, 40
    %v39 = vadd.s32 %v33, 48
    %v40 = vadd.s32 %v33, 56
    %v41 = vadd.s32 %v33, 64
    %v42 = vadd.s32 %v33, 72
    %v43 = vadd.s32 %v33, 80
    %v44 = vadd.s32 %v33, 88
    %v45 = vadd.s32 %v33, 96
    %v46 = vadd.s32 %v33, 104
    %v47 = vadd.s32 %v33, 112
    %v48 = vadd.s32 %v33, 120
    %v49 = vlaneseq
    %v50 = vand.u32 %v49, 127
    %vm51 = vcmp.ge.s32.totalorder %v33, 0
    %vm52 = vcmp.ge.s32.totalorder %v34, 0
    %vm53 = vcmp.ge.s32.totalorder %v35, 0
    %vm54 = vcmp.ge.s32.totalorder %v36, 0
    %vm55 = vcmp.ge.s32.totalorder %v37, 0
    %vm56 = vcmp.ge.s32.totalorder %v38, 0
    %vm57 = vcmp.ge.s32.totalorder %v39, 0
    %vm58 = vcmp.ge.s32.totalorder %v40, 0
    %vm59 = vcmp.ge.s32.totalorder %v41, 0
    %vm60 = vcmp.ge.s32.totalorder %v42, 0
    %vm61 = vcmp.ge.s32.totalorder %v43, 0
    %vm62 = vcmp.ge.s32.totalorder %v44, 0
    %vm63 = vcmp.ge.s32.totalorder %v45, 0
    %vm64 = vcmp.ge.s32.totalorder %v46, 0
    %vm65 = vcmp.ge.s32.totalorder %v47, 0
    %vm66 = vcmp.ge.s32.totalorder %v48, 0
    %vm67 = vcmp.lt.s32.totalorder %v33, 32
    %vm68 = vcmp.lt.s32.totalorder %v34, 32
    %vm69 = vcmp.lt.s32.totalorder %v35, 32
    %vm70 = vcmp.lt.s32.totalorder %v36, 32
    %vm71 = vcmp.lt.s32.totalorder %v37, 32
    %vm72 = vcmp.lt.s32.totalorder %v38, 32
    %vm73 = vcmp.lt.s32.totalorder %v39, 32
    %vm74 = vcmp.lt.s32.totalorder %v40, 32
    %vm75 = vcmp.lt.s32.totalorder %v41, 32
    %vm76 = vcmp.lt.s32.totalorder %v42, 32
    %vm77 = vcmp.lt.s32.totalorder %v43, 32
    %vm78 = vcmp.lt.s32.totalorder %v44, 32
    %vm79 = vcmp.lt.s32.totalorder %v45, 32
    %vm80 = vcmp.lt.s32.totalorder %v46, 32
    %vm81 = vcmp.lt.s32.totalorder %v47, 32
    %vm82 = vcmp.lt.s32.totalorder %v48, 32
    %vm83 = vmand %vm51, %vm67
    %vm84 = vmand %vm52, %vm68
    %vm85 = vmand %vm53, %vm69
    %vm86 = vmand %vm54, %vm70
    %vm87 = vmand %vm55, %vm71
    %vm88 = vmand %vm56, %vm72
    %vm89 = vmand %vm57, %vm73
    %vm90 = vmand %vm58, %vm74
    %vm91 = vmand %vm59, %vm75
    %vm92 = vmand %vm60, %vm76
    %vm93 = vmand %vm61, %vm77
    %vm94 = vmand %vm62, %vm78
    %vm95 = vmand %vm63, %vm79
    %vm96 = vmand %vm64, %vm80
    %vm97 = vmand %vm65, %vm81
    %vm98 = vmand %vm66, %vm82
    %vm99 = vcmp.ge.s32.totalorder %v50, 0
    %vm100 = vmand %vm83, %vm99
    %vm101 = vmand %vm84, %vm99
    %vm102 = vmand %vm85, %vm99
    %vm103 = vmand %vm86, %vm99
    %vm104 = vmand %vm87, %vm99
    %vm105 = vmand %vm88, %vm99
    %vm106 = vmand %vm89, %vm99
    %vm107 = vmand %vm90, %vm99
    %vm108 = vmand %vm91, %vm99
    %vm109 = vmand %vm92, %vm99
    %vm110 = vmand %vm93, %vm99
    %vm111 = vmand %vm94, %vm99
    %vm112 = vmand %vm95, %vm99
    %vm113 = vmand %vm96, %vm99
    %vm114 = vmand %vm97, %vm99
    %vm115 = vmand %vm98, %vm99
    %vm116 = vcmp.lt.s32.totalorder %v50, 32
    %vm117 = vmand %vm100, %vm116
    %vm118 = vmand %vm101, %vm116
    %vm119 = vmand %vm102, %vm116
    %vm120 = vmand %vm103, %vm116
    %vm121 = vmand %vm104, %vm116
    %vm122 = vmand %vm105, %vm116
    %vm123 = vmand %vm106, %vm116
    %vm124 = vmand %vm107, %vm116
    %vm125 = vmand %vm108, %vm116
    %vm126 = vmand %vm109, %vm116
    %vm127 = vmand %vm110, %vm116
    %vm128 = vmand %vm111, %vm116
    %vm129 = vmand %vm112, %vm116
    %vm130 = vmand %vm113, %vm116
    %vm131 = vmand %vm114, %vm116
    %vm132 = vmand %vm115, %vm116
    %v133 = vsel %vm117, 0.03125, 0.0
    %v134 = vsel %vm118, 0.03125, 0.0
    %v135 = vsel %vm119, 0.03125, 0.0
    %v136 = vsel %vm120, 0.03125, 0.0
    %v137 = vsel %vm121, 0.03125, 0.0
    %v138 = vsel %vm122, 0.03125, 0.0
    %v139 = vsel %vm123, 0.03125, 0.0
    %v140 = vsel %vm124, 0.03125, 0.0
    %v141 = vsel %vm125, 0.03125, 0.0
    %v142 = vsel %vm126, 0.03125, 0.0
    %v143 = vsel %vm127, 0.03125, 0.0
    %v144 = vsel %vm128, 0.03125, 0.0
    %v145 = vsel %vm129, 0.03125, 0.0
    %v146 = vsel %vm130, 0.03125, 0.0
    %v147 = vsel %vm131, 0.03125, 0.0
    %v148 = vsel %vm132, 0.03125, 0.0
    %v149 = vadd.f32 %v133, 0.0
    %v150 = vadd.f32 %v134, 0.0
    %v151 = vadd.f32 %v135, 0.0
    %v152 = vadd.f32 %v136, 0.0
    %v153 = vadd.f32 %v137, 0.0
    %v154 = vadd.f32 %v138, 0.0
    %v155 = vadd.f32 %v139, 0.0
    %v156 = vadd.f32 %v140, 0.0
    %v157 = vadd.f32 %v141, 0.0
    %v158 = vadd.f32 %v142, 0.0
    %v159 = vadd.f32 %v143, 0.0
    %v160 = vadd.f32 %v144, 0.0
    %v161 = vadd.f32 %v145, 0.0
    %v162 = vadd.f32 %v146, 0.0
    %v163 = vadd.f32 %v147, 0.0
    %v164 = vadd.f32 %v148, 0.0
    %vm165 = vcmp.ge.s32.totalorder %v33, 32
    %vm166 = vcmp.ge.s32.totalorder %v34, 32
    %vm167 = vcmp.ge.s32.totalorder %v35, 32
    %vm168 = vcmp.ge.s32.totalorder %v36, 32
    %vm169 = vcmp.ge.s32.totalorder %v37, 32
    %vm170 = vcmp.ge.s32.totalorder %v38, 32
    %vm171 = vcmp.ge.s32.totalorder %v39, 32
    %vm172 = vcmp.ge.s32.totalorder %v40, 32
    %vm173 = vcmp.ge.s32.totalorder %v41, 32
    %vm174 = vcmp.ge.s32.totalorder %v42, 32
    %vm175 = vcmp.ge.s32.totalorder %v43, 32
    %vm176 = vcmp.ge.s32.totalorder %v44, 32
    %vm177 = vcmp.ge.s32.totalorder %v45, 32
    %vm178 = vcmp.ge.s32.totalorder %v46, 32
    %vm179 = vcmp.ge.s32.totalorder %v47, 32
    %vm180 = vcmp.ge.s32.totalorder %v48, 32
    %vm181 = vcmp.lt.s32.totalorder %v33, 64
    %vm182 = vcmp.lt.s32.totalorder %v34, 64
    %vm183 = vcmp.lt.s32.totalorder %v35, 64
    %vm184 = vcmp.lt.s32.totalorder %v36, 64
    %vm185 = vcmp.lt.s32.totalorder %v37, 64
    %vm186 = vcmp.lt.s32.totalorder %v38, 64
    %vm187 = vcmp.lt.s32.totalorder %v39, 64
    %vm188 = vcmp.lt.s32.totalorder %v40, 64
    %vm189 = vcmp.lt.s32.totalorder %v41, 64
    %vm190 = vcmp.lt.s32.totalorder %v42, 64
    %vm191 = vcmp.lt.s32.totalorder %v43, 64
    %vm192 = vcmp.lt.s32.totalorder %v44, 64
    %vm193 = vcmp.lt.s32.totalorder %v45, 64
    %vm194 = vcmp.lt.s32.totalorder %v46, 64
    %vm195 = vcmp.lt.s32.totalorder %v47, 64
    %vm196 = vcmp.lt.s32.totalorder %v48, 64
    %vm197 = vmand %vm165, %vm181
    %vm198 = vmand %vm166, %vm182
    %vm199 = vmand %vm167, %vm183
    %vm200 = vmand %vm168, %vm184
    %vm201 = vmand %vm169, %vm185
    %vm202 = vmand %vm170, %vm186
    %vm203 = vmand %vm171, %vm187
    %vm204 = vmand %vm172, %vm188
    %vm205 = vmand %vm173, %vm189
    %vm206 = vmand %vm174, %vm190
    %vm207 = vmand %vm175, %vm191
    %vm208 = vmand %vm176, %vm192
    %vm209 = vmand %vm177, %vm193
    %vm210 = vmand %vm178, %vm194
    %vm211 = vmand %vm179, %vm195
    %vm212 = vmand %vm180, %vm196
    %vm213 = vcmp.ge.s32.totalorder %v50, 32
    %vm214 = vmand %vm197, %vm213
    %vm215 = vmand %vm198, %vm213
    %vm216 = vmand %vm199, %vm213
    %vm217 = vmand %vm200, %vm213
    %vm218 = vmand %vm201, %vm213
    %vm219 = vmand %vm202, %vm213
    %vm220 = vmand %vm203, %vm213
    %vm221 = vmand %vm204, %vm213
    %vm222 = vmand %vm205, %vm213
    %vm223 = vmand %vm206, %vm213
    %vm224 = vmand %vm207, %vm213
    %vm225 = vmand %vm208, %vm213
    %vm226 = vmand %vm209, %vm213
    %vm227 = vmand %vm210, %vm213
    %vm228 = vmand %vm211, %vm213
    %vm229 = vmand %vm212, %vm213
    %vm230 = vcmp.lt.s32.totalorder %v50, 64
    %vm231 = vmand %vm214, %vm230
    %vm232 = vmand %vm215, %vm230
    %vm233 = vmand %vm216, %vm230
    %vm234 = vmand %vm217, %vm230
    %vm235 = vmand %vm218, %vm230
    %vm236 = vmand %vm219, %vm230
    %vm237 = vmand %vm220, %vm230
    %vm238 = vmand %vm221, %vm230
    %vm239 = vmand %vm222, %vm230
    %vm240 = vmand %vm223, %vm230
    %vm241 = vmand %vm224, %vm230
    %vm242 = vmand %vm225, %vm230
    %vm243 = vmand %vm226, %vm230
    %vm244 = vmand %vm227, %vm230
    %vm245 = vmand %vm228, %vm230
    %vm246 = vmand %vm229, %vm230
    %v247 = vsel %vm231, 0.03125, 0.0
    %v248 = vsel %vm232, 0.03125, 0.0
    %v249 = vsel %vm233, 0.03125, 0.0
    %v250 = vsel %vm234, 0.03125, 0.0
    %v251 = vsel %vm235, 0.03125, 0.0
    %v252 = vsel %vm236, 0.03125, 0.0
    %v253 = vsel %vm237, 0.03125, 0.0
    %v254 = vsel %vm238, 0.03125, 0.0
    %v255 = vsel %vm239, 0.03125, 0.0
    %v256 = vsel %vm240, 0.03125, 0.0
    %v257 = vsel %vm241, 0.03125, 0.0
    %v258 = vsel %vm242, 0.03125, 0.0
    %v259 = vsel %vm243, 0.03125, 0.0
    %v260 = vsel %vm244, 0.03125, 0.0
    %v261 = vsel %vm245, 0.03125, 0.0
    %v262 = vsel %vm246, 0.03125, 0.0
    %v263 = vadd.f32 %v149, %v247
    %v264 = vadd.f32 %v150, %v248
    %v265 = vadd.f32 %v151, %v249
    %v266 = vadd.f32 %v152, %v250
    %v267 = vadd.f32 %v153, %v251
    %v268 = vadd.f32 %v154, %v252
    %v269 = vadd.f32 %v155, %v253
    %v270 = vadd.f32 %v156, %v254
    %v271 = vadd.f32 %v157, %v255
    %v272 = vadd.f32 %v158, %v256
    %v273 = vadd.f32 %v159, %v257
    %v274 = vadd.f32 %v160, %v258
    %v275 = vadd.f32 %v161, %v259
    %v276 = vadd.f32 %v162, %v260
    %v277 = vadd.f32 %v163, %v261
    %v278 = vadd.f32 %v164, %v262
    %vm279 = vcmp.ge.s32.totalorder %v33, 64
    %vm280 = vcmp.ge.s32.totalorder %v34, 64
    %vm281 = vcmp.ge.s32.totalorder %v35, 64
    %vm282 = vcmp.ge.s32.totalorder %v36, 64
    %vm283 = vcmp.ge.s32.totalorder %v37, 64
    %vm284 = vcmp.ge.s32.totalorder %v38, 64
    %vm285 = vcmp.ge.s32.totalorder %v39, 64
    %vm286 = vcmp.ge.s32.totalorder %v40, 64
    %vm287 = vcmp.ge.s32.totalorder %v41, 64
    %vm288 = vcmp.ge.s32.totalorder %v42, 64
    %vm289 = vcmp.ge.s32.totalorder %v43, 64
    %vm290 = vcmp.ge.s32.totalorder %v44, 64
    %vm291 = vcmp.ge.s32.totalorder %v45, 64
    %vm292 = vcmp.ge.s32.totalorder %v46, 64
    %vm293 = vcmp.ge.s32.totalorder %v47, 64
    %vm294 = vcmp.ge.s32.totalorder %v48, 64
    %vm295 = vcmp.lt.s32.totalorder %v33, 96
    %vm296 = vcmp.lt.s32.totalorder %v34, 96
    %vm297 = vcmp.lt.s32.totalorder %v35, 96
    %vm298 = vcmp.lt.s32.totalorder %v36, 96
    %vm299 = vcmp.lt.s32.totalorder %v37, 96
    %vm300 = vcmp.lt.s32.totalorder %v38, 96
    %vm301 = vcmp.lt.s32.totalorder %v39, 96
    %vm302 = vcmp.lt.s32.totalorder %v40, 96
    %vm303 = vcmp.lt.s32.totalorder %v41, 96
    %vm304 = vcmp.lt.s32.totalorder %v42, 96
    %vm305 = vcmp.lt.s32.totalorder %v43, 96
    %vm306 = vcmp.lt.s32.totalorder %v44, 96
    %vm307 = vcmp.lt.s32.totalorder %v45, 96
    %vm308 = vcmp.lt.s32.totalorder %v46, 96
    %vm309 = vcmp.lt.s32.totalorder %v47, 96
    %vm310 = vcmp.lt.s32.totalorder %v48, 96
    %vm311 = vmand %vm279, %vm295
    %vm312 = vmand %vm280, %vm296
    %vm313 = vmand %vm281, %vm297
    %vm314 = vmand %vm282, %vm298
    %vm315 = vmand %vm283, %vm299
    %vm316 = vmand %vm284, %vm300
    %vm317 = vmand %vm285, %vm301
    %vm318 = vmand %vm286, %vm302
    %vm319 = vmand %vm287, %vm303
    %vm320 = vmand %vm288, %vm304
    %vm321 = vmand %vm289, %vm305
    %vm322 = vmand %vm290, %vm306
    %vm323 = vmand %vm291, %vm307
    %vm324 = vmand %vm292, %vm308
    %vm325 = vmand %vm293, %vm309
    %vm326 = vmand %vm294, %vm310
    %vm327 = vcmp.ge.s32.totalorder %v50, 64
    %vm328 = vmand %vm311, %vm327
    %vm329 = vmand %vm312, %vm327
    %vm330 = vmand %vm313, %vm327
    %vm331 = vmand %vm314, %vm327
    %vm332 = vmand %vm315, %vm327
    %vm333 = vmand %vm316, %vm327
    %vm334 = vmand %vm317, %vm327
    %vm335 = vmand %vm318, %vm327
    %vm336 = vmand %vm319, %vm327
    %vm337 = vmand %vm320, %vm327
    %vm338 = vmand %vm321, %vm327
    %vm339 = vmand %vm322, %vm327
    %vm340 = vmand %vm323, %vm327
    %vm341 = vmand %vm324, %vm327
    %vm342 = vmand %vm325, %vm327
    %vm343 = vmand %vm326, %vm327
    %vm344 = vcmp.lt.s32.totalorder %v50, 96
    %vm345 = vmand %vm328, %vm344
    %vm346 = vmand %vm329, %vm344
    %vm347 = vmand %vm330, %vm344
    %vm348 = vmand %vm331, %vm344
    %vm349 = vmand %vm332, %vm344
    %vm350 = vmand %vm333, %vm344
    %vm351 = vmand %vm334, %vm344
    %vm352 = vmand %vm335, %vm344
    %vm353 = vmand %vm336, %vm344
    %vm354 = vmand %vm337, %vm344
    %vm355 = vmand %vm338, %vm344
    %vm356 = vmand %vm339, %vm344
    %vm357 = vmand %vm340, %vm344
    %vm358 = vmand %vm341, %vm344
    %vm359 = vmand %vm342, %vm344
    %vm360 = vmand %vm343, %vm344
    %v361 = vsel %vm345, 0.03125, 0.0
    %v362 = vsel %vm346, 0.03125, 0.0
    %v363 = vsel %vm347, 0.03125, 0.0
    %v364 = vsel %vm348, 0.03125, 0.0
    %v365 = vsel %vm349, 0.03125, 0.0
    %v366 = vsel %vm350, 0.03125, 0.0
    %v367 = vsel %vm351, 0.03125, 0.0
    %v368 = vsel %vm352, 0.03125, 0.0
    %v369 = vsel %vm353, 0.03125, 0.0
    %v370 = vsel %vm354, 0.03125, 0.0
    %v371 = vsel %vm355, 0.03125, 0.0
    %v372 = vsel %vm356, 0.03125, 0.0
    %v373 = vsel %vm357, 0.03125, 0.0
    %v374 = vsel %vm358, 0.03125, 0.0
    %v375 = vsel %vm359, 0.03125, 0.0
    %v376 = vsel %vm360, 0.03125, 0.0
    %v377 = vadd.f32 %v263, %v361
    %v378 = vadd.f32 %v264, %v362
    %v379 = vadd.f32 %v265, %v363
    %v380 = vadd.f32 %v266, %v364
    %v381 = vadd.f32 %v267, %v365
    %v382 = vadd.f32 %v268, %v366
    %v383 = vadd.f32 %v269, %v367
    %v384 = vadd.f32 %v270, %v368
    %v385 = vadd.f32 %v271, %v369
    %v386 = vadd.f32 %v272, %v370
    %v387 = vadd.f32 %v273, %v371
    %v388 = vadd.f32 %v274, %v372
    %v389 = vadd.f32 %v275, %v373
    %v390 = vadd.f32 %v276, %v374
    %v391 = vadd.f32 %v277, %v375
    %v392 = vadd.f32 %v278, %v376
    %vm393 = vcmp.ge.s32.totalorder %v33, 96
    %vm394 = vcmp.ge.s32.totalorder %v34, 96
    %vm395 = vcmp.ge.s32.totalorder %v35, 96
    %vm396 = vcmp.ge.s32.totalorder %v36, 96
    %vm397 = vcmp.ge.s32.totalorder %v37, 96
    %vm398 = vcmp.ge.s32.totalorder %v38, 96
    %vm399 = vcmp.ge.s32.totalorder %v39, 96
    %vm400 = vcmp.ge.s32.totalorder %v40, 96
    %vm401 = vcmp.ge.s32.totalorder %v41, 96
    %vm402 = vcmp.ge.s32.totalorder %v42, 96
    %vm403 = vcmp.ge.s32.totalorder %v43, 96
    %vm404 = vcmp.ge.s32.totalorder %v44, 96
    %vm405 = vcmp.ge.s32.totalorder %v45, 96
    %vm406 = vcmp.ge.s32.totalorder %v46, 96
    %vm407 = vcmp.ge.s32.totalorder %v47, 96
    %vm408 = vcmp.ge.s32.totalorder %v48, 96
    %vm409 = vcmp.lt.s32.totalorder %v33, 128
    %vm410 = vcmp.lt.s32.totalorder %v34, 128
    %vm411 = vcmp.lt.s32.totalorder %v35, 128
    %vm412 = vcmp.lt.s32.totalorder %v36, 128
    %vm413 = vcmp.lt.s32.totalorder %v37, 128
    %vm414 = vcmp.lt.s32.totalorder %v38, 128
    %vm415 = vcmp.lt.s32.totalorder %v39, 128
    %vm416 = vcmp.lt.s32.totalorder %v40, 128
    %vm417 = vcmp.lt.s32.totalorder %v41, 128
    %vm418 = vcmp.lt.s32.totalorder %v42, 128
    %vm419 = vcmp.lt.s32.totalorder %v43, 128
    %vm420 = vcmp.lt.s32.totalorder %v44, 128
    %vm421 = vcmp.lt.s32.totalorder %v45, 128
    %vm422 = vcmp.lt.s32.totalorder %v46, 128
    %vm423 = vcmp.lt.s32.totalorder %v47, 128
    %vm424 = vcmp.lt.s32.totalorder %v48, 128
    %vm425 = vmand %vm393, %vm409
    %vm426 = vmand %vm394, %vm410
    %vm427 = vmand %vm395, %vm411
    %vm428 = vmand %vm396, %vm412
    %vm429 = vmand %vm397, %vm413
    %vm430 = vmand %vm398, %vm414
    %vm431 = vmand %vm399, %vm415
    %vm432 = vmand %vm400, %vm416
    %vm433 = vmand %vm401, %vm417
    %vm434 = vmand %vm402, %vm418
    %vm435 = vmand %vm403, %vm419
    %vm436 = vmand %vm404, %vm420
    %vm437 = vmand %vm405, %vm421
    %vm438 = vmand %vm406, %vm422
    %vm439 = vmand %vm407, %vm423
    %vm440 = vmand %vm408, %vm424
    %vm441 = vcmp.ge.s32.totalorder %v50, 96
    %vm442 = vmand %vm425, %vm441
    %vm443 = vmand %vm426, %vm441
    %vm444 = vmand %vm427, %vm441
    %vm445 = vmand %vm428, %vm441
    %vm446 = vmand %vm429, %vm441
    %vm447 = vmand %vm430, %vm441
    %vm448 = vmand %vm431, %vm441
    %vm449 = vmand %vm432, %vm441
    %vm450 = vmand %vm433, %vm441
    %vm451 = vmand %vm434, %vm441
    %vm452 = vmand %vm435, %vm441
    %vm453 = vmand %vm436, %vm441
    %vm454 = vmand %vm437, %vm441
    %vm455 = vmand %vm438, %vm441
    %vm456 = vmand %vm439, %vm441
    %vm457 = vmand %vm440, %vm441
    %vm458 = vcmp.lt.s32.totalorder %v50, 128
    %vm459 = vmand %vm442, %vm458
    %vm460 = vmand %vm443, %vm458
    %vm461 = vmand %vm444, %vm458
    %vm462 = vmand %vm445, %vm458
    %vm463 = vmand %vm446, %vm458
    %vm464 = vmand %vm447, %vm458
    %vm465 = vmand %vm448, %vm458
    %vm466 = vmand %vm449, %vm458
    %vm467 = vmand %vm450, %vm458
    %vm468 = vmand %vm451, %vm458
    %vm469 = vmand %vm452, %vm458
    %vm470 = vmand %vm453, %vm458
    %vm471 = vmand %vm454, %vm458
    %vm472 = vmand %vm455, %vm458
    %vm473 = vmand %vm456, %vm458
    %vm474 = vmand %vm457, %vm458
    %v475 = vsel %vm459, 0.03125, 0.0
    %v476 = vsel %vm460, 0.03125, 0.0
    %v477 = vsel %vm461, 0.03125, 0.0
    %v478 = vsel %vm462, 0.03125, 0.0
    %v479 = vsel %vm463, 0.03125, 0.0
    %v480 = vsel %vm464, 0.03125, 0.0
    %v481 = vsel %vm465, 0.03125, 0.0
    %v482 = vsel %vm466, 0.03125, 0.0
    %v483 = vsel %vm467, 0.03125, 0.0
    %v484 = vsel %vm468, 0.03125, 0.0
    %v485 = vsel %vm469, 0.03125, 0.0
    %v486 = vsel %vm470, 0.03125, 0.0
    %v487 = vsel %vm471, 0.03125, 0.0
    %v488 = vsel %vm472, 0.03125, 0.0
    %v489 = vsel %vm473, 0.03125, 0.0
    %v490 = vsel %vm474, 0.03125, 0.0
    %v491 = vadd.f32 %v377, %v475
    %v492 = vadd.f32 %v378, %v476
    %v493 = vadd.f32 %v379, %v477
    %v494 = vadd.f32 %v380, %v478
    %v495 = vadd.f32 %v381, %v479
    %v496 = vadd.f32 %v382, %v480
    %v497 = vadd.f32 %v383, %v481
    %v498 = vadd.f32 %v384, %v482
    %v499 = vadd.f32 %v385, %v483
    %v500 = vadd.f32 %v386, %v484
    %v501 = vadd.f32 %v387, %v485
    %v502 = vadd.f32 %v388, %v486
    %v503 = vadd.f32 %v389, %v487
    %v504 = vadd.f32 %v390, %v488
    %v505 = vadd.f32 %v391, %v489
    %v506 = vadd.f32 %v392, %v490
    %v507 = vld [vmem:[%s3] sm:$0x1]
    %v508 = vld [vmem:[%s3 + $0x1] sm:$0x1]
    %v509 = vld [vmem:[%s3 + $0x2] sm:$0x1]
    %v510 = vld [vmem:[%s3 + $0x3] sm:$0x1]
    %v511 = vld [vmem:[%s3 + $0x4] sm:$0x1]
    %v512 = vld [vmem:[%s3 + $0x5] sm:$0x1]
    %v513 = vld [vmem:[%s3 + $0x6] sm:$0x1]
    %v514 = vld [vmem:[%s1] sm:$0xf]
    %v515 = vld [vmem:[#allocation2] sm:$0xff]
    %v516 = vld [vmem:[#allocation2 + $0x10] sm:$0xff]
    %v517 = vld [vmem:[#allocation2 + $0x20] sm:$0xff]
    %v518 = vld [vmem:[#allocation2 + $0x30] sm:$0xff]
    %v519 = vld [vmem:[#allocation2 + $0x8] sm:$0xff]
    %v520 = vld [vmem:[#allocation2 + $0x18] sm:$0xff]
    %v521 = vld [vmem:[#allocation2 + $0x28] sm:$0xff]
    %v522 = vld [vmem:[#allocation2 + $0x38] sm:$0xff]
    %v523 = vld [vmem:[%s0] sm:$0x3]
    %v524 = vlaneseq
    %v525 = vshrl.u32 %v524, 7
    %v526 = vsub.s32 0, %v525
    %v527 = vrot.slane %v507, %v526
    %vm528 = vcmask 31744
    %v530 = vsel %vm528, %v523, 0
    %vm532 = vcmask 1043456
    %v534 = vsel %vm532, %v514, 0
    %536 = vmatprep.subr.mxu0 0.0
    %537 = vmatpush1.msra.mxu0 %v534
    %538 = vmatprep.subr.mxu0 0.0
    %539 = vmatpush1.msra.mxu0 0.0
    %540 = vmatprep.subr.mxu0 0.0
    %541 = vmatpush1.msra.mxu0 0.0
    %542 = vmatprep.subr.mxu0 0.0
    %543 = vmatpush1.msra.mxu0 0.0
    %544 = vmatprep.subr.mxu0 0.0
    %545 = vmatpush1.msra.mxu0 0.0
    %546 = vmatprep.subr.mxu0 0.0
    %547 = vmatpush1.msra.mxu0 0.0
    %548 = vmatprep.subr.mxu0 0.0
    %549 = vmatpush1.msra.mxu0 0.0
    %550 = vmatprep.subr.mxu0 0.0
    %551 = vmatpush1.msra.mxu0 0.0
    %552 = vmatprep.subr.mxu0 0.0
    %553 = vmatpush1.msra.mxu0 0.0
    %554 = vmatprep.subr.mxu0 0.0
    %555 = vmatpush1.msra.mxu0 0.0
    %556 = vmatprep.subr.mxu0 0.0
    %557 = vmatpush1.msra.mxu0 0.0
    %558 = vmatprep.subr.mxu0 0.0
    %559 = vmatpush1.msra.mxu0 0.0
    %560 = vmatprep.subr.mxu0 0.0
    %561 = vmatpush1.msra.mxu0 0.0
    %562 = vmatprep.subr.mxu0 0.0
    %563 = vmatpush1.msra.mxu0 0.0
    %564 = vmatprep.subr.mxu0 0.0
    %565 = vmatpush1.msra.mxu0 0.0
    %566 = vmatprep.subr.mxu0 0.0
    %567 = vmatpush1.msra.mxu0 0.0
    %568 = vmatprep.subr.mxu0 0.0
    %569 = vmatpush1.msra.mxu0 0.0
    %570 = vmatprep.subr.mxu0 0.0
    %571 = vmatpush1.msra.mxu0 0.0
    %572 = vmatprep.subr.mxu0 0.0
    %573 = vmatpush1.msra.mxu0 0.0
    %574 = vmatprep.subr.mxu0 0.0
    %575 = vmatpush1.msra.mxu0 0.0
    %576 = vmatprep.subr.mxu0 0.0
    %577 = vmatpush1.msra.mxu0 0.0
    %578 = vmatprep.subr.mxu0 0.0
    %579 = vmatpush1.msra.mxu0 0.0
    %580 = vmatprep.subr.mxu0 0.0
    %581 = vmatpush1.msra.mxu0 0.0
    %582 = vmatprep.subr.mxu0 0.0
    %583 = vmatpush1.msra.mxu0 0.0
    %584 = vmatprep.subr.mxu0 0.0
    %585 = vmatpush1.msra.mxu0 0.0
    %586 = vmatprep.subr.mxu0 0.0
    %587 = vmatpush1.msra.mxu0 0.0
    %588 = vmatprep.subr.mxu0 0.0
    %589 = vmatpush1.msra.mxu0 0.0
    %590 = vmatprep.subr.mxu0 0.0
    %591 = vmatpush1.msra.mxu0 0.0
    %592 = vmatprep.subr.mxu0 0.0
    %593 = vmatpush1.msra.mxu0 0.0
    %594 = vmatprep.subr.mxu0 0.0
    %595 = vmatpush1.msra.mxu0 0.0
    %596 = vmatprep.subr.mxu0 0.0
    %597 = vmatpush1.msra.mxu0 0.0
    %598 = vmatprep.subr.mxu0 0.0
    %599 = vmatpush1.msra.mxu0 0.0
    %600 = vmatprep.mubr.f32.mxu0 0.0
    %601 = vmatmul.mubr.f32.gmra.mrb[0].mxu0 %v530
    %v602 = vpop.f32.mrb[0].mxu0
    %v603 = vadd.f32 %v527, %v602
    %v604 = vpop.f32.mrb[0].mxu0
    %605 = vdwg.mxu0
    %606 = vmatprep.subr.mxu0 0.0
    %607 = vmatpush1.msra.mxu0 %v491
    %608 = vmatprep.subr.mxu0 0.0
    %609 = vmatpush1.msra.mxu0 %v492
    %610 = vmatprep.subr.mxu0 0.0
    %611 = vmatpush1.msra.mxu0 %v493
    %612 = vmatprep.subr.mxu0 0.0
    %613 = vmatpush1.msra.mxu0 %v494
    %614 = vmatprep.subr.mxu0 0.0
    %615 = vmatpush1.msra.mxu0 %v495
    %616 = vmatprep.subr.mxu0 0.0
    %617 = vmatpush1.msra.mxu0 %v496
    %618 = vmatprep.subr.mxu0 0.0
    %619 = vmatpush1.msra.mxu0 %v497
    %620 = vmatprep.subr.mxu0 0.0
    %621 = vmatpush1.msra.mxu0 %v498
    %622 = vmatprep.subr.mxu0 0.0
    %623 = vmatpush1.msra.mxu0 %v499
    %624 = vmatprep.subr.mxu0 0.0
    %625 = vmatpush1.msra.mxu0 %v500
    %626 = vmatprep.subr.mxu0 0.0
    %627 = vmatpush1.msra.mxu0 %v501
    %628 = vmatprep.subr.mxu0 0.0
    %629 = vmatpush1.msra.mxu0 %v502
    %630 = vmatprep.subr.mxu0 0.0
    %631 = vmatpush1.msra.mxu0 %v503
    %632 = vmatprep.subr.mxu0 0.0
    %633 = vmatpush1.msra.mxu0 %v504
    %634 = vmatprep.subr.mxu0 0.0
    %635 = vmatpush1.msra.mxu0 %v505
    %636 = vmatprep.subr.mxu0 0.0
    %637 = vmatpush1.msra.mxu0 %v506
    %638 = vmatprep.subr.mxu0 0.0
    %639 = vmatpush1.msra.mxu0 0.0
    %640 = vmatprep.subr.mxu0 0.0
    %641 = vmatpush1.msra.mxu0 0.0
    %642 = vmatprep.subr.mxu0 0.0
    %643 = vmatpush1.msra.mxu0 0.0
    %644 = vmatprep.subr.mxu0 0.0
    %645 = vmatpush1.msra.mxu0 0.0
    %646 = vmatprep.subr.mxu0 0.0
    %647 = vmatpush1.msra.mxu0 0.0
    %648 = vmatprep.subr.mxu0 0.0
    %649 = vmatpush1.msra.mxu0 0.0
    %650 = vmatprep.subr.mxu0 0.0
    %651 = vmatpush1.msra.mxu0 0.0
    %652 = vmatprep.subr.mxu0 0.0
    %653 = vmatpush1.msra.mxu0 0.0
    %654 = vmatprep.subr.mxu0 0.0
    %655 = vmatpush1.msra.mxu0 0.0
    %656 = vmatprep.subr.mxu0 0.0
    %657 = vmatpush1.msra.mxu0 0.0
    %658 = vmatprep.subr.mxu0 0.0
    %659 = vmatpush1.msra.mxu0 0.0
    %660 = vmatprep.subr.mxu0 0.0
    %661 = vmatpush1.msra.mxu0 0.0
    %662 = vmatprep.subr.mxu0 0.0
    %663 = vmatpush1.msra.mxu0 0.0
    %664 = vmatprep.subr.mxu0 0.0
    %665 = vmatpush1.msra.mxu0 0.0
    %666 = vmatprep.subr.mxu0 0.0
    %667 = vmatpush1.msra.mxu0 0.0
    %668 = vmatprep.subr.mxu0 0.0
    %669 = vmatpush1.msra.mxu0 0.0
    %670 = vmatprep.mubr.f32.mxu0 0.0
    %671 = vmatmul.mubr.f32.gmra.mrb[0].mxu0 %v603
    %v672 = vpop.f32.mrb[0].mxu0
    %v673 = vadd.f32 0.0, %v672
    %v674 = vpop.f32.mrb[0].mxu0
    %675 = vdwg.mxu0
    %v676 = vsub.f32 %v603, %v673
    %v677 = vmul.f32 %v676, %v676
    %678 = vmatprep.subr.mxu0 0.0
    %679 = vmatpush1.msra.mxu0 %v491
    %680 = vmatprep.subr.mxu0 0.0
    %681 = vmatpush1.msra.mxu0 %v492
    %682 = vmatprep.subr.mxu0 0.0
    %683 = vmatpush1.msra.mxu0 %v493
    %684 = vmatprep.subr.mxu0 0.0
    %685 = vmatpush1.msra.mxu0 %v494
    %686 = vmatprep.subr.mxu0 0.0
    %687 = vmatpush1.msra.mxu0 %v495
    %688 = vmatprep.subr.mxu0 0.0
    %689 = vmatpush1.msra.mxu0 %v496
    %690 = vmatprep.subr.mxu0 0.0
    %691 = vmatpush1.msra.mxu0 %v497
    %692 = vmatprep.subr.mxu0 0.0
    %693 = vmatpush1.msra.mxu0 %v498
    %694 = vmatprep.subr.mxu0 0.0
    %695 = vmatpush1.msra.mxu0 %v499
    %696 = vmatprep.subr.mxu0 0.0
    %697 = vmatpush1.msra.mxu0 %v500
    %698 = vmatprep.subr.mxu0 0.0
    %699 = vmatpush1.msra.mxu0 %v501
    %700 = vmatprep.subr.mxu0 0.0
    %701 = vmatpush1.msra.mxu0 %v502
    %702 = vmatprep.subr.mxu0 0.0
    %703 = vmatpush1.msra.mxu0 %v503
    %704 = vmatprep.subr.mxu0 0.0
    %705 = vmatpush1.msra.mxu0 %v504
    %706 = vmatprep.subr.mxu0 0.0
    %707 = vmatpush1.msra.mxu0 %v505
    %708 = vmatprep.subr.mxu0 0.0
    %709 = vmatpush1.msra.mxu0 %v506
    %710 = vmatprep.subr.mxu0 0.0
    %711 = vmatpush1.msra.mxu0 0.0
    %712 = vmatprep.subr.mxu0 0.0
    %713 = vmatpush1.msra.mxu0 0.0
    %714 = vmatprep.subr.mxu0 0.0
    %715 = vmatpush1.msra.mxu0 0.0
    %716 = vmatprep.subr.mxu0 0.0
    %717 = vmatpush1.msra.mxu0 0.0
    %718 = vmatprep.subr.mxu0 0.0
    %719 = vmatpush1.msra.mxu0 0.0
    %720 = vmatprep.subr.mxu0 0.0
    %721 = vmatpush1.msra.mxu0 0.0
    %722 = vmatprep.subr.mxu0 0.0
    %723 = vmatpush1.msra.mxu0 0.0
    %724 = vmatprep.subr.mxu0 0.0
    %725 = vmatpush1.msra.mxu0 0.0
    %726 = vmatprep.subr.mxu0 0.0
    %727 = vmatpush1.msra.mxu0 0.0
    %728 = vmatprep.subr.mxu0 0.0
    %729 = vmatpush1.msra.mxu0 0.0
    %730 = vmatprep.subr.mxu0 0.0
    %731 = vmatpush1.msra.mxu0 0.0
    %732 = vmatprep.subr.mxu0 0.0
    %733 = vmatpush1.msra.mxu0 0.0
    %734 = vmatprep.subr.mxu0 0.0
    %735 = vmatpush1.msra.mxu0 0.0
    %736 = vmatprep.subr.mxu0 0.0
    %737 = vmatpush1.msra.mxu0 0.0
    %738 = vmatprep.subr.mxu0 0.0
    %739 = vmatpush1.msra.mxu0 0.0
    %740 = vmatprep.subr.mxu0 0.0
    %741 = vmatpush1.msra.mxu0 0.0
    %742 = vmatprep.mubr.f32.mxu0 0.0
    %743 = vmatmul.mubr.f32.gmra.mrb[0].mxu0 %v677
    %v744 = vpop.f32.mrb[0].mxu0
    %v745 = vadd.f32 1e-05, %v744
    %v746 = vpop.f32.mrb[0].mxu0
    %747 = vdwg.mxu0
    %v748 = vrsqrt.pop %v745
    %v749 = vmul.f32 %v676, %v748
    %v750 = vlaneseq
    %v751 = vshrl.u32 %v750, 7
    %v752 = vsub.s32 0, %v751
    %v753 = vrot.slane %v508, %v752
    %v754 = vmul.f32 %v749, %v753
    %v755 = vlaneseq
    %v756 = vshrl.u32 %v755, 7
    %v757 = vsub.s32 0, %v756
    %v758 = vrot.slane %v509, %v757
    %v759 = vadd.f32 %v754, %v758
    %s760 = scalar_lea.vmem %s0, 2
    %v761 = vld [vmem:[%s760] sm:$0x3]
    %v763 = vsel %vm528, %v761, 0
    %765 = vmatprep.subr.mxu0 0.0
    %766 = vmatpush1.msra.mxu0 %v534
    %767 = vmatprep.subr.mxu0 0.0
    %768 = vmatpush1.msra.mxu0 0.0
    %769 = vmatprep.subr.mxu0 0.0
    %770 = vmatpush1.msra.mxu0 0.0
    %771 = vmatprep.subr.mxu0 0.0
    %772 = vmatpush1.msra.mxu0 0.0
    %773 = vmatprep.subr.mxu0 0.0
    %774 = vmatpush1.msra.mxu0 0.0
    %775 = vmatprep.subr.mxu0 0.0
    %776 = vmatpush1.msra.mxu0 0.0
    %777 = vmatprep.subr.mxu0 0.0
    %778 = vmatpush1.msra.mxu0 0.0
    %779 = vmatprep.subr.mxu0 0.0
    %780 = vmatpush1.msra.mxu0 0.0
    %781 = vmatprep.subr.mxu0 0.0
    %782 = vmatpush1.msra.mxu0 0.0
    %783 = vmatprep.subr.mxu0 0.0
    %784 = vmatpush1.msra.mxu0 0.0
    %785 = vmatprep.subr.mxu0 0.0
    %786 = vmatpush1.msra.mxu0 0.0
    %787 = vmatprep.subr.mxu0 0.0
    %788 = vmatpush1.msra.mxu0 0.0
    %789 = vmatprep.subr.mxu0 0.0
    %790 = vmatpush1.msra.mxu0 0.0
    %791 = vmatprep.subr.mxu0 0.0
    %792 = vmatpush1.msra.mxu0 0.0
    %793 = vmatprep.subr.mxu0 0.0
    %794 = vmatpush1.msra.mxu0 0.0
    %795 = vmatprep.subr.mxu0 0.0
    %796 = vmatpush1.msra.mxu0 0.0
    %797 = vmatprep.subr.mxu0 0.0
    %798 = vmatpush1.msra.mxu0 0.0
    %799 = vmatprep.subr.mxu0 0.0
    %800 = vmatpush1.msra.mxu0 0.0
    %801 = vmatprep.subr.mxu0 0.0
    %802 = vmatpush1.msra.mxu0 0.0
    %803 = vmatprep.subr.mxu0 0.0
    %804 = vmatpush1.msra.mxu0 0.0
    %805 = vmatprep.subr.mxu0 0.0
    %806 = vmatpush1.msra.mxu0 0.0
    %807 = vmatprep.subr.mxu0 0.0
    %808 = vmatpush1.msra.mxu0 0.0
    %809 = vmatprep.subr.mxu0 0.0
    %810 = vmatpush1.msra.mxu0 0.0
    %811 = vmatprep.subr.mxu0 0.0
    %812 = vmatpush1.msra.mxu0 0.0
    %813 = vmatprep.subr.mxu0 0.0
    %814 = vmatpush1.msra.mxu0 0.0
    %815 = vmatprep.subr.mxu0 0.0
    %816 = vmatpush1.msra.mxu0 0.0
    %817 = vmatprep.subr.mxu0 0.0
    %818 = vmatpush1.msra.mxu0 0.0
    %819 = vmatprep.subr.mxu0 0.0
    %820 = vmatpush1.msra.mxu0 0.0
    %821 = vmatprep.subr.mxu0 0.0
    %822 = vmatpush1.msra.mxu0 0.0
    %823 = vmatprep.subr.mxu0 0.0
    %824 = vmatpush1.msra.mxu0 0.0
    %825 = vmatprep.subr.mxu0 0.0
    %826 = vmatpush1.msra.mxu0 0.0
    %827 = vmatprep.subr.mxu0 0.0
    %828 = vmatpush1.msra.mxu0 0.0
    %829 = vmatprep.mubr.f32.mxu0 0.0
    %830 = vmatmul.mubr.f32.gmra.mrb[0].mxu0 %v763
    %v831 = vpop.f32.mrb[0].mxu0
    %v832 = vadd.f32 %v527, %v831
    %v833 = vpop.f32.mrb[0].mxu0
    %834 = vdwg.mxu0
    %835 = vmatprep.subr.mxu0 0.0
    %836 = vmatpush1.msra.mxu0 %v491
    %837 = vmatprep.subr.mxu0 0.0
    %838 = vmatpush1.msra.mxu0 %v492
    %839 = vmatprep.subr.mxu0 0.0
    %840 = vmatpush1.msra.mxu0 %v493
    %841 = vmatprep.subr.mxu0 0.0
    %842 = vmatpush1.msra.mxu0 %v494
    %843 = vmatprep.subr.mxu0 0.0
    %844 = vmatpush1.msra.mxu0 %v495
    %845 = vmatprep.subr.mxu0 0.0
    %846 = vmatpush1.msra.mxu0 %v496
    %847 = vmatprep.subr.mxu0 0.0
    %848 = vmatpush1.msra.mxu0 %v497
    %849 = vmatprep.subr.mxu0 0.0
    %850 = vmatpush1.msra.mxu0 %v498
    %851 = vmatprep.subr.mxu0 0.0
    %852 = vmatpush1.msra.mxu0 %v499
    %853 = vmatprep.subr.mxu0 0.0
    %854 = vmatpush1.msra.mxu0 %v500
    %855 = vmatprep.subr.mxu0 0.0
    %856 = vmatpush1.msra.mxu0 %v501
    %857 = vmatprep.subr.mxu0 0.0
    %858 = vmatpush1.msra.mxu0 %v502
    %859 = vmatprep.subr.mxu0 0.0
    %860 = vmatpush1.msra.mxu0 %v503
    %861 = vmatprep.subr.mxu0 0.0
    %862 = vmatpush1.msra.mxu0 %v504
    %863 = vmatprep.subr.mxu0 0.0
    %864 = vmatpush1.msra.mxu0 %v505
    %865 = vmatprep.subr.mxu0 0.0
    %866 = vmatpush1.msra.mxu0 %v506
    %867 = vmatprep.subr.mxu0 0.0
    %868 = vmatpush1.msra.mxu0 0.0
    %869 = vmatprep.subr.mxu0 0.0
    %870 = vmatpush1.msra.mxu0 0.0
    %871 = vmatprep.subr.mxu0 0.0
    %872 = vmatpush1.msra.mxu0 0.0
    %873 = vmatprep.subr.mxu0 0.0
    %874 = vmatpush1.msra.mxu0 0.0
    %875 = vmatprep.subr.mxu0 0.0
    %876 = vmatpush1.msra.mxu0 0.0
    %877 = vmatprep.subr.mxu0 0.0
    %878 = vmatpush1.msra.mxu0 0.0
    %879 = vmatprep.subr.mxu0 0.0
    %880 = vmatpush1.msra.mxu0 0.0
    %881 = vmatprep.subr.mxu0 0.0
    %882 = vmatpush1.msra.mxu0 0.0
    %883 = vmatprep.subr.mxu0 0.0
    %884 = vmatpush1.msra.mxu0 0.0
    %885 = vmatprep.subr.mxu0 0.0
    %886 = vmatpush1.msra.mxu0 0.0
    %887 = vmatprep.subr.mxu0 0.0
    %888 = vmatpush1.msra.mxu0 0.0
    %889 = vmatprep.subr.mxu0 0.0
    %890 = vmatpush1.msra.mxu0 0.0
    %891 = vmatprep.subr.mxu0 0.0
    %892 = vmatpush1.msra.mxu0 0.0
    %893 = vmatprep.subr.mxu0 0.0
    %894 = vmatpush1.msra.mxu0 0.0
    %895 = vmatprep.subr.mxu0 0.0
    %896 = vmatpush1.msra.mxu0 0.0
    %897 = vmatprep.subr.mxu0 0.0
    %898 = vmatpush1.msra.mxu0 0.0
    %899 = vmatprep.mubr.f32.mxu0 0.0
    %900 = vmatmul.mubr.f32.gmra.mrb[0].mxu0 %v832
    %v901 = vpop.f32.mrb[0].mxu0
    %v902 = vadd.f32 0.0, %v901
    %v903 = vpop.f32.mrb[0].mxu0
    %904 = vdwg.mxu0
    %v905 = vsub.f32 %v832, %v902
    %v906 = vmul.f32 %v905, %v905
    %907 = vmatprep.subr.mxu0 0.0
    %908 = vmatpush1.msra.mxu0 %v491
    %909 = vmatprep.subr.mxu0 0.0
    %910 = vmatpush1.msra.mxu0 %v492
    %911 = vmatprep.subr.mxu0 0.0
    %912 = vmatpush1.msra.mxu0 %v493
    %913 = vmatprep.subr.mxu0 0.0
    %914 = vmatpush1.msra.mxu0 %v494
    %915 = vmatprep.subr.mxu0 0.0
    %916 = vmatpush1.msra.mxu0 %v495
    %917 = vmatprep.subr.mxu0 0.0
    %918 = vmatpush1.msra.mxu0 %v496
    %919 = vmatprep.subr.mxu0 0.0
    %920 = vmatpush1.msra.mxu0 %v497
    %921 = vmatprep.subr.mxu0 0.0
    %922 = vmatpush1.msra.mxu0 %v498
    %923 = vmatprep.subr.mxu0 0.0
    %924 = vmatpush1.msra.mxu0 %v499
    %925 = vmatprep.subr.mxu0 0.0
    %926 = vmatpush1.msra.mxu0 %v500
    %927 = vmatprep.subr.mxu0 0.0
    %928 = vmatpush1.msra.mxu0 %v501
    %929 = vmatprep.subr.mxu0 0.0
    %930 = vmatpush1.msra.mxu0 %v502
    %931 = vmatprep.subr.mxu0 0.0
    %932 = vmatpush1.msra.mxu0 %v503
    %933 = vmatprep.subr.mxu0 0.0
    %934 = vmatpush1.msra.mxu0 %v504
    %935 = vmatprep.subr.mxu0 0.0
    %936 = vmatpush1.msra.mxu0 %v505
    %937 = vmatprep.subr.mxu0 0.0
    %938 = vmatpush1.msra.mxu0 %v506
    %939 = vmatprep.subr.mxu0 0.0
    %940 = vmatpush1.msra.mxu0 0.0
    %941 = vmatprep.subr.mxu0 0.0
    %942 = vmatpush1.msra.mxu0 0.0
    %943 = vmatprep.subr.mxu0 0.0
    %944 = vmatpush1.msra.mxu0 0.0
    %945 = vmatprep.subr.mxu0 0.0
    %946 = vmatpush1.msra.mxu0 0.0
    %947 = vmatprep.subr.mxu0 0.0
    %948 = vmatpush1.msra.mxu0 0.0
    %949 = vmatprep.subr.mxu0 0.0
    %950 = vmatpush1.msra.mxu0 0.0
    %951 = vmatprep.subr.mxu0 0.0
    %952 = vmatpush1.msra.mxu0 0.0
    %953 = vmatprep.subr.mxu0 0.0
    %954 = vmatpush1.msra.mxu0 0.0
    %955 = vmatprep.subr.mxu0 0.0
    %956 = vmatpush1.msra.mxu0 0.0
    %957 = vmatprep.subr.mxu0 0.0
    %958 = vmatpush1.msra.mxu0 0.0
    %959 = vmatprep.subr.mxu0 0.0
    %960 = vmatpush1.msra.mxu0 0.0
    %961 = vmatprep.subr.mxu0 0.0
    %962 = vmatpush1.msra.mxu0 0.0
    %963 = vmatprep.subr.mxu0 0.0
    %964 = vmatpush1.msra.mxu0 0.0
    %965 = vmatprep.subr.mxu0 0.0
    %966 = vmatpush1.msra.mxu0 0.0
    %967 = vmatprep.subr.mxu0 0.0
    %968 = vmatpush1.msra.mxu0 0.0
    %969 = vmatprep.subr.mxu0 0.0
    %970 = vmatpush1.msra.mxu0 0.0
    %971 = vmatprep.mubr.f32.mxu0 0.0
    %972 = vmatmul.mubr.f32.gmra.mrb[0].mxu0 %v906
    %v973 = vpop.f32.mrb[0].mxu0
    %v974 = vadd.f32 1e-05, %v973
    %v975 = vpop.f32.mrb[0].mxu0
    %976 = vdwg.mxu0
    %v977 = vrsqrt.pop %v974
    %v978 = vmul.f32 %v905, %v977
    %v979 = vmul.f32 %v978, %v753
    %v980 = vadd.f32 %v979, %v758
    %s981 = scalar_lea.vmem %s0, 4
    %v982 = vld [vmem:[%s981] sm:$0x3]
    %v984 = vsel %vm528, %v982, 0
    %986 = vmatprep.subr.mxu0 0.0
    %987 = vmatpush1.msra.mxu0 %v534
    %988 = vmatprep.subr.mxu0 0.0
    %989 = vmatpush1.msra.mxu0 0.0
    %990 = vmatprep.subr.mxu0 0.0
    %991 = vmatpush1.msra.mxu0 0.0
    %992 = vmatprep.subr.mxu0 0.0
    %993 = vmatpush1.msra.mxu0 0.0
    %994 = vmatprep.subr.mxu0 0.0
    %995 = vmatpush1.msra.mxu0 0.0
    %996 = vmatprep.subr.mxu0 0.0
    %997 = vmatpush1.msra.mxu0 0.0
    %998 = vmatprep.subr.mxu0 0.0
    %999 = vmatpush1.msra.mxu0 0.0
    %1000 = vmatprep.subr.mxu0 0.0
    %1001 = vmatpush1.msra.mxu0 0.0
    %1002 = vmatprep.subr.mxu0 0.0
    %1003 = vmatpush1.msra.mxu0 0.0
    %1004 = vmatprep.subr.mxu0 0.0
    %1005 = vmatpush1.msra.mxu0 0.0
    %1006 = vmatprep.subr.mxu0 0.0
    %1007 = vmatpush1.msra.mxu0 0.0
    %1008 = vmatprep.subr.mxu0 0.0
    %1009 = vmatpush1.msra.mxu0 0.0
    %1010 = vmatprep.subr.mxu0 0.0
    %1011 = vmatpush1.msra.mxu0 0.0
    %1012 = vmatprep.subr.mxu0 0.0
    %1013 = vmatpush1.msra.mxu0 0.0
    %1014 = vmatprep.subr.mxu0 0.0
    %1015 = vmatpush1.msra.mxu0 0.0
    %1016 = vmatprep.subr.mxu0 0.0
    %1017 = vmatpush1.msra.mxu0 0.0
    %1018 = vmatprep.subr.mxu0 0.0
    %1019 = vmatpush1.msra.mxu0 0.0
    %1020 = vmatprep.subr.mxu0 0.0
    %1021 = vmatpush1.msra.mxu0 0.0
    %1022 = vmatprep.subr.mxu0 0.0
    %1023 = vmatpush1.msra.mxu0 0.0
    %1024 = vmatprep.subr.mxu0 0.0
    %1025 = vmatpush1.msra.mxu0 0.0
    %1026 = vmatprep.subr.mxu0 0.0
    %1027 = vmatpush1.msra.mxu0 0.0
    %1028 = vmatprep.subr.mxu0 0.0
    %1029 = vmatpush1.msra.mxu0 0.0
    %1030 = vmatprep.subr.mxu0 0.0
    %1031 = vmatpush1.msra.mxu0 0.0
    %1032 = vmatprep.subr.mxu0 0.0
    %1033 = vmatpush1.msra.mxu0 0.0
    %1034 = vmatprep.subr.mxu0 0.0
    %1035 = vmatpush1.msra.mxu0 0.0
    %1036 = vmatprep.subr.mxu0 0.0
    %1037 = vmatpush1.msra.mxu0 0.0
    %1038 = vmatprep.subr.mxu0 0.0
    %1039 = vmatpush1.msra.mxu0 0.0
    %1040 = vmatprep.subr.mxu0 0.0
    %1041 = vmatpush1.msra.mxu0 0.0
    %1042 = vmatprep.subr.mxu0 0.0
    %1043 = vmatpush1.msra.mxu0 0.0
    %1044 = vmatprep.subr.mxu0 0.0
    %1045 = vmatpush1.msra.mxu0 0.0
    %1046 = vmatprep.subr.mxu0 0.0
    %1047 = vmatpush1.msra.mxu0 0.0
    %1048 = vmatprep.subr.mxu0 0.0
    %1049 = vmatpush1.msra.mxu0 0.0
    %1050 = vmatprep.mubr.f32.mxu0 0.0
    %1051 = vmatmul.mubr.f32.gmra.mrb[0].mxu0 %v984
    %v1052 = vpop.f32.mrb[0].mxu0
    %v1053 = vadd.f32 %v527, %v1052
    %v1054 = vpop.f32.mrb[0].mxu0
    %1055 = vdwg.mxu0
    %1056 = vmatprep.subr.mxu0 0.0
    %1057 = vmatpush1.msra.mxu0 %v491
    %1058 = vmatprep.subr.mxu0 0.0
    %1059 = vmatpush1.msra.mxu0 %v492
    %1060 = vmatprep.subr.mxu0 0.0
    %1061 = vmatpush1.msra.mxu0 %v493
    %1062 = vmatprep.subr.mxu0 0.0
    %1063 = vmatpush1.msra.mxu0 %v494
    %1064 = vmatprep.subr.mxu0 0.0
    %1065 = vmatpush1.msra.mxu0 %v495
    %1066 = vmatprep.subr.mxu0 0.0
    %1067 = vmatpush1.msra.mxu0 %v496
    %1068 = vmatprep.subr.mxu0 0.0
    %1069 = vmatpush1.msra.mxu0 %v497
    %1070 = vmatprep.subr.mxu0 0.0
    %1071 = vmatpush1.msra.mxu0 %v498
    %1072 = vmatprep.subr.mxu0 0.0
    %1073 = vmatpush1.msra.mxu0 %v499
    %1074 = vmatprep.subr.mxu0 0.0
    %1075 = vmatpush1.msra.mxu0 %v500
    %1076 = vmatprep.subr.mxu0 0.0
    %1077 = vmatpush1.msra.mxu0 %v501
    %1078 = vmatprep.subr.mxu0 0.0
    %1079 = vmatpush1.msra.mxu0 %v502
    %1080 = vmatprep.subr.mxu0 0.0
    %1081 = vmatpush1.msra.mxu0 %v503
    %1082 = vmatprep.subr.mxu0 0.0
    %1083 = vmatpush1.msra.mxu0 %v504
    %1084 = vmatprep.subr.mxu0 0.0
    %1085 = vmatpush1.msra.mxu0 %v505
    %1086 = vmatprep.subr.mxu0 0.0
    %1087 = vmatpush1.msra.mxu0 %v506
    %1088 = vmatprep.subr.mxu0 0.0
    %1089 = vmatpush1.msra.mxu0 0.0
    %1090 = vmatprep.subr.mxu0 0.0
    %1091 = vmatpush1.msra.mxu0 0.0
    %1092 = vmatprep.subr.mxu0 0.0
    %1093 = vmatpush1.msra.mxu0 0.0
    %1094 = vmatprep.subr.mxu0 0.0
    %1095 = vmatpush1.msra.mxu0 0.0
    %1096 = vmatprep.subr.mxu0 0.0
    %1097 = vmatpush1.msra.mxu0 0.0
    %1098 = vmatprep.subr.mxu0 0.0
    %1099 = vmatpush1.msra.mxu0 0.0
    %1100 = vmatprep.subr.mxu0 0.0
    %1101 = vmatpush1.msra.mxu0 0.0
    %1102 = vmatprep.subr.mxu0 0.0
    %1103 = vmatpush1.msra.mxu0 0.0
    %1104 = vmatprep.subr.mxu0 0.0
    %1105 = vmatpush1.msra.mxu0 0.0
    %1106 = vmatprep.subr.mxu0 0.0
    %1107 = vmatpush1.msra.mxu0 0.0
    %1108 = vmatprep.subr.mxu0 0.0
    %1109 = vmatpush1.msra.mxu0 0.0
    %1110 = vmatprep.subr.mxu0 0.0
    %1111 = vmatpush1.msra.mxu0 0.0
    %1112 = vmatprep.subr.mxu0 0.0
    %1113 = vmatpush1.msra.mxu0 0.0
    %1114 = vmatprep.subr.mxu0 0.0
    %1115 = vmatpush1.msra.mxu0 0.0
    %1116 = vmatprep.subr.mxu0 0.0
    %1117 = vmatpush1.msra.mxu0 0.0
    %1118 = vmatprep.subr.mxu0 0.0
    %1119 = vmatpush1.msra.mxu0 0.0
    %1120 = vmatprep.mubr.f32.mxu0 0.0
    %1121 = vmatmul.mubr.f32.gmra.mrb[0].mxu0 %v1053
    %v1122 = vpop.f32.mrb[0].mxu0
    %v1123 = vadd.f32 0.0, %v1122
    %v1124 = vpop.f32.mrb[0].mxu0
    %1125 = vdwg.mxu0
    %v1126 = vsub.f32 %v1053, %v1123
    %v1127 = vmul.f32 %v1126, %v1126
    %1128 = vmatprep.subr.mxu0 0.0
    %1129 = vmatpush1.msra.mxu0 %v491
    %1130 = vmatprep.subr.mxu0 0.0
    %1131 = vmatpush1.msra.mxu0 %v492
    %1132 = vmatprep.subr.mxu0 0.0
    %1133 = vmatpush1.msra.mxu0 %v493
    %1134 = vmatprep.subr.mxu0 0.0
    %1135 = vmatpush1.msra.mxu0 %v494
    %1136 = vmatprep.subr.mxu0 0.0
    %1137 = vmatpush1.msra.mxu0 %v495
    %1138 = vmatprep.subr.mxu0 0.0
    %1139 = vmatpush1.msra.mxu0 %v496
    %1140 = vmatprep.subr.mxu0 0.0
    %1141 = vmatpush1.msra.mxu0 %v497
    %1142 = vmatprep.subr.mxu0 0.0
    %1143 = vmatpush1.msra.mxu0 %v498
    %1144 = vmatprep.subr.mxu0 0.0
    %1145 = vmatpush1.msra.mxu0 %v499
    %1146 = vmatprep.subr.mxu0 0.0
    %1147 = vmatpush1.msra.mxu0 %v500
    %1148 = vmatprep.subr.mxu0 0.0
    %1149 = vmatpush1.msra.mxu0 %v501
    %1150 = vmatprep.subr.mxu0 0.0
    %1151 = vmatpush1.msra.mxu0 %v502
    %1152 = vmatprep.subr.mxu0 0.0
    %1153 = vmatpush1.msra.mxu0 %v503
    %1154 = vmatprep.subr.mxu0 0.0
    %1155 = vmatpush1.msra.mxu0 %v504
    %1156 = vmatprep.subr.mxu0 0.0
    %1157 = vmatpush1.msra.mxu0 %v505
    %1158 = vmatprep.subr.mxu0 0.0
    %1159 = vmatpush1.msra.mxu0 %v506
    %1160 = vmatprep.subr.mxu0 0.0
    %1161 = vmatpush1.msra.mxu0 0.0
    %1162 = vmatprep.subr.mxu0 0.0
    %1163 = vmatpush1.msra.mxu0 0.0
    %1164 = vmatprep.subr.mxu0 0.0
    %1165 = vmatpush1.msra.mxu0 0.0
    %1166 = vmatprep.subr.mxu0 0.0
    %1167 = vmatpush1.msra.mxu0 0.0
    %1168 = vmatprep.subr.mxu0 0.0
    %1169 = vmatpush1.msra.mxu0 0.0
    %1170 = vmatprep.subr.mxu0 0.0
    %1171 = vmatpush1.msra.mxu0 0.0
    %1172 = vmatprep.subr.mxu0 0.0
    %1173 = vmatpush1.msra.mxu0 0.0
    %1174 = vmatprep.subr.mxu0 0.0
    %1175 = vmatpush1.msra.mxu0 0.0
    %1176 = vmatprep.subr.mxu0 0.0
    %1177 = vmatpush1.msra.mxu0 0.0
    %1178 = vmatprep.subr.mxu0 0.0
    %1179 = vmatpush1.msra.mxu0 0.0
    %1180 = vmatprep.subr.mxu0 0.0
    %1181 = vmatpush1.msra.mxu0 0.0
    %1182 = vmatprep.subr.mxu0 0.0
    %1183 = vmatpush1.msra.mxu0 0.0
    %1184 = vmatprep.subr.mxu0 0.0
    %1185 = vmatpush1.msra.mxu0 0.0
    %1186 = vmatprep.subr.mxu0 0.0
    %1187 = vmatpush1.msra.mxu0 0.0
    %1188 = vmatprep.subr.mxu0 0.0
    %1189 = vmatpush1.msra.mxu0 0.0
    %1190 = vmatprep.subr.mxu0 0.0
    %1191 = vmatpush1.msra.mxu0 0.0
    %1192 = vmatprep.mubr.f32.mxu0 0.0
    %1193 = vmatmul.mubr.f32.gmra.mrb[0].mxu0 %v1127
    %v1194 = vpop.f32.mrb[0].mxu0
    %v1195 = vadd.f32 1e-05, %v1194
    %v1196 = vpop.f32.mrb[0].mxu0
    %1197 = vdwg.mxu0
    %v1198 = vrsqrt.pop %v1195
    %v1199 = vmul.f32 %v1126, %v1198
    %v1200 = vmul.f32 %v1199, %v753
    %v1201 = vadd.f32 %v1200, %v758
    %s1202 = scalar_lea.vmem %s0, 6
    %v1203 = vld [vmem:[%s1202] sm:$0x3]
    %v1205 = vsel %vm528, %v1203, 0
    %1207 = vmatprep.subr.mxu0 0.0
    %1208 = vmatpush1.msra.mxu0 %v534
    %1209 = vmatprep.subr.mxu0 0.0
    %1210 = vmatpush1.msra.mxu0 0.0
    %1211 = vmatprep.subr.mxu0 0.0
    %1212 = vmatpush1.msra.mxu0 0.0
    %1213 = vmatprep.subr.mxu0 0.0
    %1214 = vmatpush1.msra.mxu0 0.0
    %1215 = vmatprep.subr.mxu0 0.0
    %1216 = vmatpush1.msra.mxu0 0.0
    %1217 = vmatprep.subr.mxu0 0.0
    %1218 = vmatpush1.msra.mxu0 0.0
    %1219 = vmatprep.subr.mxu0 0.0
    %1220 = vmatpush1.msra.mxu0 0.0
    %1221 = vmatprep.subr.mxu0 0.0
    %1222 = vmatpush1.msra.mxu0 0.0
    %1223 = vmatprep.subr.mxu0 0.0
    %1224 = vmatpush1.msra.mxu0 0.0
    %1225 = vmatprep.subr.mxu0 0.0
    %1226 = vmatpush1.msra.mxu0 0.0
    %1227 = vmatprep.subr.mxu0 0.0
    %1228 = vmatpush1.msra.mxu0 0.0
    %1229 = vmatprep.subr.mxu0 0.0
    %1230 = vmatpush1.msra.mxu0 0.0
    %1231 = vmatprep.subr.mxu0 0.0
    %1232 = vmatpush1.msra.mxu0 0.0
    %1233 = vmatprep.subr.mxu0 0.0
    %1234 = vmatpush1.msra.mxu0 0.0
    %1235 = vmatprep.subr.mxu0 0.0
    %1236 = vmatpush1.msra.mxu0 0.0
    %1237 = vmatprep.subr.mxu0 0.0
    %1238 = vmatpush1.msra.mxu0 0.0
    %1239 = vmatprep.subr.mxu0 0.0
    %1240 = vmatpush1.msra.mxu0 0.0
    %1241 = vmatprep.subr.mxu0 0.0
    %1242 = vmatpush1.msra.mxu0 0.0
    %1243 = vmatprep.subr.mxu0 0.0
    %1244 = vmatpush1.msra.mxu0 0.0
    %1245 = vmatprep.subr.mxu0 0.0
    %1246 = vmatpush1.msra.mxu0 0.0
    %1247 = vmatprep.subr.mxu0 0.0
    %1248 = vmatpush1.msra.mxu0 0.0
    %1249 = vmatprep.subr.mxu0 0.0
    %1250 = vmatpush1.msra.mxu0 0.0
    %1251 = vmatprep.subr.mxu0 0.0
    %1252 = vmatpush1.msra.mxu0 0.0
    %1253 = vmatprep.subr.mxu0 0.0
    %1254 = vmatpush1.msra.mxu0 0.0
    %1255 = vmatprep.subr.mxu0 0.0
    %1256 = vmatpush1.msra.mxu0 0.0
    %1257 = vmatprep.subr.mxu0 0.0
    %1258 = vmatpush1.msra.mxu0 0.0
    %1259 = vmatprep.subr.mxu0 0.0
    %1260 = vmatpush1.msra.mxu0 0.0
    %1261 = vmatprep.subr.mxu0 0.0
    %1262 = vmatpush1.msra.mxu0 0.0
    %1263 = vmatprep.subr.mxu0 0.0
    %1264 = vmatpush1.msra.mxu0 0.0
    %1265 = vmatprep.subr.mxu0 0.0
    %1266 = vmatpush1.msra.mxu0 0.0
    %1267 = vmatprep.subr.mxu0 0.0
    %1268 = vmatpush1.msra.mxu0 0.0
    %1269 = vmatprep.subr.mxu0 0.0
    %1270 = vmatpush1.msra.mxu0 0.0
    %1271 = vmatprep.mubr.f32.mxu0 0.0
    %1272 = vmatmul.mubr.f32.gmra.mrb[0].mxu0 %v1205
    %v1273 = vpop.f32.mrb[0].mxu0
    %v1274 = vadd.f32 %v527, %v1273
    %v1275 = vpop.f32.mrb[0].mxu0
    %1276 = vdwg.mxu0
    %1277 = vmatprep.subr.mxu0 0.0
    %1278 = vmatpush1.msra.mxu0 %v491
    %1279 = vmatprep.subr.mxu0 0.0
    %1280 = vmatpush1.msra.mxu0 %v492
    %1281 = vmatprep.subr.mxu0 0.0
    %1282 = vmatpush1.msra.mxu0 %v493
    %1283 = vmatprep.subr.mxu0 0.0
    %1284 = vmatpush1.msra.mxu0 %v494
    %1285 = vmatprep.subr.mxu0 0.0
    %1286 = vmatpush1.msra.mxu0 %v495
    %1287 = vmatprep.subr.mxu0 0.0
    %1288 = vmatpush1.msra.mxu0 %v496
    %1289 = vmatprep.subr.mxu0 0.0
    %1290 = vmatpush1.msra.mxu0 %v497
    %1291 = vmatprep.subr.mxu0 0.0
    %1292 = vmatpush1.msra.mxu0 %v498
    %1293 = vmatprep.subr.mxu0 0.0
    %1294 = vmatpush1.msra.mxu0 %v499
    %1295 = vmatprep.subr.mxu0 0.0
    %1296 = vmatpush1.msra.mxu0 %v500
    %1297 = vmatprep.subr.mxu0 0.0
    %1298 = vmatpush1.msra.mxu0 %v501
    %1299 = vmatprep.subr.mxu0 0.0
    %1300 = vmatpush1.msra.mxu0 %v502
    %1301 = vmatprep.subr.mxu0 0.0
    %1302 = vmatpush1.msra.mxu0 %v503
    %1303 = vmatprep.subr.mxu0 0.0
    %1304 = vmatpush1.msra.mxu0 %v504
    %1305 = vmatprep.subr.mxu0 0.0
    %1306 = vmatpush1.msra.mxu0 %v505
    %1307 = vmatprep.subr.mxu0 0.0
    %1308 = vmatpush1.msra.mxu0 %v506
    %1309 = vmatprep.subr.mxu0 0.0
    %1310 = vmatpush1.msra.mxu0 0.0
    %1311 = vmatprep.subr.mxu0 0.0
    %1312 = vmatpush1.msra.mxu0 0.0
    %1313 = vmatprep.subr.mxu0 0.0
    %1314 = vmatpush1.msra.mxu0 0.0
    %1315 = vmatprep.subr.mxu0 0.0
    %1316 = vmatpush1.msra.mxu0 0.0
    %1317 = vmatprep.subr.mxu0 0.0
    %1318 = vmatpush1.msra.mxu0 0.0
    %1319 = vmatprep.subr.mxu0 0.0
    %1320 = vmatpush1.msra.mxu0 0.0
    %1321 = vmatprep.subr.mxu0 0.0
    %1322 = vmatpush1.msra.mxu0 0.0
    %1323 = vmatprep.subr.mxu0 0.0
    %1324 = vmatpush1.msra.mxu0 0.0
    %1325 = vmatprep.subr.mxu0 0.0
    %1326 = vmatpush1.msra.mxu0 0.0
    %1327 = vmatprep.subr.mxu0 0.0
    %1328 = vmatpush1.msra.mxu0 0.0
    %1329 = vmatprep.subr.mxu0 0.0
    %1330 = vmatpush1.msra.mxu0 0.0
    %1331 = vmatprep.subr.mxu0 0.0
    %1332 = vmatpush1.msra.mxu0 0.0
    %1333 = vmatprep.subr.mxu0 0.0
    %1334 = vmatpush1.msra.mxu0 0.0
    %1335 = vmatprep.subr.mxu0 0.0
    %1336 = vmatpush1.msra.mxu0 0.0
    %1337 = vmatprep.subr.mxu0 0.0
    %1338 = vmatpush1.msra.mxu0 0.0
    %1339 = vmatprep.subr.mxu0 0.0
    %1340 = vmatpush1.msra.mxu0 0.0
    %1341 = vmatprep.mubr.f32.mxu0 0.0
    %1342 = vmatmul.mubr.f32.gmra.mrb[0].mxu0 %v1274
    %v1343 = vpop.f32.mrb[0].mxu0
    %v1344 = vadd.f32 0.0, %v1343
    %v1345 = vpop.f32.mrb[0].mxu0
    %1346 = vdwg.mxu0
    %v1347 = vsub.f32 %v1274, %v1344
    %v1348 = vmul.f32 %v1347, %v1347
    %1349 = vmatprep.subr.mxu0 0.0
    %1350 = vmatpush1.msra.mxu0 %v491
    %1351 = vmatprep.subr.mxu0 0.0
    %1352 = vmatpush1.msra.mxu0 %v492
    %1353 = vmatprep.subr.mxu0 0.0
    %1354 = vmatpush1.msra.mxu0 %v493
    %1355 = vmatprep.subr.mxu0 0.0
    %1356 = vmatpush1.msra.mxu0 %v494
    %1357 = vmatprep.subr.mxu0 0.0
    %1358 = vmatpush1.msra.mxu0 %v495
    %1359 = vmatprep.subr.mxu0 0.0
    %1360 = vmatpush1.msra.mxu0 %v496
    %1361 = vmatprep.subr.mxu0 0.0
    %1362 = vmatpush1.msra.mxu0 %v497
    %1363 = vmatprep.subr.mxu0 0.0
    %1364 = vmatpush1.msra.mxu0 %v498
    %1365 = vmatprep.subr.mxu0 0.0
    %1366 = vmatpush1.msra.mxu0 %v499
    %1367 = vmatprep.subr.mxu0 0.0
    %1368 = vmatpush1.msra.mxu0 %v500
    %1369 = vmatprep.subr.mxu0 0.0
    %1370 = vmatpush1.msra.mxu0 %v501
    %1371 = vmatprep.subr.mxu0 0.0
    %1372 = vmatpush1.msra.mxu0 %v502
    %1373 = vmatprep.subr.mxu0 0.0
    %1374 = vmatpush1.msra.mxu0 %v503
    %1375 = vmatprep.subr.mxu0 0.0
    %1376 = vmatpush1.msra.mxu0 %v504
    %1377 = vmatprep.subr.mxu0 0.0
    %1378 = vmatpush1.msra.mxu0 %v505
    %1379 = vmatprep.subr.mxu0 0.0
    %1380 = vmatpush1.msra.mxu0 %v506
    %1381 = vmatprep.subr.mxu0 0.0
    %1382 = vmatpush1.msra.mxu0 0.0
    %1383 = vmatprep.subr.mxu0 0.0
    %1384 = vmatpush1.msra.mxu0 0.0
    %1385 = vmatprep.subr.mxu0 0.0
    %1386 = vmatpush1.msra.mxu0 0.0
    %1387 = vmatprep.subr.mxu0 0.0
    %1388 = vmatpush1.msra.mxu0 0.0
    %1389 = vmatprep.subr.mxu0 0.0
    %1390 = vmatpush1.msra.mxu0 0.0
    %1391 = vmatprep.subr.mxu0 0.0
    %1392 = vmatpush1.msra.mxu0 0.0
    %1393 = vmatprep.subr.mxu0 0.0
    %1394 = vmatpush1.msra.mxu0 0.0
    %1395 = vmatprep.subr.mxu0 0.0
    %1396 = vmatpush1.msra.mxu0 0.0
    %1397 = vmatprep.subr.mxu0 0.0
    %1398 = vmatpush1.msra.mxu0 0.0
    %1399 = vmatprep.subr.mxu0 0.0
    %1400 = vmatpush1.msra.mxu0 0.0
    %1401 = vmatprep.subr.mxu0 0.0
    %1402 = vmatpush1.msra.mxu0 0.0
    %1403 = vmatprep.subr.mxu0 0.0
    %1404 = vmatpush1.msra.mxu0 0.0
    %1405 = vmatprep.subr.mxu0 0.0
    %1406 = vmatpush1.msra.mxu0 0.0
    %1407 = vmatprep.subr.mxu0 0.0
    %1408 = vmatpush1.msra.mxu0 0.0
    %1409 = vmatprep.subr.mxu0 0.0
    %1410 = vmatpush1.msra.mxu0 0.0
    %1411 = vmatprep.subr.mxu0 0.0
    %1412 = vmatpush1.msra.mxu0 0.0
    %1413 = vmatprep.mubr.f32.mxu0 0.0
    %1414 = vmatmul.mubr.f32.gmra.mrb[0].mxu0 %v1348
    %v1415 = vpop.f32.mrb[0].mxu0
    %v1416 = vadd.f32 1e-05, %v1415
    %v1417 = vpop.f32.mrb[0].mxu0
    %1418 = vdwg.mxu0
    %v1419 = vrsqrt.pop %v1416
    %v1420 = vmul.f32 %v1347, %v1419
    %v1421 = vmul.f32 %v1420, %v753
    %v1422 = vadd.f32 %v1421, %v758
    %s1423 = scalar_lea.vmem %s0, 8
    %v1424 = vld [vmem:[%s1423] sm:$0x3]
    %v1426 = vsel %vm528, %v1424, 0
    %1428 = vmatprep.subr.mxu0 0.0
    %1429 = vmatpush1.msra.mxu0 %v534
    %1430 = vmatprep.subr.mxu0 0.0
    %1431 = vmatpush1.msra.mxu0 0.0
    %1432 = vmatprep.subr.mxu0 0.0
    %1433 = vmatpush1.msra.mxu0 0.0
    %1434 = vmatprep.subr.mxu0 0.0
    %1435 = vmatpush1.msra.mxu0 0.0
    %1436 = vmatprep.subr.mxu0 0.0
    %1437 = vmatpush1.msra.mxu0 0.0
    %1438 = vmatprep.subr.mxu0 0.0
    %1439 = vmatpush1.msra.mxu0 0.0
    %1440 = vmatprep.subr.mxu0 0.0
    %1441 = vmatpush1.msra.mxu0 0.0
    %1442 = vmatprep.subr.mxu0 0.0
    %1443 = vmatpush1.msra.mxu0 0.0
    %1444 = vmatprep.subr.mxu0 0.0
    %1445 = vmatpush1.msra.mxu0 0.0
    %1446 = vmatprep.subr.mxu0 0.0
    %1447 = vmatpush1.msra.mxu0 0.0
    %1448 = vmatprep.subr.mxu0 0.0
    %1449 = vmatpush1.msra.mxu0 0.0
    %1450 = vmatprep.subr.mxu0 0.0
    %1451 = vmatpush1.msra.mxu0 0.0
    %1452 = vmatprep.subr.mxu0 0.0
    %1453 = vmatpush1.msra.mxu0 0.0
    %1454 = vmatprep.subr.mxu0 0.0
    %1455 = vmatpush1.msra.mxu0 0.0
    %1456 = vmatprep.subr.mxu0 0.0
    %1457 = vmatpush1.msra.mxu0 0.0
    %1458 = vmatprep.subr.mxu0 0.0
    %1459 = vmatpush1.msra.mxu0 0.0
    %1460 = vmatprep.subr.mxu0 0.0
    %1461 = vmatpush1.msra.mxu0 0.0
    %1462 = vmatprep.subr.mxu0 0.0
    %1463 = vmatpush1.msra.mxu0 0.0
    %1464 = vmatprep.subr.mxu0 0.0
    %1465 = vmatpush1.msra.mxu0 0.0
    %1466 = vmatprep.subr.mxu0 0.0
    %1467 = vmatpush1.msra.mxu0 0.0
    %1468 = vmatprep.subr.mxu0 0.0
    %1469 = vmatpush1.msra.mxu0 0.0
    %1470 = vmatprep.subr.mxu0 0.0
    %1471 = vmatpush1.msra.mxu0 0.0
    %1472 = vmatprep.subr.mxu0 0.0
    %1473 = vmatpush1.msra.mxu0 0.0
    %1474 = vmatprep.subr.mxu0 0.0
    %1475 = vmatpush1.msra.mxu0 0.0
    %1476 = vmatprep.subr.mxu0 0.0
    %1477 = vmatpush1.msra.mxu0 0.0
    %1478 = vmatprep.subr.mxu0 0.0
    %1479 = vmatpush1.msra.mxu0 0.0
    %1480 = vmatprep.subr.mxu0 0.0
    %1481 = vmatpush1.msra.mxu0 0.0
    %1482 = vmatprep.subr.mxu0 0.0
    %1483 = vmatpush1.msra.mxu0 0.0
    %1484 = vmatprep.subr.mxu0 0.0
    %1485 = vmatpush1.msra.mxu0 0.0
    %1486 = vmatprep.subr.mxu0 0.0
    %1487 = vmatpush1.msra.mxu0 0.0
    %1488 = vmatprep.subr.mxu0 0.0
    %1489 = vmatpush1.msra.mxu0 0.0
    %1490 = vmatprep.subr.mxu0 0.0
    %1491 = vmatpush1.msra.mxu0 0.0
    %1492 = vmatprep.mubr.f32.mxu0 0.0
    %1493 = vmatmul.mubr.f32.gmra.mrb[0].mxu0 %v1426
    %v1494 = vpop.f32.mrb[0].mxu0
    %v1495 = vadd.f32 %v527, %v1494
    %v1496 = vpop.f32.mrb[0].mxu0
    %1497 = vdwg.mxu0
    %1498 = vmatprep.subr.mxu0 0.0
    %1499 = vmatpush1.msra.mxu0 %v491
    %1500 = vmatprep.subr.mxu0 0.0
    %1501 = vmatpush1.msra.mxu0 %v492
    %1502 = vmatprep.subr.mxu0 0.0
    %1503 = vmatpush1.msra.mxu0 %v493
    %1504 = vmatprep.subr.mxu0 0.0
    %1505 = vmatpush1.msra.mxu0 %v494
    %1506 = vmatprep.subr.mxu0 0.0
    %1507 = vmatpush1.msra.mxu0 %v495
    %1508 = vmatprep.subr.mxu0 0.0
    %1509 = vmatpush1.msra.mxu0 %v496
    %1510 = vmatprep.subr.mxu0 0.0
    %1511 = vmatpush1.msra.mxu0 %v497
    %1512 = vmatprep.subr.mxu0 0.0
    %1513 = vmatpush1.msra.mxu0 %v498
    %1514 = vmatprep.subr.mxu0 0.0
    %1515 = vmatpush1.msra.mxu0 %v499
    %1516 = vmatprep.subr.mxu0 0.0
    %1517 = vmatpush1.msra.mxu0 %v500
    %1518 = vmatprep.subr.mxu0 0.0
    %1519 = vmatpush1.msra.mxu0 %v501
    %1520 = vmatprep.subr.mxu0 0.0
    %1521 = vmatpush1.msra.mxu0 %v502
    %1522 = vmatprep.subr.mxu0 0.0
    %1523 = vmatpush1.msra.mxu0 %v503
    %1524 = vmatprep.subr.mxu0 0.0
    %1525 = vmatpush1.msra.mxu0 %v504
    %1526 = vmatprep.subr.mxu0 0.0
    %1527 = vmatpush1.msra.mxu0 %v505
    %1528 = vmatprep.subr.mxu0 0.0
    %1529 = vmatpush1.msra.mxu0 %v506
    %1530 = vmatprep.subr.mxu0 0.0
    %1531 = vmatpush1.msra.mxu0 0.0
    %1532 = vmatprep.subr.mxu0 0.0
    %1533 = vmatpush1.msra.mxu0 0.0
    %1534 = vmatprep.subr.mxu0 0.0
    %1535 = vmatpush1.msra.mxu0 0.0
    %1536 = vmatprep.subr.mxu0 0.0
    %1537 = vmatpush1.msra.mxu0 0.0
    %1538 = vmatprep.subr.mxu0 0.0
    %1539 = vmatpush1.msra.mxu0 0.0
    %1540 = vmatprep.subr.mxu0 0.0
    %1541 = vmatpush1.msra.mxu0 0.0
    %1542 = vmatprep.subr.mxu0 0.0
    %1543 = vmatpush1.msra.mxu0 0.0
    %1544 = vmatprep.subr.mxu0 0.0
    %1545 = vmatpush1.msra.mxu0 0.0
    %1546 = vmatprep.subr.mxu0 0.0
    %1547 = vmatpush1.msra.mxu0 0.0
    %1548 = vmatprep.subr.mxu0 0.0
    %1549 = vmatpush1.msra.mxu0 0.0
    %1550 = vmatprep.subr.mxu0 0.0
    %1551 = vmatpush1.msra.mxu0 0.0
    %1552 = vmatprep.subr.mxu0 0.0
    %1553 = vmatpush1.msra.mxu0 0.0
    %1554 = vmatprep.subr.mxu0 0.0
    %1555 = vmatpush1.msra.mxu0 0.0
    %1556 = vmatprep.subr.mxu0 0.0
    %1557 = vmatpush1.msra.mxu0 0.0
    %1558 = vmatprep.subr.mxu0 0.0
    %1559 = vmatpush1.msra.mxu0 0.0
    %1560 = vmatprep.subr.mxu0 0.0
    %1561 = vmatpush1.msra.mxu0 0.0
    %1562 = vmatprep.mubr.f32.mxu0 0.0
    %1563 = vmatmul.mubr.f32.gmra.mrb[0].mxu0 %v1495
    %v1564 = vpop.f32.mrb[0].mxu0
    %v1565 = vadd.f32 0.0, %v1564
    %v1566 = vpop.f32.mrb[0].mxu0
    %1567 = vdwg.mxu0
    %v1568 = vsub.f32 %v1495, %v1565
    %v1569 = vmul.f32 %v1568, %v1568
    %1570 = vmatprep.subr.mxu0 0.0
    %1571 = vmatpush1.msra.mxu0 %v491
    %1572 = vmatprep.subr.mxu0 0.0
    %1573 = vmatpush1.msra.mxu0 %v492
    %1574 = vmatprep.subr.mxu0 0.0
    %1575 = vmatpush1.msra.mxu0 %v493
    %1576 = vmatprep.subr.mxu0 0.0
    %1577 = vmatpush1.msra.mxu0 %v494
    %1578 = vmatprep.subr.mxu0 0.0
    %1579 = vmatpush1.msra.mxu0 %v495
    %1580 = vmatprep.subr.mxu0 0.0
    %1581 = vmatpush1.msra.mxu0 %v496
    %1582 = vmatprep.subr.mxu0 0.0
    %1583 = vmatpush1.msra.mxu0 %v497
    %1584 = vmatprep.subr.mxu0 0.0
    %1585 = vmatpush1.msra.mxu0 %v498
    %1586 = vmatprep.subr.mxu0 0.0
    %1587 = vmatpush1.msra.mxu0 %v499
    %1588 = vmatprep.subr.mxu0 0.0
    %1589 = vmatpush1.msra.mxu0 %v500
    %1590 = vmatprep.subr.mxu0 0.0
    %1591 = vmatpush1.msra.mxu0 %v501
    %1592 = vmatprep.subr.mxu0 0.0
    %1593 = vmatpush1.msra.mxu0 %v502
    %1594 = vmatprep.subr.mxu0 0.0
    %1595 = vmatpush1.msra.mxu0 %v503
    %1596 = vmatprep.subr.mxu0 0.0
    %1597 = vmatpush1.msra.mxu0 %v504
    %1598 = vmatprep.subr.mxu0 0.0
    %1599 = vmatpush1.msra.mxu0 %v505
    %1600 = vmatprep.subr.mxu0 0.0
    %1601 = vmatpush1.msra.mxu0 %v506
    %1602 = vmatprep.subr.mxu0 0.0
    %1603 = vmatpush1.msra.mxu0 0.0
    %1604 = vmatprep.subr.mxu0 0.0
    %1605 = vmatpush1.msra.mxu0 0.0
    %1606 = vmatprep.subr.mxu0 0.0
    %1607 = vmatpush1.msra.mxu0 0.0
    %1608 = vmatprep.subr.mxu0 0.0
    %1609 = vmatpush1.msra.mxu0 0.0
    %1610 = vmatprep.subr.mxu0 0.0
    %1611 = vmatpush1.msra.mxu0 0.0
    %1612 = vmatprep.subr.mxu0 0.0
    %1613 = vmatpush1.msra.mxu0 0.0
    %1614 = vmatprep.subr.mxu0 0.0
    %1615 = vmatpush1.msra.mxu0 0.0
    %1616 = vmatprep.subr.mxu0 0.0
    %1617 = vmatpush1.msra.mxu0 0.0
    %1618 = vmatprep.subr.mxu0 0.0
    %1619 = vmatpush1.msra.mxu0 0.0
    %1620 = vmatprep.subr.mxu0 0.0
    %1621 = vmatpush1.msra.mxu0 0.0
    %1622 = vmatprep.subr.mxu0 0.0
    %1623 = vmatpush1.msra.mxu0 0.0
    %1624 = vmatprep.subr.mxu0 0.0
    %1625 = vmatpush1.msra.mxu0 0.0
    %1626 = vmatprep.subr.mxu0 0.0
    %1627 = vmatpush1.msra.mxu0 0.0
    %1628 = vmatprep.subr.mxu0 0.0
    %1629 = vmatpush1.msra.mxu0 0.0
    %1630 = vmatprep.subr.mxu0 0.0
    %1631 = vmatpush1.msra.mxu0 0.0
    %1632 = vmatprep.subr.mxu0 0.0
    %1633 = vmatpush1.msra.mxu0 0.0
    %1634 = vmatprep.mubr.f32.mxu0 0.0
    %1635 = vmatmul.mubr.f32.gmra.mrb[0].mxu0 %v1569
    %v1636 = vpop.f32.mrb[0].mxu0
    %v1637 = vadd.f32 1e-05, %v1636
    %v1638 = vpop.f32.mrb[0].mxu0
    %1639 = vdwg.mxu0
    %v1640 = vrsqrt.pop %v1637
    %v1641 = vmul.f32 %v1568, %v1640
    %v1642 = vmul.f32 %v1641, %v753
    %v1643 = vadd.f32 %v1642, %v758
    %s1644 = scalar_lea.vmem %s0, 10
    %v1645 = vld [vmem:[%s1644] sm:$0x3]
    %v1647 = vsel %vm528, %v1645, 0
    %1649 = vmatprep.subr.mxu0 0.0
    %1650 = vmatpush1.msra.mxu0 %v534
    %1651 = vmatprep.subr.mxu0 0.0
    %1652 = vmatpush1.msra.mxu0 0.0
    %1653 = vmatprep.subr.mxu0 0.0
    %1654 = vmatpush1.msra.mxu0 0.0
    %1655 = vmatprep.subr.mxu0 0.0
    %1656 = vmatpush1.msra.mxu0 0.0
    %1657 = vmatprep.subr.mxu0 0.0
    %1658 = vmatpush1.msra.mxu0 0.0
    %1659 = vmatprep.subr.mxu0 0.0
    %1660 = vmatpush1.msra.mxu0 0.0
    %1661 = vmatprep.subr.mxu0 0.0
    %1662 = vmatpush1.msra.mxu0 0.0
    %1663 = vmatprep.subr.mxu0 0.0
    %1664 = vmatpush1.msra.mxu0 0.0
    %1665 = vmatprep.subr.mxu0 0.0
    %1666 = vmatpush1.msra.mxu0 0.0
    %1667 = vmatprep.subr.mxu0 0.0
    %1668 = vmatpush1.msra.mxu0 0.0
    %1669 = vmatprep.subr.mxu0 0.0
    %1670 = vmatpush1.msra.mxu0 0.0
    %1671 = vmatprep.subr.mxu0 0.0
    %1672 = vmatpush1.msra.mxu0 0.0
    %1673 = vmatprep.subr.mxu0 0.0
    %1674 = vmatpush1.msra.mxu0 0.0
    %1675 = vmatprep.subr.mxu0 0.0
    %1676 = vmatpush1.msra.mxu0 0.0
    %1677 = vmatprep.subr.mxu0 0.0
    %1678 = vmatpush1.msra.mxu0 0.0
    %1679 = vmatprep.subr.mxu0 0.0
    %1680 = vmatpush1.msra.mxu0 0.0
    %1681 = vmatprep.subr.mxu0 0.0
    %1682 = vmatpush1.msra.mxu0 0.0
    %1683 = vmatprep.subr.mxu0 0.0
    %1684 = vmatpush1.msra.mxu0 0.0
    %1685 = vmatprep.subr.mxu0 0.0
    %1686 = vmatpush1.msra.mxu0 0.0
    %1687 = vmatprep.subr.mxu0 0.0
    %1688 = vmatpush1.msra.mxu0 0.0
    %1689 = vmatprep.subr.mxu0 0.0
    %1690 = vmatpush1.msra.mxu0 0.0
    %1691 = vmatprep.subr.mxu0 0.0
    %1692 = vmatpush1.msra.mxu0 0.0
    %1693 = vmatprep.subr.mxu0 0.0
    %1694 = vmatpush1.msra.mxu0 0.0
    %1695 = vmatprep.subr.mxu0 0.0
    %1696 = vmatpush1.msra.mxu0 0.0
    %1697 = vmatprep.subr.mxu0 0.0
    %1698 = vmatpush1.msra.mxu0 0.0
    %1699 = vmatprep.subr.mxu0 0.0
    %1700 = vmatpush1.msra.mxu0 0.0
    %1701 = vmatprep.subr.mxu0 0.0
    %1702 = vmatpush1.msra.mxu0 0.0
    %1703 = vmatprep.subr.mxu0 0.0
    %1704 = vmatpush1.msra.mxu0 0.0
    %1705 = vmatprep.subr.mxu0 0.0
    %1706 = vmatpush1.msra.mxu0 0.0
    %1707 = vmatprep.subr.mxu0 0.0
    %1708 = vmatpush1.msra.mxu0 0.0
    %1709 = vmatprep.subr.mxu0 0.0
    %1710 = vmatpush1.msra.mxu0 0.0
    %1711 = vmatprep.subr.mxu0 0.0
    %1712 = vmatpush1.msra.mxu0 0.0
    %1713 = vmatprep.mubr.f32.mxu0 0.0
    %1714 = vmatmul.mubr.f32.gmra.mrb[0].mxu0 %v1647
    %v1715 = vpop.f32.mrb[0].mxu0
    %v1716 = vadd.f32 %v527, %v1715
    %v1717 = vpop.f32.mrb[0].mxu0
    %1718 = vdwg.mxu0
    %1719 = vmatprep.subr.mxu0 0.0
    %1720 = vmatpush1.msra.mxu0 %v491
    %1721 = vmatprep.subr.mxu0 0.0
    %1722 = vmatpush1.msra.mxu0 %v492
    %1723 = vmatprep.subr.mxu0 0.0
    %1724 = vmatpush1.msra.mxu0 %v493
    %1725 = vmatprep.subr.mxu0 0.0
    %1726 = vmatpush1.msra.mxu0 %v494
    %1727 = vmatprep.subr.mxu0 0.0
    %1728 = vmatpush1.msra.mxu0 %v495
    %1729 = vmatprep.subr.mxu0 0.0
    %1730 = vmatpush1.msra.mxu0 %v496
    %1731 = vmatprep.subr.mxu0 0.0
    %1732 = vmatpush1.msra.mxu0 %v497
    %1733 = vmatprep.subr.mxu0 0.0
    %1734 = vmatpush1.msra.mxu0 %v498
    %1735 = vmatprep.subr.mxu0 0.0
    %1736 = vmatpush1.msra.mxu0 %v499
    %1737 = vmatprep.subr.mxu0 0.0
    %1738 = vmatpush1.msra.mxu0 %v500
    %1739 = vmatprep.subr.mxu0 0.0
    %1740 = vmatpush1.msra.mxu0 %v501
    %1741 = vmatprep.subr.mxu0 0.0
    %1742 = vmatpush1.msra.mxu0 %v502
    %1743 = vmatprep.subr.mxu0 0.0
    %1744 = vmatpush1.msra.mxu0 %v503
    %1745 = vmatprep.subr.mxu0 0.0
    %1746 = vmatpush1.msra.mxu0 %v504
    %1747 = vmatprep.subr.mxu0 0.0
    %1748 = vmatpush1.msra.mxu0 %v505
    %1749 = vmatprep.subr.mxu0 0.0
    %1750 = vmatpush1.msra.mxu0 %v506
    %1751 = vmatprep.subr.mxu0 0.0
    %1752 = vmatpush1.msra.mxu0 0.0
    %1753 = vmatprep.subr.mxu0 0.0
    %1754 = vmatpush1.msra.mxu0 0.0
    %1755 = vmatprep.subr.mxu0 0.0
    %1756 = vmatpush1.msra.mxu0 0.0
    %1757 = vmatprep.subr.mxu0 0.0
    %1758 = vmatpush1.msra.mxu0 0.0
    %1759 = vmatprep.subr.mxu0 0.0
    %1760 = vmatpush1.msra.mxu0 0.0
    %1761 = vmatprep.subr.mxu0 0.0
    %1762 = vmatpush1.msra.mxu0 0.0
    %1763 = vmatprep.subr.mxu0 0.0
    %1764 = vmatpush1.msra.mxu0 0.0
    %1765 = vmatprep.subr.mxu0 0.0
    %1766 = vmatpush1.msra.mxu0 0.0
    %1767 = vmatprep.subr.mxu0 0.0
    %1768 = vmatpush1.msra.mxu0 0.0
    %1769 = vmatprep.subr.mxu0 0.0
    %1770 = vmatpush1.msra.mxu0 0.0
    %1771 = vmatprep.subr.mxu0 0.0
    %1772 = vmatpush1.msra.mxu0 0.0
    %1773 = vmatprep.subr.mxu0 0.0
    %1774 = vmatpush1.msra.mxu0 0.0
    %1775 = vmatprep.subr.mxu0 0.0
    %1776 = vmatpush1.msra.mxu0 0.0
    %1777 = vmatprep.subr.mxu0 0.0
    %1778 = vmatpush1.msra.mxu0 0.0
    %1779 = vmatprep.subr.mxu0 0.0
    %1780 = vmatpush1.msra.mxu0 0.0
    %1781 = vmatprep.subr.mxu0 0.0
    %1782 = vmatpush1.msra.mxu0 0.0
    %1783 = vmatprep.mubr.f32.mxu0 0.0
    %1784 = vmatmul.mubr.f32.gmra.mrb[0].mxu0 %v1716
    %v1785 = vpop.f32.mrb[0].mxu0
    %v1786 = vadd.f32 0.0, %v1785
    %v1787 = vpop.f32.mrb[0].mxu0
    %1788 = vdwg.mxu0
    %v1789 = vsub.f32 %v1716, %v1786
    %v1790 = vmul.f32 %v1789, %v1789
    %1791 = vmatprep.subr.mxu0 0.0
    %1792 = vmatpush1.msra.mxu0 %v491
    %1793 = vmatprep.subr.mxu0 0.0
    %1794 = vmatpush1.msra.mxu0 %v492
    %1795 = vmatprep.subr.mxu0 0.0
    %1796 = vmatpush1.msra.mxu0 %v493
    %1797 = vmatprep.subr.mxu0 0.0
    %1798 = vmatpush1.msra.mxu0 %v494
    %1799 = vmatprep.subr.mxu0 0.0
    %1800 = vmatpush1.msra.mxu0 %v495
    %1801 = vmatprep.subr.mxu0 0.0
    %1802 = vmatpush1.msra.mxu0 %v496
    %1803 = vmatprep.subr.mxu0 0.0
    %1804 = vmatpush1.msra.mxu0 %v497
    %1805 = vmatprep.subr.mxu0 0.0
    %1806 = vmatpush1.msra.mxu0 %v498
    %1807 = vmatprep.subr.mxu0 0.0
    %1808 = vmatpush1.msra.mxu0 %v499
    %1809 = vmatprep.subr.mxu0 0.0
    %1810 = vmatpush1.msra.mxu0 %v500
    %1811 = vmatprep.subr.mxu0 0.0
    %1812 = vmatpush1.msra.mxu0 %v501
    %1813 = vmatprep.subr.mxu0 0.0
    %1814 = vmatpush1.msra.mxu0 %v502
    %1815 = vmatprep.subr.mxu0 0.0
    %1816 = vmatpush1.msra.mxu0 %v503
    %1817 = vmatprep.subr.mxu0 0.0
    %1818 = vmatpush1.msra.mxu0 %v504
    %1819 = vmatprep.subr.mxu0 0.0
    %1820 = vmatpush1.msra.mxu0 %v505
    %1821 = vmatprep.subr.mxu0 0.0
    %1822 = vmatpush1.msra.mxu0 %v506
    %1823 = vmatprep.subr.mxu0 0.0
    %1824 = vmatpush1.msra.mxu0 0.0
    %1825 = vmatprep.subr.mxu0 0.0
    %1826 = vmatpush1.msra.mxu0 0.0
    %1827 = vmatprep.subr.mxu0 0.0
    %1828 = vmatpush1.msra.mxu0 0.0
    %1829 = vmatprep.subr.mxu0 0.0
    %1830 = vmatpush1.msra.mxu0 0.0
    %1831 = vmatprep.subr.mxu0 0.0
    %1832 = vmatpush1.msra.mxu0 0.0
    %1833 = vmatprep.subr.mxu0 0.0
    %1834 = vmatpush1.msra.mxu0 0.0
    %1835 = vmatprep.subr.mxu0 0.0
    %1836 = vmatpush1.msra.mxu0 0.0
    %1837 = vmatprep.subr.mxu0 0.0
    %1838 = vmatpush1.msra.mxu0 0.0
    %1839 = vmatprep.subr.mxu0 0.0
    %1840 = vmatpush1.msra.mxu0 0.0
    %1841 = vmatprep.subr.mxu0 0.0
    %1842 = vmatpush1.msra.mxu0 0.0
    %1843 = vmatprep.subr.mxu0 0.0
    %1844 = vmatpush1.msra.mxu0 0.0
    %1845 = vmatprep.subr.mxu0 0.0
    %1846 = vmatpush1.msra.mxu0 0.0
    %1847 = vmatprep.subr.mxu0 0.0
    %1848 = vmatpush1.msra.mxu0 0.0
    %1849 = vmatprep.subr.mxu0 0.0
    %1850 = vmatpush1.msra.mxu0 0.0
    %1851 = vmatprep.subr.mxu0 0.0
    %1852 = vmatpush1.msra.mxu0 0.0
    %1853 = vmatprep.subr.mxu0 0.0
    %1854 = vmatpush1.msra.mxu0 0.0
    %1855 = vmatprep.mubr.f32.mxu0 0.0
    %1856 = vmatmul.mubr.f32.gmra.mrb[0].mxu0 %v1790
    %v1857 = vpop.f32.mrb[0].mxu0
    %v1858 = vadd.f32 1e-05, %v1857
    %v1859 = vpop.f32.mrb[0].mxu0
    %1860 = vdwg.mxu0
    %v1861 = vrsqrt.pop %v1858
    %v1862 = vmul.f32 %v1789, %v1861
    %v1863 = vmul.f32 %v1862, %v753
    %v1864 = vadd.f32 %v1863, %v758
    %s1865 = scalar_lea.vmem %s0, 12
    %v1866 = vld [vmem:[%s1865] sm:$0x3]
    %v1868 = vsel %vm528, %v1866, 0
    %1870 = vmatprep.subr.mxu0 0.0
    %1871 = vmatpush1.msra.mxu0 %v534
    %1872 = vmatprep.subr.mxu0 0.0
    %1873 = vmatpush1.msra.mxu0 0.0
    %1874 = vmatprep.subr.mxu0 0.0
    %1875 = vmatpush1.msra.mxu0 0.0
    %1876 = vmatprep.subr.mxu0 0.0
    %1877 = vmatpush1.msra.mxu0 0.0
    %1878 = vmatprep.subr.mxu0 0.0
    %1879 = vmatpush1.msra.mxu0 0.0
    %1880 = vmatprep.subr.mxu0 0.0
    %1881 = vmatpush1.msra.mxu0 0.0
    %1882 = vmatprep.subr.mxu0 0.0
    %1883 = vmatpush1.msra.mxu0 0.0
    %1884 = vmatprep.subr.mxu0 0.0
    %1885 = vmatpush1.msra.mxu0 0.0
    %1886 = vmatprep.subr.mxu0 0.0
    %1887 = vmatpush1.msra.mxu0 0.0
    %1888 = vmatprep.subr.mxu0 0.0
    %1889 = vmatpush1.msra.mxu0 0.0
    %1890 = vmatprep.subr.mxu0 0.0
    %1891 = vmatpush1.msra.mxu0 0.0
    %1892 = vmatprep.subr.mxu0 0.0
    %1893 = vmatpush1.msra.mxu0 0.0
    %1894 = vmatprep.subr.mxu0 0.0
    %1895 = vmatpush1.msra.mxu0 0.0
    %1896 = vmatprep.subr.mxu0 0.0
    %1897 = vmatpush1.msra.mxu0 0.0
    %1898 = vmatprep.subr.mxu0 0.0
    %1899 = vmatpush1.msra.mxu0 0.0
    %1900 = vmatprep.subr.mxu0 0.0
    %1901 = vmatpush1.msra.mxu0 0.0
    %1902 = vmatprep.subr.mxu0 0.0
    %1903 = vmatpush1.msra.mxu0 0.0
    %1904 = vmatprep.subr.mxu0 0.0
    %1905 = vmatpush1.msra.mxu0 0.0
    %1906 = vmatprep.subr.mxu0 0.0
    %1907 = vmatpush1.msra.mxu0 0.0
    %1908 = vmatprep.subr.mxu0 0.0
    %1909 = vmatpush1.msra.mxu0 0.0
    %1910 = vmatprep.subr.mxu0 0.0
    %1911 = vmatpush1.msra.mxu0 0.0
    %1912 = vmatprep.subr.mxu0 0.0
    %1913 = vmatpush1.msra.mxu0 0.0
    %1914 = vmatprep.subr.mxu0 0.0
    %1915 = vmatpush1.msra.mxu0 0.0
    %1916 = vmatprep.subr.mxu0 0.0
    %1917 = vmatpush1.msra.mxu0 0.0
    %1918 = vmatprep.subr.mxu0 0.0
    %1919 = vmatpush1.msra.mxu0 0.0
    %1920 = vmatprep.subr.mxu0 0.0
    %1921 = vmatpush1.msra.mxu0 0.0
    %1922 = vmatprep.subr.mxu0 0.0
    %1923 = vmatpush1.msra.mxu0 0.0
    %1924 = vmatprep.subr.mxu0 0.0
    %1925 = vmatpush1.msra.mxu0 0.0
    %1926 = vmatprep.subr.mxu0 0.0
    %1927 = vmatpush1.msra.mxu0 0.0
    %1928 = vmatprep.subr.mxu0 0.0
    %1929 = vmatpush1.msra.mxu0 0.0
    %1930 = vmatprep.subr.mxu0 0.0
    %1931 = vmatpush1.msra.mxu0 0.0
    %1932 = vmatprep.subr.mxu0 0.0
    %1933 = vmatpush1.msra.mxu0 0.0
    %1934 = vmatprep.mubr.f32.mxu0 0.0
    %1935 = vmatmul.mubr.f32.gmra.mrb[0].mxu0 %v1868
    %v1936 = vpop.f32.mrb[0].mxu0
    %v1937 = vadd.f32 %v527, %v1936
    %v1938 = vpop.f32.mrb[0].mxu0
    %1939 = vdwg.mxu0
    %1940 = vmatprep.subr.mxu0 0.0
    %1941 = vmatpush1.msra.mxu0 %v491
    %1942 = vmatprep.subr.mxu0 0.0
    %1943 = vmatpush1.msra.mxu0 %v492
    %1944 = vmatprep.subr.mxu0 0.0
    %1945 = vmatpush1.msra.mxu0 %v493
    %1946 = vmatprep.subr.mxu0 0.0
    %1947 = vmatpush1.msra.mxu0 %v494
    %1948 = vmatprep.subr.mxu0 0.0
    %1949 = vmatpush1.msra.mxu0 %v495
    %1950 = vmatprep.subr.mxu0 0.0
    %1951 = vmatpush1.msra.mxu0 %v496
    %1952 = vmatprep.subr.mxu0 0.0
    %1953 = vmatpush1.msra.mxu0 %v497
    %1954 = vmatprep.subr.mxu0 0.0
    %1955 = vmatpush1.msra.mxu0 %v498
    %1956 = vmatprep.subr.mxu0 0.0
    %1957 = vmatpush1.msra.mxu0 %v499
    %1958 = vmatprep.subr.mxu0 0.0
    %1959 = vmatpush1.msra.mxu0 %v500
    %1960 = vmatprep.subr.mxu0 0.0
    %1961 = vmatpush1.msra.mxu0 %v501
    %1962 = vmatprep.subr.mxu0 0.0
    %1963 = vmatpush1.msra.mxu0 %v502
    %1964 = vmatprep.subr.mxu0 0.0
    %1965 = vmatpush1.msra.mxu0 %v503
    %1966 = vmatprep.subr.mxu0 0.0
    %1967 = vmatpush1.msra.mxu0 %v504
    %1968 = vmatprep.subr.mxu0 0.0
    %1969 = vmatpush1.msra.mxu0 %v505
    %1970 = vmatprep.subr.mxu0 0.0
    %1971 = vmatpush1.msra.mxu0 %v506
    %1972 = vmatprep.subr.mxu0 0.0
    %1973 = vmatpush1.msra.mxu0 0.0
    %1974 = vmatprep.subr.mxu0 0.0
    %1975 = vmatpush1.msra.mxu0 0.0
    %1976 = vmatprep.subr.mxu0 0.0
    %1977 = vmatpush1.msra.mxu0 0.0
    %1978 = vmatprep.subr.mxu0 0.0
    %1979 = vmatpush1.msra.mxu0 0.0
    %1980 = vmatprep.subr.mxu0 0.0
    %1981 = vmatpush1.msra.mxu0 0.0
    %1982 = vmatprep.subr.mxu0 0.0
    %1983 = vmatpush1.msra.mxu0 0.0
    %1984 = vmatprep.subr.mxu0 0.0
    %1985 = vmatpush1.msra.mxu0 0.0
    %1986 = vmatprep.subr.mxu0 0.0
    %1987 = vmatpush1.msra.mxu0 0.0
    %1988 = vmatprep.subr.mxu0 0.0
    %1989 = vmatpush1.msra.mxu0 0.0
    %1990 = vmatprep.subr.mxu0 0.0
    %1991 = vmatpush1.msra.mxu0 0.0
    %1992 = vmatprep.subr.mxu0 0.0
    %1993 = vmatpush1.msra.mxu0 0.0
    %1994 = vmatprep.subr.mxu0 0.0
    %1995 = vmatpush1.msra.mxu0 0.0
    %1996 = vmatprep.subr.mxu0 0.0
    %1997 = vmatpush1.msra.mxu0 0.0
    %1998 = vmatprep.subr.mxu0 0.0
    %1999 = vmatpush1.msra.mxu0 0.0
    %2000 = vmatprep.subr.mxu0 0.0
    %2001 = vmatpush1.msra.mxu0 0.0
    %2002 = vmatprep.subr.mxu0 0.0
    %2003 = vmatpush1.msra.mxu0 0.0
    %2004 = vmatprep.mubr.f32.mxu0 0.0
    %2005 = vmatmul.mubr.f32.gmra.mrb[0].mxu0 %v1937
    %v2006 = vpop.f32.mrb[0].mxu0
    %v2007 = vadd.f32 0.0, %v2006
    %v2008 = vpop.f32.mrb[0].mxu0
    %2009 = vdwg.mxu0
    %v2010 = vsub.f32 %v1937, %v2007
    %v2011 = vmul.f32 %v2010, %v2010
    %2012 = vmatprep.subr.mxu0 0.0
    %2013 = vmatpush1.msra.mxu0 %v491
    %2014 = vmatprep.subr.mxu0 0.0
    %2015 = vmatpush1.msra.mxu0 %v492
    %2016 = vmatprep.subr.mxu0 0.0
    %2017 = vmatpush1.msra.mxu0 %v493
    %2018 = vmatprep.subr.mxu0 0.0
    %2019 = vmatpush1.msra.mxu0 %v494
    %2020 = vmatprep.subr.mxu0 0.0
    %2021 = vmatpush1.msra.mxu0 %v495
    %2022 = vmatprep.subr.mxu0 0.0
    %2023 = vmatpush1.msra.mxu0 %v496
    %2024 = vmatprep.subr.mxu0 0.0
    %2025 = vmatpush1.msra.mxu0 %v497
    %2026 = vmatprep.subr.mxu0 0.0
    %2027 = vmatpush1.msra.mxu0 %v498
    %2028 = vmatprep.subr.mxu0 0.0
    %2029 = vmatpush1.msra.mxu0 %v499
    %2030 = vmatprep.subr.mxu0 0.0
    %2031 = vmatpush1.msra.mxu0 %v500
    %2032 = vmatprep.subr.mxu0 0.0
    %2033 = vmatpush1.msra.mxu0 %v501
    %2034 = vmatprep.subr.mxu0 0.0
    %2035 = vmatpush1.msra.mxu0 %v502
    %2036 = vmatprep.subr.mxu0 0.0
    %2037 = vmatpush1.msra.mxu0 %v503
    %2038 = vmatprep.subr.mxu0 0.0
    %2039 = vmatpush1.msra.mxu0 %v504
    %2040 = vmatprep.subr.mxu0 0.0
    %2041 = vmatpush1.msra.mxu0 %v505
    %2042 = vmatprep.subr.mxu0 0.0
    %2043 = vmatpush1.msra.mxu0 %v506
    %2044 = vmatprep.subr.mxu0 0.0
    %2045 = vmatpush1.msra.mxu0 0.0
    %2046 = vmatprep.subr.mxu0 0.0
    %2047 = vmatpush1.msra.mxu0 0.0
    %2048 = vmatprep.subr.mxu0 0.0
    %2049 = vmatpush1.msra.mxu0 0.0
    %2050 = vmatprep.subr.mxu0 0.0
    %2051 = vmatpush1.msra.mxu0 0.0
    %2052 = vmatprep.subr.mxu0 0.0
    %2053 = vmatpush1.msra.mxu0 0.0
    %2054 = vmatprep.subr.mxu0 0.0
    %2055 = vmatpush1.msra.mxu0 0.0
    %2056 = vmatprep.subr.mxu0 0.0
    %2057 = vmatpush1.msra.mxu0 0.0
    %2058 = vmatprep.subr.mxu0 0.0
    %2059 = vmatpush1.msra.mxu0 0.0
    %2060 = vmatprep.subr.mxu0 0.0
    %2061 = vmatpush1.msra.mxu0 0.0
    %2062 = vmatprep.subr.mxu0 0.0
    %2063 = vmatpush1.msra.mxu0 0.0
    %2064 = vmatprep.subr.mxu0 0.0
    %2065 = vmatpush1.msra.mxu0 0.0
    %2066 = vmatprep.subr.mxu0 0.0
    %2067 = vmatpush1.msra.mxu0 0.0
    %2068 = vmatprep.subr.mxu0 0.0
    %2069 = vmatpush1.msra.mxu0 0.0
    %2070 = vmatprep.subr.mxu0 0.0
    %2071 = vmatpush1.msra.mxu0 0.0
    %2072 = vmatprep.subr.mxu0 0.0
    %2073 = vmatpush1.msra.mxu0 0.0
    %2074 = vmatprep.subr.mxu0 0.0
    %2075 = vmatpush1.msra.mxu0 0.0
    %2076 = vmatprep.mubr.f32.mxu0 0.0
    %2077 = vmatmul.mubr.f32.gmra.mrb[0].mxu0 %v2011
    %v2078 = vpop.f32.mrb[0].mxu0
    %v2079 = vadd.f32 1e-05, %v2078
    %v2080 = vpop.f32.mrb[0].mxu0
    %2081 = vdwg.mxu0
    %v2082 = vrsqrt.pop %v2079
    %v2083 = vmul.f32 %v2010, %v2082
    %v2084 = vmul.f32 %v2083, %v753
    %v2085 = vadd.f32 %v2084, %v758
    %s2086 = scalar_lea.vmem %s0, 14
    %v2087 = vld [vmem:[%s2086] sm:$0x3]
    %v2089 = vsel %vm528, %v2087, 0
    %2091 = vmatprep.subr.mxu0 0.0
    %2092 = vmatpush1.msra.mxu0 %v534
    %2093 = vmatprep.subr.mxu0 0.0
    %2094 = vmatpush1.msra.mxu0 0.0
    %2095 = vmatprep.subr.mxu0 0.0
    %2096 = vmatpush1.msra.mxu0 0.0
    %2097 = vmatprep.subr.mxu0 0.0
    %2098 = vmatpush1.msra.mxu0 0.0
    %2099 = vmatprep.subr.mxu0 0.0
    %2100 = vmatpush1.msra.mxu0 0.0
    %2101 = vmatprep.subr.mxu0 0.0
    %2102 = vmatpush1.msra.mxu0 0.0
    %2103 = vmatprep.subr.mxu0 0.0
    %2104 = vmatpush1.msra.mxu0 0.0
    %2105 = vmatprep.subr.mxu0 0.0
    %2106 = vmatpush1.msra.mxu0 0.0
    %2107 = vmatprep.subr.mxu0 0.0
    %2108 = vmatpush1.msra.mxu0 0.0
    %2109 = vmatprep.subr.mxu0 0.0
    %2110 = vmatpush1.msra.mxu0 0.0
    %2111 = vmatprep.subr.mxu0 0.0
    %2112 = vmatpush1.msra.mxu0 0.0
    %2113 = vmatprep.subr.mxu0 0.0
    %2114 = vmatpush1.msra.mxu0 0.0
    %2115 = vmatprep.subr.mxu0 0.0
    %2116 = vmatpush1.msra.mxu0 0.0
    %2117 = vmatprep.subr.mxu0 0.0
    %2118 = vmatpush1.msra.mxu0 0.0
    %2119 = vmatprep.subr.mxu0 0.0
    %2120 = vmatpush1.msra.mxu0 0.0
    %2121 = vmatprep.subr.mxu0 0.0
    %2122 = vmatpush1.msra.mxu0 0.0
    %2123 = vmatprep.subr.mxu0 0.0
    %2124 = vmatpush1.msra.mxu0 0.0
    %2125 = vmatprep.subr.mxu0 0.0
    %2126 = vmatpush1.msra.mxu0 0.0
    %2127 = vmatprep.subr.mxu0 0.0
    %2128 = vmatpush1.msra.mxu0 0.0
    %2129 = vmatprep.subr.mxu0 0.0
    %2130 = vmatpush1.msra.mxu0 0.0
    %2131 = vmatprep.subr.mxu0 0.0
    %2132 = vmatpush1.msra.mxu0 0.0
    %2133 = vmatprep.subr.mxu0 0.0
    %2134 = vmatpush1.msra.mxu0 0.0
    %2135 = vmatprep.subr.mxu0 0.0
    %2136 = vmatpush1.msra.mxu0 0.0
    %2137 = vmatprep.subr.mxu0 0.0
    %2138 = vmatpush1.msra.mxu0 0.0
    %2139 = vmatprep.subr.mxu0 0.0
    %2140 = vmatpush1.msra.mxu0 0.0
    %2141 = vmatprep.subr.mxu0 0.0
    %2142 = vmatpush1.msra.mxu0 0.0
    %2143 = vmatprep.subr.mxu0 0.0
    %2144 = vmatpush1.msra.mxu0 0.0
    %2145 = vmatprep.subr.mxu0 0.0
    %2146 = vmatpush1.msra.mxu0 0.0
    %2147 = vmatprep.subr.mxu0 0.0
    %2148 = vmatpush1.msra.mxu0 0.0
    %2149 = vmatprep.subr.mxu0 0.0
    %2150 = vmatpush1.msra.mxu0 0.0
    %2151 = vmatprep.subr.mxu0 0.0
    %2152 = vmatpush1.msra.mxu0 0.0
    %2153 = vmatprep.subr.mxu0 0.0
    %2154 = vmatpush1.msra.mxu0 0.0
    %2155 = vmatprep.mubr.f32.mxu0 0.0
    %2156 = vmatmul.mubr.f32.gmra.mrb[0].mxu0 %v2089
    %v2157 = vpop.f32.mrb[0].mxu0
    %v2158 = vadd.f32 %v527, %v2157
    %v2159 = vpop.f32.mrb[0].mxu0
    %2160 = vdwg.mxu0
    %2161 = vmatprep.subr.mxu0 0.0
    %2162 = vmatpush1.msra.mxu0 %v491
    %2163 = vmatprep.subr.mxu0 0.0
    %2164 = vmatpush1.msra.mxu0 %v492
    %2165 = vmatprep.subr.mxu0 0.0
    %2166 = vmatpush1.msra.mxu0 %v493
    %2167 = vmatprep.subr.mxu0 0.0
    %2168 = vmatpush1.msra.mxu0 %v494
    %2169 = vmatprep.subr.mxu0 0.0
    %2170 = vmatpush1.msra.mxu0 %v495
    %2171 = vmatprep.subr.mxu0 0.0
    %2172 = vmatpush1.msra.mxu0 %v496
    %2173 = vmatprep.subr.mxu0 0.0
    %2174 = vmatpush1.msra.mxu0 %v497
    %2175 = vmatprep.subr.mxu0 0.0
    %2176 = vmatpush1.msra.mxu0 %v498
    %2177 = vmatprep.subr.mxu0 0.0
    %2178 = vmatpush1.msra.mxu0 %v499
    %2179 = vmatprep.subr.mxu0 0.0
    %2180 = vmatpush1.msra.mxu0 %v500
    %2181 = vmatprep.subr.mxu0 0.0
    %2182 = vmatpush1.msra.mxu0 %v501
    %2183 = vmatprep.subr.mxu0 0.0
    %2184 = vmatpush1.msra.mxu0 %v502
    %2185 = vmatprep.subr.mxu0 0.0
    %2186 = vmatpush1.msra.mxu0 %v503
    %2187 = vmatprep.subr.mxu0 0.0
    %2188 = vmatpush1.msra.mxu0 %v504
    %2189 = vmatprep.subr.mxu0 0.0
    %2190 = vmatpush1.msra.mxu0 %v505
    %2191 = vmatprep.subr.mxu0 0.0
    %2192 = vmatpush1.msra.mxu0 %v506
    %2193 = vmatprep.subr.mxu0 0.0
    %2194 = vmatpush1.msra.mxu0 0.0
    %2195 = vmatprep.subr.mxu0 0.0
    %2196 = vmatpush1.msra.mxu0 0.0
    %2197 = vmatprep.subr.mxu0 0.0
    %2198 = vmatpush1.msra.mxu0 0.0
    %2199 = vmatprep.subr.mxu0 0.0
    %2200 = vmatpush1.msra.mxu0 0.0
    %2201 = vmatprep.subr.mxu0 0.0
    %2202 = vmatpush1.msra.mxu0 0.0
    %2203 = vmatprep.subr.mxu0 0.0
    %2204 = vmatpush1.msra.mxu0 0.0
    %2205 = vmatprep.subr.mxu0 0.0
    %2206 = vmatpush1.msra.mxu0 0.0
    %2207 = vmatprep.subr.mxu0 0.0
    %2208 = vmatpush1.msra.mxu0 0.0
    %2209 = vmatprep.subr.mxu0 0.0
    %2210 = vmatpush1.msra.mxu0 0.0
    %2211 = vmatprep.subr.mxu0 0.0
    %2212 = vmatpush1.msra.mxu0 0.0
    %2213 = vmatprep.subr.mxu0 0.0
    %2214 = vmatpush1.msra.mxu0 0.0
    %2215 = vmatprep.subr.mxu0 0.0
    %2216 = vmatpush1.msra.mxu0 0.0
    %2217 = vmatprep.subr.mxu0 0.0
    %2218 = vmatpush1.msra.mxu0 0.0
    %2219 = vmatprep.subr.mxu0 0.0
    %2220 = vmatpush1.msra.mxu0 0.0
    %2221 = vmatprep.subr.mxu0 0.0
    %2222 = vmatpush1.msra.mxu0 0.0
    %2223 = vmatprep.subr.mxu0 0.0
    %2224 = vmatpush1.msra.mxu0 0.0
    %2225 = vmatprep.mubr.f32.mxu0 0.0
    %2226 = vmatmul.mubr.f32.gmra.mrb[0].mxu0 %v2158
    %v2227 = vpop.f32.mrb[0].mxu0
    %v2228 = vadd.f32 0.0, %v2227
    %v2229 = vpop.f32.mrb[0].mxu0
    %2230 = vdwg.mxu0
    %v2231 = vsub.f32 %v2158, %v2228
    %v2232 = vmul.f32 %v2231, %v2231
    %2233 = vmatprep.subr.mxu0 0.0
    %2234 = vmatpush1.msra.mxu0 %v491
    %2235 = vmatprep.subr.mxu0 0.0
    %2236 = vmatpush1.msra.mxu0 %v492
    %2237 = vmatprep.subr.mxu0 0.0
    %2238 = vmatpush1.msra.mxu0 %v493
    %2239 = vmatprep.subr.mxu0 0.0
    %2240 = vmatpush1.msra.mxu0 %v494
    %2241 = vmatprep.subr.mxu0 0.0
    %2242 = vmatpush1.msra.mxu0 %v495
    %2243 = vmatprep.subr.mxu0 0.0
    %2244 = vmatpush1.msra.mxu0 %v496
    %2245 = vmatprep.subr.mxu0 0.0
    %2246 = vmatpush1.msra.mxu0 %v497
    %2247 = vmatprep.subr.mxu0 0.0
    %2248 = vmatpush1.msra.mxu0 %v498
    %2249 = vmatprep.subr.mxu0 0.0
    %2250 = vmatpush1.msra.mxu0 %v499
    %2251 = vmatprep.subr.mxu0 0.0
    %2252 = vmatpush1.msra.mxu0 %v500
    %2253 = vmatprep.subr.mxu0 0.0
    %2254 = vmatpush1.msra.mxu0 %v501
    %2255 = vmatprep.subr.mxu0 0.0
    %2256 = vmatpush1.msra.mxu0 %v502
    %2257 = vmatprep.subr.mxu0 0.0
    %2258 = vmatpush1.msra.mxu0 %v503
    %2259 = vmatprep.subr.mxu0 0.0
    %2260 = vmatpush1.msra.mxu0 %v504
    %2261 = vmatprep.subr.mxu0 0.0
    %2262 = vmatpush1.msra.mxu0 %v505
    %2263 = vmatprep.subr.mxu0 0.0
    %2264 = vmatpush1.msra.mxu0 %v506
    %2265 = vmatprep.subr.mxu0 0.0
    %2266 = vmatpush1.msra.mxu0 0.0
    %2267 = vmatprep.subr.mxu0 0.0
    %2268 = vmatpush1.msra.mxu0 0.0
    %2269 = vmatprep.subr.mxu0 0.0
    %2270 = vmatpush1.msra.mxu0 0.0
    %2271 = vmatprep.subr.mxu0 0.0
    %2272 = vmatpush1.msra.mxu0 0.0
    %2273 = vmatprep.subr.mxu0 0.0
    %2274 = vmatpush1.msra.mxu0 0.0
    %2275 = vmatprep.subr.mxu0 0.0
    %2276 = vmatpush1.msra.mxu0 0.0
    %2277 = vmatprep.subr.mxu0 0.0
    %2278 = vmatpush1.msra.mxu0 0.0
    %2279 = vmatprep.subr.mxu0 0.0
    %2280 = vmatpush1.msra.mxu0 0.0
    %2281 = vmatprep.subr.mxu0 0.0
    %2282 = vmatpush1.msra.mxu0 0.0
    %2283 = vmatprep.subr.mxu0 0.0
    %2284 = vmatpush1.msra.mxu0 0.0
    %2285 = vmatprep.subr.mxu0 0.0
    %2286 = vmatpush1.msra.mxu0 0.0
    %2287 = vmatprep.subr.mxu0 0.0
    %2288 = vmatpush1.msra.mxu0 0.0
    %2289 = vmatprep.subr.mxu0 0.0
    %2290 = vmatpush1.msra.mxu0 0.0
    %2291 = vmatprep.subr.mxu0 0.0
    %2292 = vmatpush1.msra.mxu0 0.0
    %2293 = vmatprep.subr.mxu0 0.0
    %2294 = vmatpush1.msra.mxu0 0.0
    %2295 = vmatprep.subr.mxu0 0.0
    %2296 = vmatpush1.msra.mxu0 0.0
    %2297 = vmatprep.mubr.f32.mxu0 0.0
    %2298 = vmatmul.mubr.f32.gmra.mrb[0].mxu0 %v2232
    %v2299 = vpop.f32.mrb[0].mxu0
    %v2300 = vadd.f32 1e-05, %v2299
    %v2301 = vpop.f32.mrb[0].mxu0
    %2302 = vdwg.mxu0
    %v2303 = vrsqrt.pop %v2300
    %v2304 = vmul.f32 %v2231, %v2303
    %v2305 = vmul.f32 %v2304, %v753
    %v2306 = vadd.f32 %v2305, %v758
    %v2307 = vlaneseq
    %v2308 = vshrl.u32 %v2307, 7
    %v2309 = vsub.s32 0, %v2308
    %v2310 = vrot.slane %v510, %v2309
    %vm2311 = vcmask 261120
    %v2313 = vsel %vm2311, 0.0, 0
    %2315 = vmatprep.subr.mxu0 0.0
    %2316 = vmatpush1.msra.mxu0 %v515
    %2317 = vmatprep.subr.mxu0 0.0
    %2318 = vmatpush1.msra.mxu0 %v516
    %2319 = vmatprep.subr.mxu0 0.0
    %2320 = vmatpush1.msra.mxu0 %v517
    %2321 = vmatprep.subr.mxu0 0.0
    %2322 = vmatpush1.msra.mxu0 %v518
    %2323 = vmatprep.subr.mxu0 0.0
    %2324 = vmatpush1.msra.mxu0 0.0
    %2325 = vmatprep.subr.mxu0 0.0
    %2326 = vmatpush1.msra.mxu0 0.0
    %2327 = vmatprep.subr.mxu0 0.0
    %2328 = vmatpush1.msra.mxu0 0.0
    %2329 = vmatprep.subr.mxu0 0.0
    %2330 = vmatpush1.msra.mxu0 0.0
    %2331 = vmatprep.subr.mxu0 0.0
    %2332 = vmatpush1.msra.mxu0 0.0
    %2333 = vmatprep.subr.mxu0 0.0
    %2334 = vmatpush1.msra.mxu0 0.0
    %2335 = vmatprep.subr.mxu0 0.0
    %2336 = vmatpush1.msra.mxu0 0.0
    %2337 = vmatprep.subr.mxu0 0.0
    %2338 = vmatpush1.msra.mxu0 0.0
    %2339 = vmatprep.subr.mxu0 0.0
    %2340 = vmatpush1.msra.mxu0 0.0
    %2341 = vmatprep.subr.mxu0 0.0
    %2342 = vmatpush1.msra.mxu0 0.0
    %2343 = vmatprep.subr.mxu0 0.0
    %2344 = vmatpush1.msra.mxu0 0.0
    %2345 = vmatprep.subr.mxu0 0.0
    %2346 = vmatpush1.msra.mxu0 0.0
    %2347 = vmatprep.subr.mxu0 0.0
    %2348 = vmatpush1.msra.mxu0 0.0
    %2349 = vmatprep.subr.mxu0 0.0
    %2350 = vmatpush1.msra.mxu0 0.0
    %2351 = vmatprep.subr.mxu0 0.0
    %2352 = vmatpush1.msra.mxu0 0.0
    %2353 = vmatprep.subr.mxu0 0.0
    %2354 = vmatpush1.msra.mxu0 0.0
    %2355 = vmatprep.subr.mxu0 0.0
    %2356 = vmatpush1.msra.mxu0 0.0
    %2357 = vmatprep.subr.mxu0 0.0
    %2358 = vmatpush1.msra.mxu0 0.0
    %2359 = vmatprep.subr.mxu0 0.0
    %2360 = vmatpush1.msra.mxu0 0.0
    %2361 = vmatprep.subr.mxu0 0.0
    %2362 = vmatpush1.msra.mxu0 0.0
    %2363 = vmatprep.subr.mxu0 0.0
    %2364 = vmatpush1.msra.mxu0 0.0
    %2365 = vmatprep.subr.mxu0 0.0
    %2366 = vmatpush1.msra.mxu0 0.0
    %2367 = vmatprep.subr.mxu0 0.0
    %2368 = vmatpush1.msra.mxu0 0.0
    %2369 = vmatprep.subr.mxu0 0.0
    %2370 = vmatpush1.msra.mxu0 0.0
    %2371 = vmatprep.subr.mxu0 0.0
    %2372 = vmatpush1.msra.mxu0 0.0
    %2373 = vmatprep.subr.mxu0 0.0
    %2374 = vmatpush1.msra.mxu0 0.0
    %2375 = vmatprep.subr.mxu0 0.0
    %2376 = vmatpush1.msra.mxu0 0.0
    %2377 = vmatprep.subr.mxu0 0.0
    %2378 = vmatpush1.msra.mxu0 0.0
    %2379 = vmatprep.mubr.f32.mxu0 0.0
    %2380 = vmatmul.mubr.f32.gmra.mrb[0].mxu0 %v2313
    %v2381 = vpop.f32.mrb[0].mxu0
    %v2382 = vadd.f32 %v2310, %v2381
    %v2383 = vpop.f32.mrb[0].mxu0
    %2384 = vdwg.mxu0
    %2385 = vmatprep.subr.mxu0 0.0
    %2386 = vmatpush1.msra.mxu0 %v491
    %2387 = vmatprep.subr.mxu0 0.0
    %2388 = vmatpush1.msra.mxu0 %v492
    %2389 = vmatprep.subr.mxu0 0.0
    %2390 = vmatpush1.msra.mxu0 %v493
    %2391 = vmatprep.subr.mxu0 0.0
    %2392 = vmatpush1.msra.mxu0 %v494
    %2393 = vmatprep.subr.mxu0 0.0
    %2394 = vmatpush1.msra.mxu0 %v495
    %2395 = vmatprep.subr.mxu0 0.0
    %2396 = vmatpush1.msra.mxu0 %v496
    %2397 = vmatprep.subr.mxu0 0.0
    %2398 = vmatpush1.msra.mxu0 %v497
    %2399 = vmatprep.subr.mxu0 0.0
    %2400 = vmatpush1.msra.mxu0 %v498
    %2401 = vmatprep.subr.mxu0 0.0
    %2402 = vmatpush1.msra.mxu0 %v499
    %2403 = vmatprep.subr.mxu0 0.0
    %2404 = vmatpush1.msra.mxu0 %v500
    %2405 = vmatprep.subr.mxu0 0.0
    %2406 = vmatpush1.msra.mxu0 %v501
    %2407 = vmatprep.subr.mxu0 0.0
    %2408 = vmatpush1.msra.mxu0 %v502
    %2409 = vmatprep.subr.mxu0 0.0
    %2410 = vmatpush1.msra.mxu0 %v503
    %2411 = vmatprep.subr.mxu0 0.0
    %2412 = vmatpush1.msra.mxu0 %v504
    %2413 = vmatprep.subr.mxu0 0.0
    %2414 = vmatpush1.msra.mxu0 %v505
    %2415 = vmatprep.subr.mxu0 0.0
    %2416 = vmatpush1.msra.mxu0 %v506
    %2417 = vmatprep.subr.mxu0 0.0
    %2418 = vmatpush1.msra.mxu0 0.0
    %2419 = vmatprep.subr.mxu0 0.0
    %2420 = vmatpush1.msra.mxu0 0.0
    %2421 = vmatprep.subr.mxu0 0.0
    %2422 = vmatpush1.msra.mxu0 0.0
    %2423 = vmatprep.subr.mxu0 0.0
    %2424 = vmatpush1.msra.mxu0 0.0
    %2425 = vmatprep.subr.mxu0 0.0
    %2426 = vmatpush1.msra.mxu0 0.0
    %2427 = vmatprep.subr.mxu0 0.0
    %2428 = vmatpush1.msra.mxu0 0.0
    %2429 = vmatprep.subr.mxu0 0.0
    %2430 = vmatpush1.msra.mxu0 0.0
    %2431 = vmatprep.subr.mxu0 0.0
    %2432 = vmatpush1.msra.mxu0 0.0
    %2433 = vmatprep.subr.mxu0 0.0
    %2434 = vmatpush1.msra.mxu0 0.0
    %2435 = vmatprep.subr.mxu0 0.0
    %2436 = vmatpush1.msra.mxu0 0.0
    %2437 = vmatprep.subr.mxu0 0.0
    %2438 = vmatpush1.msra.mxu0 0.0
    %2439 = vmatprep.subr.mxu0 0.0
    %2440 = vmatpush1.msra.mxu0 0.0
    %2441 = vmatprep.subr.mxu0 0.0
    %2442 = vmatpush1.msra.mxu0 0.0
    %2443 = vmatprep.subr.mxu0 0.0
    %2444 = vmatpush1.msra.mxu0 0.0
    %2445 = vmatprep.subr.mxu0 0.0
    %2446 = vmatpush1.msra.mxu0 0.0
    %2447 = vmatprep.subr.mxu0 0.0
    %2448 = vmatpush1.msra.mxu0 0.0
    %2449 = vmatprep.mubr.f32.mxu0 0.0
    %2450 = vmatmul.mubr.f32.gmra.mrb[0].mxu0 %v2382
    %v2451 = vpop.f32.mrb[0].mxu0
    %v2452 = vadd.f32 0.0, %v2451
    %v2453 = vpop.f32.mrb[0].mxu0
    %2454 = vdwg.mxu0
    %v2455 = vsub.f32 %v2382, %v2452
    %v2456 = vmul.f32 %v2455, %v2455
    %2457 = vmatprep.subr.mxu0 0.0
    %2458 = vmatpush1.msra.mxu0 %v491
    %2459 = vmatprep.subr.mxu0 0.0
    %2460 = vmatpush1.msra.mxu0 %v492
    %2461 = vmatprep.subr.mxu0 0.0
    %2462 = vmatpush1.msra.mxu0 %v493
    %2463 = vmatprep.subr.mxu0 0.0
    %2464 = vmatpush1.msra.mxu0 %v494
    %2465 = vmatprep.subr.mxu0 0.0
    %2466 = vmatpush1.msra.mxu0 %v495
    %2467 = vmatprep.subr.mxu0 0.0
    %2468 = vmatpush1.msra.mxu0 %v496
    %2469 = vmatprep.subr.mxu0 0.0
    %2470 = vmatpush1.msra.mxu0 %v497
    %2471 = vmatprep.subr.mxu0 0.0
    %2472 = vmatpush1.msra.mxu0 %v498
    %2473 = vmatprep.subr.mxu0 0.0
    %2474 = vmatpush1.msra.mxu0 %v499
    %2475 = vmatprep.subr.mxu0 0.0
    %2476 = vmatpush1.msra.mxu0 %v500
    %2477 = vmatprep.subr.mxu0 0.0
    %2478 = vmatpush1.msra.mxu0 %v501
    %2479 = vmatprep.subr.mxu0 0.0
    %2480 = vmatpush1.msra.mxu0 %v502
    %2481 = vmatprep.subr.mxu0 0.0
    %2482 = vmatpush1.msra.mxu0 %v503
    %2483 = vmatprep.subr.mxu0 0.0
    %2484 = vmatpush1.msra.mxu0 %v504
    %2485 = vmatprep.subr.mxu0 0.0
    %2486 = vmatpush1.msra.mxu0 %v505
    %2487 = vmatprep.subr.mxu0 0.0
    %2488 = vmatpush1.msra.mxu0 %v506
    %2489 = vmatprep.subr.mxu0 0.0
    %2490 = vmatpush1.msra.mxu0 0.0
    %2491 = vmatprep.subr.mxu0 0.0
    %2492 = vmatpush1.msra.mxu0 0.0
    %2493 = vmatprep.subr.mxu0 0.0
    %2494 = vmatpush1.msra.mxu0 0.0
    %2495 = vmatprep.subr.mxu0 0.0
    %2496 = vmatpush1.msra.mxu0 0.0
    %2497 = vmatprep.subr.mxu0 0.0
    %2498 = vmatpush1.msra.mxu0 0.0
    %2499 = vmatprep.subr.mxu0 0.0
    %2500 = vmatpush1.msra.mxu0 0.0
    %2501 = vmatprep.subr.mxu0 0.0
    %2502 = vmatpush1.msra.mxu0 0.0
    %2503 = vmatprep.subr.mxu0 0.0
    %2504 = vmatpush1.msra.mxu0 0.0
    %2505 = vmatprep.subr.mxu0 0.0
    %2506 = vmatpush1.msra.mxu0 0.0
    %2507 = vmatprep.subr.mxu0 0.0
    %2508 = vmatpush1.msra.mxu0 0.0
    %2509 = vmatprep.subr.mxu0 0.0
    %2510 = vmatpush1.msra.mxu0 0.0
    %2511 = vmatprep.subr.mxu0 0.0
    %2512 = vmatpush1.msra.mxu0 0.0
    %2513 = vmatprep.subr.mxu0 0.0
    %2514 = vmatpush1.msra.mxu0 0.0
    %2515 = vmatprep.subr.mxu0 0.0
    %2516 = vmatpush1.msra.mxu0 0.0
    %2517 = vmatprep.subr.mxu0 0.0
    %2518 = vmatpush1.msra.mxu0 0.0
    %2519 = vmatprep.subr.mxu0 0.0
    %2520 = vmatpush1.msra.mxu0 0.0
    %2521 = vmatprep.mubr.f32.mxu0 0.0
    %2522 = vmatmul.mubr.f32.gmra.mrb[0].mxu0 %v2456
    %v2523 = vpop.f32.mrb[0].mxu0
    %v2524 = vadd.f32 1e-05, %v2523
    %v2525 = vpop.f32.mrb[0].mxu0
    %2526 = vdwg.mxu0
    %v2527 = vrsqrt.pop %v2524
    %v2528 = vmul.f32 %v2455, %v2527
    %v2529 = vlaneseq
    %v2530 = vshrl.u32 %v2529, 7
    %v2531 = vsub.s32 0, %v2530
    %v2532 = vrot.slane %v511, %v2531
    %v2533 = vmul.f32 %v2528, %v2532
    %v2534 = vlaneseq
    %v2535 = vshrl.u32 %v2534, 7
    %v2536 = vsub.s32 0, %v2535
    %v2537 = vrot.slane %v512, %v2536
    %v2538 = vadd.f32 %v2533, %v2537
    %v2539 = vadd.f32 %v759, %v2538
    %v2540 = vxor.u32 %v2539, 2147483648
    %v2541 = vmul.f32 %v2540, 1.442695
    %v2542 = vpow.pop %v2541
    %v2543 = vadd.f32 %v2542, 1.0
    %v2544 = vrcp.pop %v2543
    %v2545 = vmul.f32 1.0, %v2544
    %v2546 = vtanh.pop %v2539
    %v2547 = vmul.f32 %v2545, 0.0
    %2549 = vrot.lane.b32.xlu0 %v2546, 64
    %v2550 = vpop.permute.xlu0 %2549
    %v2552 = vmul.f32 %v2545, %v2550
    %2554 = vrot.lane.b32.xlu0 %v2552, 96
    %v2555 = vpop.permute.xlu0 %2554
    %v2557 = vadd.f32 %v2547, %v2555
    %v2558 = vtanh.pop %v2557
    %2560 = vrot.lane.b32.xlu0 %v2558, 64
    %v2561 = vpop.permute.xlu0 %2560
    %v2563 = vmul.f32 %v2545, %v2561
    %2565 = vrot.lane.b32.xlu0 %v2563, 64
    %v2566 = vpop.permute.xlu0 %2565
    %v2567 = vsel %vm2311, %v2566, 0
    %2569 = vmatprep.subr.mxu0 0.0
    %2570 = vmatpush1.msra.mxu0 %v519
    %2571 = vmatprep.subr.mxu0 0.0
    %2572 = vmatpush1.msra.mxu0 %v520
    %2573 = vmatprep.subr.mxu0 0.0
    %2574 = vmatpush1.msra.mxu0 %v521
    %2575 = vmatprep.subr.mxu0 0.0
    %2576 = vmatpush1.msra.mxu0 %v522
    %2577 = vmatprep.subr.mxu0 0.0
    %2578 = vmatpush1.msra.mxu0 0.0
    %2579 = vmatprep.subr.mxu0 0.0
    %2580 = vmatpush1.msra.mxu0 0.0
    %2581 = vmatprep.subr.mxu0 0.0
    %2582 = vmatpush1.msra.mxu0 0.0
    %2583 = vmatprep.subr.mxu0 0.0
    %2584 = vmatpush1.msra.mxu0 0.0
    %2585 = vmatprep.subr.mxu0 0.0
    %2586 = vmatpush1.msra.mxu0 0.0
    %2587 = vmatprep.subr.mxu0 0.0
    %2588 = vmatpush1.msra.mxu0 0.0
    %2589 = vmatprep.subr.mxu0 0.0
    %2590 = vmatpush1.msra.mxu0 0.0
    %2591 = vmatprep.subr.mxu0 0.0
    %2592 = vmatpush1.msra.mxu0 0.0
    %2593 = vmatprep.subr.mxu0 0.0
    %2594 = vmatpush1.msra.mxu0 0.0
    %2595 = vmatprep.subr.mxu0 0.0
    %2596 = vmatpush1.msra.mxu0 0.0
    %2597 = vmatprep.subr.mxu0 0.0
    %2598 = vmatpush1.msra.mxu0 0.0
    %2599 = vmatprep.subr.mxu0 0.0
    %2600 = vmatpush1.msra.mxu0 0.0
    %2601 = vmatprep.subr.mxu0 0.0
    %2602 = vmatpush1.msra.mxu0 0.0
    %2603 = vmatprep.subr.mxu0 0.0
    %2604 = vmatpush1.msra.mxu0 0.0
    %2605 = vmatprep.subr.mxu0 0.0
    %2606 = vmatpush1.msra.mxu0 0.0
    %2607 = vmatprep.subr.mxu0 0.0
    %2608 = vmatpush1.msra.mxu0 0.0
    %2609 = vmatprep.subr.mxu0 0.0
    %2610 = vmatpush1.msra.mxu0 0.0
    %2611 = vmatprep.subr.mxu0 0.0
    %2612 = vmatpush1.msra.mxu0 0.0
    %2613 = vmatprep.subr.mxu0 0.0
    %2614 = vmatpush1.msra.mxu0 0.0
    %2615 = vmatprep.subr.mxu0 0.0
    %2616 = vmatpush1.msra.mxu0 0.0
    %2617 = vmatprep.subr.mxu0 0.0
    %2618 = vmatpush1.msra.mxu0 0.0
    %2619 = vmatprep.subr.mxu0 0.0
    %2620 = vmatpush1.msra.mxu0 0.0
    %2621 = vmatprep.subr.mxu0 0.0
    %2622 = vmatpush1.msra.mxu0 0.0
    %2623 = vmatprep.subr.mxu0 0.0
    %2624 = vmatpush1.msra.mxu0 0.0
    %2625 = vmatprep.subr.mxu0 0.0
    %2626 = vmatpush1.msra.mxu0 0.0
    %2627 = vmatprep.subr.mxu0 0.0
    %2628 = vmatpush1.msra.mxu0 0.0
    %2629 = vmatprep.subr.mxu0 0.0
    %2630 = vmatpush1.msra.mxu0 0.0
    %2631 = vmatprep.subr.mxu0 0.0
    %2632 = vmatpush1.msra.mxu0 0.0
    %2633 = vmatprep.mubr.f32.mxu0 0.0
    %2634 = vmatmul.mubr.f32.gmra.mrb[0].mxu0 %v2567
    %v2635 = vpop.f32.mrb[0].mxu0
    %v2636 = vadd.f32 0.0, %v2635
    %v2637 = vpop.f32.mrb[0].mxu0
    %2638 = vdwg.mxu0
    %vm2639 = vcmp.eq.s32.totalorder %v50, 0
    %v2640 = vsel %vm2639, 1, 0
    %v2641 = vcvt.s32.f32 %v2640
    %v2642 = vmul.f32 %v2636, %v2641
    %v2643 = vadd.f32 %v2642, 0.0
    %2644 = vmatprep.subr.mxu0 0.0
    %2645 = vmatpush1.msra.mxu0 %v515
    %2646 = vmatprep.subr.mxu0 0.0
    %2647 = vmatpush1.msra.mxu0 %v516
    %2648 = vmatprep.subr.mxu0 0.0
    %2649 = vmatpush1.msra.mxu0 %v517
    %2650 = vmatprep.subr.mxu0 0.0
    %2651 = vmatpush1.msra.mxu0 %v518
    %2652 = vmatprep.subr.mxu0 0.0
    %2653 = vmatpush1.msra.mxu0 0.0
    %2654 = vmatprep.subr.mxu0 0.0
    %2655 = vmatpush1.msra.mxu0 0.0
    %2656 = vmatprep.subr.mxu0 0.0
    %2657 = vmatpush1.msra.mxu0 0.0
    %2658 = vmatprep.subr.mxu0 0.0
    %2659 = vmatpush1.msra.mxu0 0.0
    %2660 = vmatprep.subr.mxu0 0.0
    %2661 = vmatpush1.msra.mxu0 0.0
    %2662 = vmatprep.subr.mxu0 0.0
    %2663 = vmatpush1.msra.mxu0 0.0
    %2664 = vmatprep.subr.mxu0 0.0
    %2665 = vmatpush1.msra.mxu0 0.0
    %2666 = vmatprep.subr.mxu0 0.0
    %2667 = vmatpush1.msra.mxu0 0.0
    %2668 = vmatprep.subr.mxu0 0.0
    %2669 = vmatpush1.msra.mxu0 0.0
    %2670 = vmatprep.subr.mxu0 0.0
    %2671 = vmatpush1.msra.mxu0 0.0
    %2672 = vmatprep.subr.mxu0 0.0
    %2673 = vmatpush1.msra.mxu0 0.0
    %2674 = vmatprep.subr.mxu0 0.0
    %2675 = vmatpush1.msra.mxu0 0.0
    %2676 = vmatprep.subr.mxu0 0.0
    %2677 = vmatpush1.msra.mxu0 0.0
    %2678 = vmatprep.subr.mxu0 0.0
    %2679 = vmatpush1.msra.mxu0 0.0
    %2680 = vmatprep.subr.mxu0 0.0
    %2681 = vmatpush1.msra.mxu0 0.0
    %2682 = vmatprep.subr.mxu0 0.0
    %2683 = vmatpush1.msra.mxu0 0.0
    %2684 = vmatprep.subr.mxu0 0.0
    %2685 = vmatpush1.msra.mxu0 0.0
    %2686 = vmatprep.subr.mxu0 0.0
    %2687 = vmatpush1.msra.mxu0 0.0
    %2688 = vmatprep.subr.mxu0 0.0
    %2689 = vmatpush1.msra.mxu0 0.0
    %2690 = vmatprep.subr.mxu0 0.0
    %2691 = vmatpush1.msra.mxu0 0.0
    %2692 = vmatprep.subr.mxu0 0.0
    %2693 = vmatpush1.msra.mxu0 0.0
    %2694 = vmatprep.subr.mxu0 0.0
    %2695 = vmatpush1.msra.mxu0 0.0
    %2696 = vmatprep.subr.mxu0 0.0
    %2697 = vmatpush1.msra.mxu0 0.0
    %2698 = vmatprep.subr.mxu0 0.0
    %2699 = vmatpush1.msra.mxu0 0.0
    %2700 = vmatprep.subr.mxu0 0.0
    %2701 = vmatpush1.msra.mxu0 0.0
    %2702 = vmatprep.subr.mxu0 0.0
    %2703 = vmatpush1.msra.mxu0 0.0
    %2704 = vmatprep.subr.mxu0 0.0
    %2705 = vmatpush1.msra.mxu0 0.0
    %2706 = vmatprep.subr.mxu0 0.0
    %2707 = vmatpush1.msra.mxu0 0.0
    %2708 = vmatprep.mubr.f32.mxu0 0.0
    %2709 = vmatmul.mubr.f32.gmra.mrb[0].mxu0 %v2567
    %v2710 = vpop.f32.mrb[0].mxu0
    %v2711 = vadd.f32 %v2310, %v2710
    %v2712 = vpop.f32.mrb[0].mxu0
    %2713 = vdwg.mxu0
    %2714 = vmatprep.subr.mxu0 0.0
    %2715 = vmatpush1.msra.mxu0 %v491
    %2716 = vmatprep.subr.mxu0 0.0
    %2717 = vmatpush1.msra.mxu0 %v492
    %2718 = vmatprep.subr.mxu0 0.0
    %2719 = vmatpush1.msra.mxu0 %v493
    %2720 = vmatprep.subr.mxu0 0.0
    %2721 = vmatpush1.msra.mxu0 %v494
    %2722 = vmatprep.subr.mxu0 0.0
    %2723 = vmatpush1.msra.mxu0 %v495
    %2724 = vmatprep.subr.mxu0 0.0
    %2725 = vmatpush1.msra.mxu0 %v496
    %2726 = vmatprep.subr.mxu0 0.0
    %2727 = vmatpush1.msra.mxu0 %v497
    %2728 = vmatprep.subr.mxu0 0.0
    %2729 = vmatpush1.msra.mxu0 %v498
    %2730 = vmatprep.subr.mxu0 0.0
    %2731 = vmatpush1.msra.mxu0 %v499
    %2732 = vmatprep.subr.mxu0 0.0
    %2733 = vmatpush1.msra.mxu0 %v500
    %2734 = vmatprep.subr.mxu0 0.0
    %2735 = vmatpush1.msra.mxu0 %v501
    %2736 = vmatprep.subr.mxu0 0.0
    %2737 = vmatpush1.msra.mxu0 %v502
    %2738 = vmatprep.subr.mxu0 0.0
    %2739 = vmatpush1.msra.mxu0 %v503
    %2740 = vmatprep.subr.mxu0 0.0
    %2741 = vmatpush1.msra.mxu0 %v504
    %2742 = vmatprep.subr.mxu0 0.0
    %2743 = vmatpush1.msra.mxu0 %v505
    %2744 = vmatprep.subr.mxu0 0.0
    %2745 = vmatpush1.msra.mxu0 %v506
    %2746 = vmatprep.subr.mxu0 0.0
    %2747 = vmatpush1.msra.mxu0 0.0
    %2748 = vmatprep.subr.mxu0 0.0
    %2749 = vmatpush1.msra.mxu0 0.0
    %2750 = vmatprep.subr.mxu0 0.0
    %2751 = vmatpush1.msra.mxu0 0.0
    %2752 = vmatprep.subr.mxu0 0.0
    %2753 = vmatpush1.msra.mxu0 0.0
    %2754 = vmatprep.subr.mxu0 0.0
    %2755 = vmatpush1.msra.mxu0 0.0
    %2756 = vmatprep.subr.mxu0 0.0
    %2757 = vmatpush1.msra.mxu0 0.0
    %2758 = vmatprep.subr.mxu0 0.0
    %2759 = vmatpush1.msra.mxu0 0.0
    %2760 = vmatprep.subr.mxu0 0.0
    %2761 = vmatpush1.msra.mxu0 0.0
    %2762 = vmatprep.subr.mxu0 0.0
    %2763 = vmatpush1.msra.mxu0 0.0
    %2764 = vmatprep.subr.mxu0 0.0
    %2765 = vmatpush1.msra.mxu0 0.0
    %2766 = vmatprep.subr.mxu0 0.0
    %2767 = vmatpush1.msra.mxu0 0.0
    %2768 = vmatprep.subr.mxu0 0.0
    %2769 = vmatpush1.msra.mxu0 0.0
    %2770 = vmatprep.subr.mxu0 0.0
    %2771 = vmatpush1.msra.mxu0 0.0
    %2772 = vmatprep.subr.mxu0 0.0
    %2773 = vmatpush1.msra.mxu0 0.0
    %2774 = vmatprep.subr.mxu0 0.0
    %2775 = vmatpush1.msra.mxu0 0.0
    %2776 = vmatprep.subr.mxu0 0.0
    %2777 = vmatpush1.msra.mxu0 0.0
    %2778 = vmatprep.mubr.f32.mxu0 0.0
    %2779 = vmatmul.mubr.f32.gmra.mrb[0].mxu0 %v2711
    %v2780 = vpop.f32.mrb[0].mxu0
    %v2781 = vadd.f32 0.0, %v2780
    %v2782 = vpop.f32.mrb[0].mxu0
    %2783 = vdwg.mxu0
    %v2784 = vsub.f32 %v2711, %v2781
    %v2785 = vmul.f32 %v2784, %v2784
    %2786 = vmatprep.subr.mxu0 0.0
    %2787 = vmatpush1.msra.mxu0 %v491
    %2788 = vmatprep.subr.mxu0 0.0
    %2789 = vmatpush1.msra.mxu0 %v492
    %2790 = vmatprep.subr.mxu0 0.0
    %2791 = vmatpush1.msra.mxu0 %v493
    %2792 = vmatprep.subr.mxu0 0.0
    %2793 = vmatpush1.msra.mxu0 %v494
    %2794 = vmatprep.subr.mxu0 0.0
    %2795 = vmatpush1.msra.mxu0 %v495
    %2796 = vmatprep.subr.mxu0 0.0
    %2797 = vmatpush1.msra.mxu0 %v496
    %2798 = vmatprep.subr.mxu0 0.0
    %2799 = vmatpush1.msra.mxu0 %v497
    %2800 = vmatprep.subr.mxu0 0.0
    %2801 = vmatpush1.msra.mxu0 %v498
    %2802 = vmatprep.subr.mxu0 0.0
    %2803 = vmatpush1.msra.mxu0 %v499
    %2804 = vmatprep.subr.mxu0 0.0
    %2805 = vmatpush1.msra.mxu0 %v500
    %2806 = vmatprep.subr.mxu0 0.0
    %2807 = vmatpush1.msra.mxu0 %v501
    %2808 = vmatprep.subr.mxu0 0.0
    %2809 = vmatpush1.msra.mxu0 %v502
    %2810 = vmatprep.subr.mxu0 0.0
    %2811 = vmatpush1.msra.mxu0 %v503
    %2812 = vmatprep.subr.mxu0 0.0
    %2813 = vmatpush1.msra.mxu0 %v504
    %2814 = vmatprep.subr.mxu0 0.0
    %2815 = vmatpush1.msra.mxu0 %v505
    %2816 = vmatprep.subr.mxu0 0.0
    %2817 = vmatpush1.msra.mxu0 %v506
    %2818 = vmatprep.subr.mxu0 0.0
    %2819 = vmatpush1.msra.mxu0 0.0
    %2820 = vmatprep.subr.mxu0 0.0
    %2821 = vmatpush1.msra.mxu0 0.0
    %2822 = vmatprep.subr.mxu0 0.0
    %2823 = vmatpush1.msra.mxu0 0.0
    %2824 = vmatprep.subr.mxu0 0.0
    %2825 = vmatpush1.msra.mxu0 0.0
    %2826 = vmatprep.subr.mxu0 0.0
    %2827 = vmatpush1.msra.mxu0 0.0
    %2828 = vmatprep.subr.mxu0 0.0
    %2829 = vmatpush1.msra.mxu0 0.0
    %2830 = vmatprep.subr.mxu0 0.0
    %2831 = vmatpush1.msra.mxu0 0.0
    %2832 = vmatprep.subr.mxu0 0.0
    %2833 = vmatpush1.msra.mxu0 0.0
    %2834 = vmatprep.subr.mxu0 0.0
    %2835 = vmatpush1.msra.mxu0 0.0
    %2836 = vmatprep.subr.mxu0 0.0
    %2837 = vmatpush1.msra.mxu0 0.0
    %2838 = vmatprep.subr.mxu0 0.0
    %2839 = vmatpush1.msra.mxu0 0.0
    %2840 = vmatprep.subr.mxu0 0.0
    %2841 = vmatpush1.msra.mxu0 0.0
    %2842 = vmatprep.subr.mxu0 0.0
    %2843 = vmatpush1.msra.mxu0 0.0
    %2844 = vmatprep.subr.mxu0 0.0
    %2845 = vmatpush1.msra.mxu0 0.0
    %2846 = vmatprep.subr.mxu0 0.0
    %2847 = vmatpush1.msra.mxu0 0.0
    %2848 = vmatprep.subr.mxu0 0.0
    %2849 = vmatpush1.msra.mxu0 0.0
    %2850 = vmatprep.mubr.f32.mxu0 0.0
    %2851 = vmatmul.mubr.f32.gmra.mrb[0].mxu0 %v2785
    %v2852 = vpop.f32.mrb[0].mxu0
    %v2853 = vadd.f32 1e-05, %v2852
    %v2854 = vpop.f32.mrb[0].mxu0
    %2855 = vdwg.mxu0
    %v2856 = vrsqrt.pop %v2853
    %v2857 = vmul.f32 %v2784, %v2856
    %v2858 = vmul.f32 %v2857, %v2532
    %v2859 = vadd.f32 %v2858, %v2537
    %v2860 = vadd.f32 %v980, %v2859
    %v2861 = vxor.u32 %v2860, 2147483648
    %v2862 = vmul.f32 %v2861, 1.442695
    %v2863 = vpow.pop %v2862
    %v2864 = vadd.f32 %v2863, 1.0
    %v2865 = vrcp.pop %v2864
    %v2866 = vmul.f32 1.0, %v2865
    %v2867 = vtanh.pop %v2860
    %v2868 = vmul.f32 %v2866, %v2557
    %2870 = vrot.lane.b32.xlu0 %v2867, 64
    %v2871 = vpop.permute.xlu0 %2870
    %v2873 = vmul.f32 %v2866, %v2871
    %2875 = vrot.lane.b32.xlu0 %v2873, 96
    %v2876 = vpop.permute.xlu0 %2875
    %v2878 = vadd.f32 %v2868, %v2876
    %v2879 = vtanh.pop %v2878
    %2881 = vrot.lane.b32.xlu0 %v2879, 64
    %v2882 = vpop.permute.xlu0 %2881
    %v2884 = vmul.f32 %v2866, %v2882
    %2886 = vrot.lane.b32.xlu0 %v2884, 64
    %v2887 = vpop.permute.xlu0 %2886
    %v2888 = vsel %vm2311, %v2887, 0
    %2890 = vmatprep.subr.mxu0 0.0
    %2891 = vmatpush1.msra.mxu0 %v519
    %2892 = vmatprep.subr.mxu0 0.0
    %2893 = vmatpush1.msra.mxu0 %v520
    %2894 = vmatprep.subr.mxu0 0.0
    %2895 = vmatpush1.msra.mxu0 %v521
    %2896 = vmatprep.subr.mxu0 0.0
    %2897 = vmatpush1.msra.mxu0 %v522
    %2898 = vmatprep.subr.mxu0 0.0
    %2899 = vmatpush1.msra.mxu0 0.0
    %2900 = vmatprep.subr.mxu0 0.0
    %2901 = vmatpush1.msra.mxu0 0.0
    %2902 = vmatprep.subr.mxu0 0.0
    %2903 = vmatpush1.msra.mxu0 0.0
    %2904 = vmatprep.subr.mxu0 0.0
    %2905 = vmatpush1.msra.mxu0 0.0
    %2906 = vmatprep.subr.mxu0 0.0
    %2907 = vmatpush1.msra.mxu0 0.0
    %2908 = vmatprep.subr.mxu0 0.0
    %2909 = vmatpush1.msra.mxu0 0.0
    %2910 = vmatprep.subr.mxu0 0.0
    %2911 = vmatpush1.msra.mxu0 0.0
    %2912 = vmatprep.subr.mxu0 0.0
    %2913 = vmatpush1.msra.mxu0 0.0
    %2914 = vmatprep.subr.mxu0 0.0
    %2915 = vmatpush1.msra.mxu0 0.0
    %2916 = vmatprep.subr.mxu0 0.0
    %2917 = vmatpush1.msra.mxu0 0.0
    %2918 = vmatprep.subr.mxu0 0.0
    %2919 = vmatpush1.msra.mxu0 0.0
    %2920 = vmatprep.subr.mxu0 0.0
    %2921 = vmatpush1.msra.mxu0 0.0
    %2922 = vmatprep.subr.mxu0 0.0
    %2923 = vmatpush1.msra.mxu0 0.0
    %2924 = vmatprep.subr.mxu0 0.0
    %2925 = vmatpush1.msra.mxu0 0.0
    %2926 = vmatprep.subr.mxu0 0.0
    %2927 = vmatpush1.msra.mxu0 0.0
    %2928 = vmatprep.subr.mxu0 0.0
    %2929 = vmatpush1.msra.mxu0 0.0
    %2930 = vmatprep.subr.mxu0 0.0
    %2931 = vmatpush1.msra.mxu0 0.0
    %2932 = vmatprep.subr.mxu0 0.0
    %2933 = vmatpush1.msra.mxu0 0.0
    %2934 = vmatprep.subr.mxu0 0.0
    %2935 = vmatpush1.msra.mxu0 0.0
    %2936 = vmatprep.subr.mxu0 0.0
    %2937 = vmatpush1.msra.mxu0 0.0
    %2938 = vmatprep.subr.mxu0 0.0
    %2939 = vmatpush1.msra.mxu0 0.0
    %2940 = vmatprep.subr.mxu0 0.0
    %2941 = vmatpush1.msra.mxu0 0.0
    %2942 = vmatprep.subr.mxu0 0.0
    %2943 = vmatpush1.msra.mxu0 0.0
    %2944 = vmatprep.subr.mxu0 0.0
    %2945 = vmatpush1.msra.mxu0 0.0
    %2946 = vmatprep.subr.mxu0 0.0
    %2947 = vmatpush1.msra.mxu0 0.0
    %2948 = vmatprep.subr.mxu0 0.0
    %2949 = vmatpush1.msra.mxu0 0.0
    %2950 = vmatprep.subr.mxu0 0.0
    %2951 = vmatpush1.msra.mxu0 0.0
    %2952 = vmatprep.subr.mxu0 0.0
    %2953 = vmatpush1.msra.mxu0 0.0
    %2954 = vmatprep.mubr.f32.mxu0 0.0
    %2955 = vmatmul.mubr.f32.gmra.mrb[0].mxu0 %v2888
    %v2956 = vpop.f32.mrb[0].mxu0
    %v2957 = vadd.f32 0.0, %v2956
    %v2958 = vpop.f32.mrb[0].mxu0
    %2959 = vdwg.mxu0
    %vm2960 = vcmp.eq.s32.totalorder %v50, 1
    %v2961 = vsel %vm2960, 1, 0
    %v2962 = vcvt.s32.f32 %v2961
    %v2963 = vmul.f32 %v2957, %v2962
    %v2964 = vadd.f32 %v2643, %v2963
    %2965 = vmatprep.subr.mxu0 0.0
    %2966 = vmatpush1.msra.mxu0 %v515
    %2967 = vmatprep.subr.mxu0 0.0
    %2968 = vmatpush1.msra.mxu0 %v516
    %2969 = vmatprep.subr.mxu0 0.0
    %2970 = vmatpush1.msra.mxu0 %v517
    %2971 = vmatprep.subr.mxu0 0.0
    %2972 = vmatpush1.msra.mxu0 %v518
    %2973 = vmatprep.subr.mxu0 0.0
    %2974 = vmatpush1.msra.mxu0 0.0
    %2975 = vmatprep.subr.mxu0 0.0
    %2976 = vmatpush1.msra.mxu0 0.0
    %2977 = vmatprep.subr.mxu0 0.0
    %2978 = vmatpush1.msra.mxu0 0.0
    %2979 = vmatprep.subr.mxu0 0.0
    %2980 = vmatpush1.msra.mxu0 0.0
    %2981 = vmatprep.subr.mxu0 0.0
    %2982 = vmatpush1.msra.mxu0 0.0
    %2983 = vmatprep.subr.mxu0 0.0
    %2984 = vmatpush1.msra.mxu0 0.0
    %2985 = vmatprep.subr.mxu0 0.0
    %2986 = vmatpush1.msra.mxu0 0.0
    %2987 = vmatprep.subr.mxu0 0.0
    %2988 = vmatpush1.msra.mxu0 0.0
    %2989 = vmatprep.subr.mxu0 0.0
    %2990 = vmatpush1.msra.mxu0 0.0
    %2991 = vmatprep.subr.mxu0 0.0
    %2992 = vmatpush1.msra.mxu0 0.0
    %2993 = vmatprep.subr.mxu0 0.0
    %2994 = vmatpush1.msra.mxu0 0.0
    %2995 = vmatprep.subr.mxu0 0.0
    %2996 = vmatpush1.msra.mxu0 0.0
    %2997 = vmatprep.subr.mxu0 0.0
    %2998 = vmatpush1.msra.mxu0 0.0
    %2999 = vmatprep.subr.mxu0 0.0
    %3000 = vmatpush1.msra.mxu0 0.0
    %3001 = vmatprep.subr.mxu0 0.0
    %3002 = vmatpush1.msra.mxu0 0.0
    %3003 = vmatprep.subr.mxu0 0.0
    %3004 = vmatpush1.msra.mxu0 0.0
    %3005 = vmatprep.subr.mxu0 0.0
    %3006 = vmatpush1.msra.mxu0 0.0
    %3007 = vmatprep.subr.mxu0 0.0
    %3008 = vmatpush1.msra.mxu0 0.0
    %3009 = vmatprep.subr.mxu0 0.0
    %3010 = vmatpush1.msra.mxu0 0.0
    %3011 = vmatprep.subr.mxu0 0.0
    %3012 = vmatpush1.msra.mxu0 0.0
    %3013 = vmatprep.subr.mxu0 0.0
    %3014 = vmatpush1.msra.mxu0 0.0
    %3015 = vmatprep.subr.mxu0 0.0
    %3016 = vmatpush1.msra.mxu0 0.0
    %3017 = vmatprep.subr.mxu0 0.0
    %3018 = vmatpush1.msra.mxu0 0.0
    %3019 = vmatprep.subr.mxu0 0.0
    %3020 = vmatpush1.msra.mxu0 0.0
    %3021 = vmatprep.subr.mxu0 0.0
    %3022 = vmatpush1.msra.mxu0 0.0
    %3023 = vmatprep.subr.mxu0 0.0
    %3024 = vmatpush1.msra.mxu0 0.0
    %3025 = vmatprep.subr.mxu0 0.0
    %3026 = vmatpush1.msra.mxu0 0.0
    %3027 = vmatprep.subr.mxu0 0.0
    %3028 = vmatpush1.msra.mxu0 0.0
    %3029 = vmatprep.mubr.f32.mxu0 0.0
    %3030 = vmatmul.mubr.f32.gmra.mrb[0].mxu0 %v2888
    %v3031 = vpop.f32.mrb[0].mxu0
    %v3032 = vadd.f32 %v2310, %v3031
    %v3033 = vpop.f32.mrb[0].mxu0
    %3034 = vdwg.mxu0
    %3035 = vmatprep.subr.mxu0 0.0
    %3036 = vmatpush1.msra.mxu0 %v491
    %3037 = vmatprep.subr.mxu0 0.0
    %3038 = vmatpush1.msra.mxu0 %v492
    %3039 = vmatprep.subr.mxu0 0.0
    %3040 = vmatpush1.msra.mxu0 %v493
    %3041 = vmatprep.subr.mxu0 0.0
    %3042 = vmatpush1.msra.mxu0 %v494
    %3043 = vmatprep.subr.mxu0 0.0
    %3044 = vmatpush1.msra.mxu0 %v495
    %3045 = vmatprep.subr.mxu0 0.0
    %3046 = vmatpush1.msra.mxu0 %v496
    %3047 = vmatprep.subr.mxu0 0.0
    %3048 = vmatpush1.msra.mxu0 %v497
    %3049 = vmatprep.subr.mxu0 0.0
    %3050 = vmatpush1.msra.mxu0 %v498
    %3051 = vmatprep.subr.mxu0 0.0
    %3052 = vmatpush1.msra.mxu0 %v499
    %3053 = vmatprep.subr.mxu0 0.0
    %3054 = vmatpush1.msra.mxu0 %v500
    %3055 = vmatprep.subr.mxu0 0.0
    %3056 = vmatpush1.msra.mxu0 %v501
    %3057 = vmatprep.subr.mxu0 0.0
    %3058 = vmatpush1.msra.mxu0 %v502
    %3059 = vmatprep.subr.mxu0 0.0
    %3060 = vmatpush1.msra.mxu0 %v503
    %3061 = vmatprep.subr.mxu0 0.0
    %3062 = vmatpush1.msra.mxu0 %v504
    %3063 = vmatprep.subr.mxu0 0.0
    %3064 = vmatpush1.msra.mxu0 %v505
    %3065 = vmatprep.subr.mxu0 0.0
    %3066 = vmatpush1.msra.mxu0 %v506
    %3067 = vmatprep.subr.mxu0 0.0
    %3068 = vmatpush1.msra.mxu0 0.0
    %3069 = vmatprep.subr.mxu0 0.0
    %3070 = vmatpush1.msra.mxu0 0.0
    %3071 = vmatprep.subr.mxu0 0.0
    %3072 = vmatpush1.msra.mxu0 0.0
    %3073 = vmatprep.subr.mxu0 0.0
    %3074 = vmatpush1.msra.mxu0 0.0
    %3075 = vmatprep.subr.mxu0 0.0
    %3076 = vmatpush1.msra.mxu0 0.0
    %3077 = vmatprep.subr.mxu0 0.0
    %3078 = vmatpush1.msra.mxu0 0.0
    %3079 = vmatprep.subr.mxu0 0.0
    %3080 = vmatpush1.msra.mxu0 0.0
    %3081 = vmatprep.subr.mxu0 0.0
    %3082 = vmatpush1.msra.mxu0 0.0
    %3083 = vmatprep.subr.mxu0 0.0
    %3084 = vmatpush1.msra.mxu0 0.0
    %3085 = vmatprep.subr.mxu0 0.0
    %3086 = vmatpush1.msra.mxu0 0.0
    %3087 = vmatprep.subr.mxu0 0.0
    %3088 = vmatpush1.msra.mxu0 0.0
    %3089 = vmatprep.subr.mxu0 0.0
    %3090 = vmatpush1.msra.mxu0 0.0
    %3091 = vmatprep.subr.mxu0 0.0
    %3092 = vmatpush1.msra.mxu0 0.0
    %3093 = vmatprep.subr.mxu0 0.0
    %3094 = vmatpush1.msra.mxu0 0.0
    %3095 = vmatprep.subr.mxu0 0.0
    %3096 = vmatpush1.msra.mxu0 0.0
    %3097 = vmatprep.subr.mxu0 0.0
    %3098 = vmatpush1.msra.mxu0 0.0
    %3099 = vmatprep.mubr.f32.mxu0 0.0
    %3100 = vmatmul.mubr.f32.gmra.mrb[0].mxu0 %v3032
    %v3101 = vpop.f32.mrb[0].mxu0
    %v3102 = vadd.f32 0.0, %v3101
    %v3103 = vpop.f32.mrb[0].mxu0
    %3104 = vdwg.mxu0
    %v3105 = vsub.f32 %v3032, %v3102
    %v3106 = vmul.f32 %v3105, %v3105
    %3107 = vmatprep.subr.mxu0 0.0
    %3108 = vmatpush1.msra.mxu0 %v491
    %3109 = vmatprep.subr.mxu0 0.0
    %3110 = vmatpush1.msra.mxu0 %v492
    %3111 = vmatprep.subr.mxu0 0.0
    %3112 = vmatpush1.msra.mxu0 %v493
    %3113 = vmatprep.subr.mxu0 0.0
    %3114 = vmatpush1.msra.mxu0 %v494
    %3115 = vmatprep.subr.mxu0 0.0
    %3116 = vmatpush1.msra.mxu0 %v495
    %3117 = vmatprep.subr.mxu0 0.0
    %3118 = vmatpush1.msra.mxu0 %v496
    %3119 = vmatprep.subr.mxu0 0.0
    %3120 = vmatpush1.msra.mxu0 %v497
    %3121 = vmatprep.subr.mxu0 0.0
    %3122 = vmatpush1.msra.mxu0 %v498
    %3123 = vmatprep.subr.mxu0 0.0
    %3124 = vmatpush1.msra.mxu0 %v499
    %3125 = vmatprep.subr.mxu0 0.0
    %3126 = vmatpush1.msra.mxu0 %v500
    %3127 = vmatprep.subr.mxu0 0.0
    %3128 = vmatpush1.msra.mxu0 %v501
    %3129 = vmatprep.subr.mxu0 0.0
    %3130 = vmatpush1.msra.mxu0 %v502
    %3131 = vmatprep.subr.mxu0 0.0
    %3132 = vmatpush1.msra.mxu0 %v503
    %3133 = vmatprep.subr.mxu0 0.0
    %3134 = vmatpush1.msra.mxu0 %v504
    %3135 = vmatprep.subr.mxu0 0.0
    %3136 = vmatpush1.msra.mxu0 %v505
    %3137 = vmatprep.subr.mxu0 0.0
    %3138 = vmatpush1.msra.mxu0 %v506
    %3139 = vmatprep.subr.mxu0 0.0
    %3140 = vmatpush1.msra.mxu0 0.0
    %3141 = vmatprep.subr.mxu0 0.0
    %3142 = vmatpush1.msra.mxu0 0.0
    %3143 = vmatprep.subr.mxu0 0.0
    %3144 = vmatpush1.msra.mxu0 0.0
    %3145 = vmatprep.subr.mxu0 0.0
    %3146 = vmatpush1.msra.mxu0 0.0
    %3147 = vmatprep.subr.mxu0 0.0
    %3148 = vmatpush1.msra.mxu0 0.0
    %3149 = vmatprep.subr.mxu0 0.0
    %3150 = vmatpush1.msra.mxu0 0.0
    %3151 = vmatprep.subr.mxu0 0.0
    %3152 = vmatpush1.msra.mxu0 0.0
    %3153 = vmatprep.subr.mxu0 0.0
    %3154 = vmatpush1.msra.mxu0 0.0
    %3155 = vmatprep.subr.mxu0 0.0
    %3156 = vmatpush1.msra.mxu0 0.0
    %3157 = vmatprep.subr.mxu0 0.0
    %3158 = vmatpush1.msra.mxu0 0.0
    %3159 = vmatprep.subr.mxu0 0.0
    %3160 = vmatpush1.msra.mxu0 0.0
    %3161 = vmatprep.subr.mxu0 0.0
    %3162 = vmatpush1.msra.mxu0 0.0
    %3163 = vmatprep.subr.mxu0 0.0
    %3164 = vmatpush1.msra.mxu0 0.0
    %3165 = vmatprep.subr.mxu0 0.0
    %3166 = vmatpush1.msra.mxu0 0.0
    %3167 = vmatprep.subr.mxu0 0.0
    %3168 = vmatpush1.msra.mxu0 0.0
    %3169 = vmatprep.subr.mxu0 0.0
    %3170 = vmatpush1.msra.mxu0 0.0
    %3171 = vmatprep.mubr.f32.mxu0 0.0
    %3172 = vmatmul.mubr.f32.gmra.mrb[0].mxu0 %v3106
    %v3173 = vpop.f32.mrb[0].mxu0
    %v3174 = vadd.f32 1e-05, %v3173
    %v3175 = vpop.f32.mrb[0].mxu0
    %3176 = vdwg.mxu0
    %v3177 = vrsqrt.pop %v3174
    %v3178 = vmul.f32 %v3105, %v3177
    %v3179 = vmul.f32 %v3178, %v2532
    %v3180 = vadd.f32 %v3179, %v2537
    %v3181 = vadd.f32 %v1201, %v3180
    %v3182 = vxor.u32 %v3181, 2147483648
    %v3183 = vmul.f32 %v3182, 1.442695
    %v3184 = vpow.pop %v3183
    %v3185 = vadd.f32 %v3184, 1.0
    %v3186 = vrcp.pop %v3185
    %v3187 = vmul.f32 1.0, %v3186
    %v3188 = vtanh.pop %v3181
    %v3189 = vmul.f32 %v3187, %v2878
    %3191 = vrot.lane.b32.xlu0 %v3188, 64
    %v3192 = vpop.permute.xlu0 %3191
    %v3194 = vmul.f32 %v3187, %v3192
    %3196 = vrot.lane.b32.xlu0 %v3194, 96
    %v3197 = vpop.permute.xlu0 %3196
    %v3199 = vadd.f32 %v3189, %v3197
    %v3200 = vtanh.pop %v3199
    %3202 = vrot.lane.b32.xlu0 %v3200, 64
    %v3203 = vpop.permute.xlu0 %3202
    %v3205 = vmul.f32 %v3187, %v3203
    %3207 = vrot.lane.b32.xlu0 %v3205, 64
    %v3208 = vpop.permute.xlu0 %3207
    %v3209 = vsel %vm2311, %v3208, 0
    %3211 = vmatprep.subr.mxu0 0.0
    %3212 = vmatpush1.msra.mxu0 %v519
    %3213 = vmatprep.subr.mxu0 0.0
    %3214 = vmatpush1.msra.mxu0 %v520
    %3215 = vmatprep.subr.mxu0 0.0
    %3216 = vmatpush1.msra.mxu0 %v521
    %3217 = vmatprep.subr.mxu0 0.0
    %3218 = vmatpush1.msra.mxu0 %v522
    %3219 = vmatprep.subr.mxu0 0.0
    %3220 = vmatpush1.msra.mxu0 0.0
    %3221 = vmatprep.subr.mxu0 0.0
    %3222 = vmatpush1.msra.mxu0 0.0
    %3223 = vmatprep.subr.mxu0 0.0
    %3224 = vmatpush1.msra.mxu0 0.0
    %3225 = vmatprep.subr.mxu0 0.0
    %3226 = vmatpush1.msra.mxu0 0.0
    %3227 = vmatprep.subr.mxu0 0.0
    %3228 = vmatpush1.msra.mxu0 0.0
    %3229 = vmatprep.subr.mxu0 0.0
    %3230 = vmatpush1.msra.mxu0 0.0
    %3231 = vmatprep.subr.mxu0 0.0
    %3232 = vmatpush1.msra.mxu0 0.0
    %3233 = vmatprep.subr.mxu0 0.0
    %3234 = vmatpush1.msra.mxu0 0.0
    %3235 = vmatprep.subr.mxu0 0.0
    %3236 = vmatpush1.msra.mxu0 0.0
    %3237 = vmatprep.subr.mxu0 0.0
    %3238 = vmatpush1.msra.mxu0 0.0
    %3239 = vmatprep.subr.mxu0 0.0
    %3240 = vmatpush1.msra.mxu0 0.0
    %3241 = vmatprep.subr.mxu0 0.0
    %3242 = vmatpush1.msra.mxu0 0.0
    %3243 = vmatprep.subr.mxu0 0.0
    %3244 = vmatpush1.msra.mxu0 0.0
    %3245 = vmatprep.subr.mxu0 0.0
    %3246 = vmatpush1.msra.mxu0 0.0
    %3247 = vmatprep.subr.mxu0 0.0
    %3248 = vmatpush1.msra.mxu0 0.0
    %3249 = vmatprep.subr.mxu0 0.0
    %3250 = vmatpush1.msra.mxu0 0.0
    %3251 = vmatprep.subr.mxu0 0.0
    %3252 = vmatpush1.msra.mxu0 0.0
    %3253 = vmatprep.subr.mxu0 0.0
    %3254 = vmatpush1.msra.mxu0 0.0
    %3255 = vmatprep.subr.mxu0 0.0
    %3256 = vmatpush1.msra.mxu0 0.0
    %3257 = vmatprep.subr.mxu0 0.0
    %3258 = vmatpush1.msra.mxu0 0.0
    %3259 = vmatprep.subr.mxu0 0.0
    %3260 = vmatpush1.msra.mxu0 0.0
    %3261 = vmatprep.subr.mxu0 0.0
    %3262 = vmatpush1.msra.mxu0 0.0
    %3263 = vmatprep.subr.mxu0 0.0
    %3264 = vmatpush1.msra.mxu0 0.0
    %3265 = vmatprep.subr.mxu0 0.0
    %3266 = vmatpush1.msra.mxu0 0.0
    %3267 = vmatprep.subr.mxu0 0.0
    %3268 = vmatpush1.msra.mxu0 0.0
    %3269 = vmatprep.subr.mxu0 0.0
    %3270 = vmatpush1.msra.mxu0 0.0
    %3271 = vmatprep.subr.mxu0 0.0
    %3272 = vmatpush1.msra.mxu0 0.0
    %3273 = vmatprep.subr.mxu0 0.0
    %3274 = vmatpush1.msra.mxu0 0.0
    %3275 = vmatprep.mubr.f32.mxu0 0.0
    %3276 = vmatmul.mubr.f32.gmra.mrb[0].mxu0 %v3209
    %v3277 = vpop.f32.mrb[0].mxu0
    %v3278 = vadd.f32 0.0, %v3277
    %v3279 = vpop.f32.mrb[0].mxu0
    %3280 = vdwg.mxu0
    %vm3281 = vcmp.eq.s32.totalorder %v50, 2
    %v3282 = vsel %vm3281, 1, 0
    %v3283 = vcvt.s32.f32 %v3282
    %v3284 = vmul.f32 %v3278, %v3283
    %v3285 = vadd.f32 %v2964, %v3284
    %3286 = vmatprep.subr.mxu0 0.0
    %3287 = vmatpush1.msra.mxu0 %v515
    %3288 = vmatprep.subr.mxu0 0.0
    %3289 = vmatpush1.msra.mxu0 %v516
    %3290 = vmatprep.subr.mxu0 0.0
    %3291 = vmatpush1.msra.mxu0 %v517
    %3292 = vmatprep.subr.mxu0 0.0
    %3293 = vmatpush1.msra.mxu0 %v518
    %3294 = vmatprep.subr.mxu0 0.0
    %3295 = vmatpush1.msra.mxu0 0.0
    %3296 = vmatprep.subr.mxu0 0.0
    %3297 = vmatpush1.msra.mxu0 0.0
    %3298 = vmatprep.subr.mxu0 0.0
    %3299 = vmatpush1.msra.mxu0 0.0
    %3300 = vmatprep.subr.mxu0 0.0
    %3301 = vmatpush1.msra.mxu0 0.0
    %3302 = vmatprep.subr.mxu0 0.0
    %3303 = vmatpush1.msra.mxu0 0.0
    %3304 = vmatprep.subr.mxu0 0.0
    %3305 = vmatpush1.msra.mxu0 0.0
    %3306 = vmatprep.subr.mxu0 0.0
    %3307 = vmatpush1.msra.mxu0 0.0
    %3308 = vmatprep.subr.mxu0 0.0
    %3309 = vmatpush1.msra.mxu0 0.0
    %3310 = vmatprep.subr.mxu0 0.0
    %3311 = vmatpush1.msra.mxu0 0.0
    %3312 = vmatprep.subr.mxu0 0.0
    %3313 = vmatpush1.msra.mxu0 0.0
    %3314 = vmatprep.subr.mxu0 0.0
    %3315 = vmatpush1.msra.mxu0 0.0
    %3316 = vmatprep.subr.mxu0 0.0
    %3317 = vmatpush1.msra.mxu0 0.0
    %3318 = vmatprep.subr.mxu0 0.0
    %3319 = vmatpush1.msra.mxu0 0.0
    %3320 = vmatprep.subr.mxu0 0.0
    %3321 = vmatpush1.msra.mxu0 0.0
    %3322 = vmatprep.subr.mxu0 0.0
    %3323 = vmatpush1.msra.mxu0 0.0
    %3324 = vmatprep.subr.mxu0 0.0
    %3325 = vmatpush1.msra.mxu0 0.0
    %3326 = vmatprep.subr.mxu0 0.0
    %3327 = vmatpush1.msra.mxu0 0.0
    %3328 = vmatprep.subr.mxu0 0.0
    %3329 = vmatpush1.msra.mxu0 0.0
    %3330 = vmatprep.subr.mxu0 0.0
    %3331 = vmatpush1.msra.mxu0 0.0
    %3332 = vmatprep.subr.mxu0 0.0
    %3333 = vmatpush1.msra.mxu0 0.0
    %3334 = vmatprep.subr.mxu0 0.0
    %3335 = vmatpush1.msra.mxu0 0.0
    %3336 = vmatprep.subr.mxu0 0.0
    %3337 = vmatpush1.msra.mxu0 0.0
    %3338 = vmatprep.subr.mxu0 0.0
    %3339 = vmatpush1.msra.mxu0 0.0
    %3340 = vmatprep.subr.mxu0 0.0
    %3341 = vmatpush1.msra.mxu0 0.0
    %3342 = vmatprep.subr.mxu0 0.0
    %3343 = vmatpush1.msra.mxu0 0.0
    %3344 = vmatprep.subr.mxu0 0.0
    %3345 = vmatpush1.msra.mxu0 0.0
    %3346 = vmatprep.subr.mxu0 0.0
    %3347 = vmatpush1.msra.mxu0 0.0
    %3348 = vmatprep.subr.mxu0 0.0
    %3349 = vmatpush1.msra.mxu0 0.0
    %3350 = vmatprep.mubr.f32.mxu0 0.0
    %3351 = vmatmul.mubr.f32.gmra.mrb[0].mxu0 %v3209
    %v3352 = vpop.f32.mrb[0].mxu0
    %v3353 = vadd.f32 %v2310, %v3352
    %v3354 = vpop.f32.mrb[0].mxu0
    %3355 = vdwg.mxu0
    %3356 = vmatprep.subr.mxu0 0.0
    %3357 = vmatpush1.msra.mxu0 %v491
    %3358 = vmatprep.subr.mxu0 0.0
    %3359 = vmatpush1.msra.mxu0 %v492
    %3360 = vmatprep.subr.mxu0 0.0
    %3361 = vmatpush1.msra.mxu0 %v493
    %3362 = vmatprep.subr.mxu0 0.0
    %3363 = vmatpush1.msra.mxu0 %v494
    %3364 = vmatprep.subr.mxu0 0.0
    %3365 = vmatpush1.msra.mxu0 %v495
    %3366 = vmatprep.subr.mxu0 0.0
    %3367 = vmatpush1.msra.mxu0 %v496
    %3368 = vmatprep.subr.mxu0 0.0
    %3369 = vmatpush1.msra.mxu0 %v497
    %3370 = vmatprep.subr.mxu0 0.0
    %3371 = vmatpush1.msra.mxu0 %v498
    %3372 = vmatprep.subr.mxu0 0.0
    %3373 = vmatpush1.msra.mxu0 %v499
    %3374 = vmatprep.subr.mxu0 0.0
    %3375 = vmatpush1.msra.mxu0 %v500
    %3376 = vmatprep.subr.mxu0 0.0
    %3377 = vmatpush1.msra.mxu0 %v501
    %3378 = vmatprep.subr.mxu0 0.0
    %3379 = vmatpush1.msra.mxu0 %v502
    %3380 = vmatprep.subr.mxu0 0.0
    %3381 = vmatpush1.msra.mxu0 %v503
    %3382 = vmatprep.subr.mxu0 0.0
    %3383 = vmatpush1.msra.mxu0 %v504
    %3384 = vmatprep.subr.mxu0 0.0
    %3385 = vmatpush1.msra.mxu0 %v505
    %3386 = vmatprep.subr.mxu0 0.0
    %3387 = vmatpush1.msra.mxu0 %v506
    %3388 = vmatprep.subr.mxu0 0.0
    %3389 = vmatpush1.msra.mxu0 0.0
    %3390 = vmatprep.subr.mxu0 0.0
    %3391 = vmatpush1.msra.mxu0 0.0
    %3392 = vmatprep.subr.mxu0 0.0
    %3393 = vmatpush1.msra.mxu0 0.0
    %3394 = vmatprep.subr.mxu0 0.0
    %3395 = vmatpush1.msra.mxu0 0.0
    %3396 = vmatprep.subr.mxu0 0.0
    %3397 = vmatpush1.msra.mxu0 0.0
    %3398 = vmatprep.subr.mxu0 0.0
    %3399 = vmatpush1.msra.mxu0 0.0
    %3400 = vmatprep.subr.mxu0 0.0
    %3401 = vmatpush1.msra.mxu0 0.0
    %3402 = vmatprep.subr.mxu0 0.0
    %3403 = vmatpush1.msra.mxu0 0.0
    %3404 = vmatprep.subr.mxu0 0.0
    %3405 = vmatpush1.msra.mxu0 0.0
    %3406 = vmatprep.subr.mxu0 0.0
    %3407 = vmatpush1.msra.mxu0 0.0
    %3408 = vmatprep.subr.mxu0 0.0
    %3409 = vmatpush1.msra.mxu0 0.0
    %3410 = vmatprep.subr.mxu0 0.0
    %3411 = vmatpush1.msra.mxu0 0.0
    %3412 = vmatprep.subr.mxu0 0.0
    %3413 = vmatpush1.msra.mxu0 0.0
    %3414 = vmatprep.subr.mxu0 0.0
    %3415 = vmatpush1.msra.mxu0 0.0
    %3416 = vmatprep.subr.mxu0 0.0
    %3417 = vmatpush1.msra.mxu0 0.0
    %3418 = vmatprep.subr.mxu0 0.0
    %3419 = vmatpush1.msra.mxu0 0.0
    %3420 = vmatprep.mubr.f32.mxu0 0.0
    %3421 = vmatmul.mubr.f32.gmra.mrb[0].mxu0 %v3353
    %v3422 = vpop.f32.mrb[0].mxu0
    %v3423 = vadd.f32 0.0, %v3422
    %v3424 = vpop.f32.mrb[0].mxu0
    %3425 = vdwg.mxu0
    %v3426 = vsub.f32 %v3353, %v3423
    %v3427 = vmul.f32 %v3426, %v3426
    %3428 = vmatprep.subr.mxu0 0.0
    %3429 = vmatpush1.msra.mxu0 %v491
    %3430 = vmatprep.subr.mxu0 0.0
    %3431 = vmatpush1.msra.mxu0 %v492
    %3432 = vmatprep.subr.mxu0 0.0
    %3433 = vmatpush1.msra.mxu0 %v493
    %3434 = vmatprep.subr.mxu0 0.0
    %3435 = vmatpush1.msra.mxu0 %v494
    %3436 = vmatprep.subr.mxu0 0.0
    %3437 = vmatpush1.msra.mxu0 %v495
    %3438 = vmatprep.subr.mxu0 0.0
    %3439 = vmatpush1.msra.mxu0 %v496
    %3440 = vmatprep.subr.mxu0 0.0
    %3441 = vmatpush1.msra.mxu0 %v497
    %3442 = vmatprep.subr.mxu0 0.0
    %3443 = vmatpush1.msra.mxu0 %v498
    %3444 = vmatprep.subr.mxu0 0.0
    %3445 = vmatpush1.msra.mxu0 %v499
    %3446 = vmatprep.subr.mxu0 0.0
    %3447 = vmatpush1.msra.mxu0 %v500
    %3448 = vmatprep.subr.mxu0 0.0
    %3449 = vmatpush1.msra.mxu0 %v501
    %3450 = vmatprep.subr.mxu0 0.0
    %3451 = vmatpush1.msra.mxu0 %v502
    %3452 = vmatprep.subr.mxu0 0.0
    %3453 = vmatpush1.msra.mxu0 %v503
    %3454 = vmatprep.subr.mxu0 0.0
    %3455 = vmatpush1.msra.mxu0 %v504
    %3456 = vmatprep.subr.mxu0 0.0
    %3457 = vmatpush1.msra.mxu0 %v505
    %3458 = vmatprep.subr.mxu0 0.0
    %3459 = vmatpush1.msra.mxu0 %v506
    %3460 = vmatprep.subr.mxu0 0.0
    %3461 = vmatpush1.msra.mxu0 0.0
    %3462 = vmatprep.subr.mxu0 0.0
    %3463 = vmatpush1.msra.mxu0 0.0
    %3464 = vmatprep.subr.mxu0 0.0
    %3465 = vmatpush1.msra.mxu0 0.0
    %3466 = vmatprep.subr.mxu0 0.0
    %3467 = vmatpush1.msra.mxu0 0.0
    %3468 = vmatprep.subr.mxu0 0.0
    %3469 = vmatpush1.msra.mxu0 0.0
    %3470 = vmatprep.subr.mxu0 0.0
    %3471 = vmatpush1.msra.mxu0 0.0
    %3472 = vmatprep.subr.mxu0 0.0
    %3473 = vmatpush1.msra.mxu0 0.0
    %3474 = vmatprep.subr.mxu0 0.0
    %3475 = vmatpush1.msra.mxu0 0.0
    %3476 = vmatprep.subr.mxu0 0.0
    %3477 = vmatpush1.msra.mxu0 0.0
    %3478 = vmatprep.subr.mxu0 0.0
    %3479 = vmatpush1.msra.mxu0 0.0
    %3480 = vmatprep.subr.mxu0 0.0
    %3481 = vmatpush1.msra.mxu0 0.0
    %3482 = vmatprep.subr.mxu0 0.0
    %3483 = vmatpush1.msra.mxu0 0.0
    %3484 = vmatprep.subr.mxu0 0.0
    %3485 = vmatpush1.msra.mxu0 0.0
    %3486 = vmatprep.subr.mxu0 0.0
    %3487 = vmatpush1.msra.mxu0 0.0
    %3488 = vmatprep.subr.mxu0 0.0
    %3489 = vmatpush1.msra.mxu0 0.0
    %3490 = vmatprep.subr.mxu0 0.0
    %3491 = vmatpush1.msra.mxu0 0.0
    %3492 = vmatprep.mubr.f32.mxu0 0.0
    %3493 = vmatmul.mubr.f32.gmra.mrb[0].mxu0 %v3427
    %v3494 = vpop.f32.mrb[0].mxu0
    %v3495 = vadd.f32 1e-05, %v3494
    %v3496 = vpop.f32.mrb[0].mxu0
    %3497 = vdwg.mxu0
    %v3498 = vrsqrt.pop %v3495
    %v3499 = vmul.f32 %v3426, %v3498
    %v3500 = vmul.f32 %v3499, %v2532
    %v3501 = vadd.f32 %v3500, %v2537
    %v3502 = vadd.f32 %v1422, %v3501
    %v3503 = vxor.u32 %v3502, 2147483648
    %v3504 = vmul.f32 %v3503, 1.442695
    %v3505 = vpow.pop %v3504
    %v3506 = vadd.f32 %v3505, 1.0
    %v3507 = vrcp.pop %v3506
    %v3508 = vmul.f32 1.0, %v3507
    %v3509 = vtanh.pop %v3502
    %v3510 = vmul.f32 %v3508, %v3199
    %3512 = vrot.lane.b32.xlu0 %v3509, 64
    %v3513 = vpop.permute.xlu0 %3512
    %v3515 = vmul.f32 %v3508, %v3513
    %3517 = vrot.lane.b32.xlu0 %v3515, 96
    %v3518 = vpop.permute.xlu0 %3517
    %v3520 = vadd.f32 %v3510, %v3518
    %v3521 = vtanh.pop %v3520
    %3523 = vrot.lane.b32.xlu0 %v3521, 64
    %v3524 = vpop.permute.xlu0 %3523
    %v3526 = vmul.f32 %v3508, %v3524
    %3528 = vrot.lane.b32.xlu0 %v3526, 64
    %v3529 = vpop.permute.xlu0 %3528
    %v3530 = vsel %vm2311, %v3529, 0
    %3532 = vmatprep.subr.mxu0 0.0
    %3533 = vmatpush1.msra.mxu0 %v519
    %3534 = vmatprep.subr.mxu0 0.0
    %3535 = vmatpush1.msra.mxu0 %v520
    %3536 = vmatprep.subr.mxu0 0.0
    %3537 = vmatpush1.msra.mxu0 %v521
    %3538 = vmatprep.subr.mxu0 0.0
    %3539 = vmatpush1.msra.mxu0 %v522
    %3540 = vmatprep.subr.mxu0 0.0
    %3541 = vmatpush1.msra.mxu0 0.0
    %3542 = vmatprep.subr.mxu0 0.0
    %3543 = vmatpush1.msra.mxu0 0.0
    %3544 = vmatprep.subr.mxu0 0.0
    %3545 = vmatpush1.msra.mxu0 0.0
    %3546 = vmatprep.subr.mxu0 0.0
    %3547 = vmatpush1.msra.mxu0 0.0
    %3548 = vmatprep.subr.mxu0 0.0
    %3549 = vmatpush1.msra.mxu0 0.0
    %3550 = vmatprep.subr.mxu0 0.0
    %3551 = vmatpush1.msra.mxu0 0.0
    %3552 = vmatprep.subr.mxu0 0.0
    %3553 = vmatpush1.msra.mxu0 0.0
    %3554 = vmatprep.subr.mxu0 0.0
    %3555 = vmatpush1.msra.mxu0 0.0
    %3556 = vmatprep.subr.mxu0 0.0
    %3557 = vmatpush1.msra.mxu0 0.0
    %3558 = vmatprep.subr.mxu0 0.0
    %3559 = vmatpush1.msra.mxu0 0.0
    %3560 = vmatprep.subr.mxu0 0.0
    %3561 = vmatpush1.msra.mxu0 0.0
    %3562 = vmatprep.subr.mxu0 0.0
    %3563 = vmatpush1.msra.mxu0 0.0
    %3564 = vmatprep.subr.mxu0 0.0
    %3565 = vmatpush1.msra.mxu0 0.0
    %3566 = vmatprep.subr.mxu0 0.0
    %3567 = vmatpush1.msra.mxu0 0.0
    %3568 = vmatprep.subr.mxu0 0.0
    %3569 = vmatpush1.msra.mxu0 0.0
    %3570 = vmatprep.subr.mxu0 0.0
    %3571 = vmatpush1.msra.mxu0 0.0
    %3572 = vmatprep.subr.mxu0 0.0
    %3573 = vmatpush1.msra.mxu0 0.0
    %3574 = vmatprep.subr.mxu0 0.0
    %3575 = vmatpush1.msra.mxu0 0.0
    %3576 = vmatprep.subr.mxu0 0.0
    %3577 = vmatpush1.msra.mxu0 0.0
    %3578 = vmatprep.subr.mxu0 0.0
    %3579 = vmatpush1.msra.mxu0 0.0
    %3580 = vmatprep.subr.mxu0 0.0
    %3581 = vmatpush1.msra.mxu0 0.0
    %3582 = vmatprep.subr.mxu0 0.0
    %3583 = vmatpush1.msra.mxu0 0.0
    %3584 = vmatprep.subr.mxu0 0.0
    %3585 = vmatpush1.msra.mxu0 0.0
    %3586 = vmatprep.subr.mxu0 0.0
    %3587 = vmatpush1.msra.mxu0 0.0
    %3588 = vmatprep.subr.mxu0 0.0
    %3589 = vmatpush1.msra.mxu0 0.0
    %3590 = vmatprep.subr.mxu0 0.0
    %3591 = vmatpush1.msra.mxu0 0.0
    %3592 = vmatprep.subr.mxu0 0.0
    %3593 = vmatpush1.msra.mxu0 0.0
    %3594 = vmatprep.subr.mxu0 0.0
    %3595 = vmatpush1.msra.mxu0 0.0
    %3596 = vmatprep.mubr.f32.mxu0 0.0
    %3597 = vmatmul.mubr.f32.gmra.mrb[0].mxu0 %v3530
    %v3598 = vpop.f32.mrb[0].mxu0
    %v3599 = vadd.f32 0.0, %v3598
    %v3600 = vpop.f32.mrb[0].mxu0
    %3601 = vdwg.mxu0
    %vm3602 = vcmp.eq.s32.totalorder %v50, 3
    %v3603 = vsel %vm3602, 1, 0
    %v3604 = vcvt.s32.f32 %v3603
    %v3605 = vmul.f32 %v3599, %v3604
    %v3606 = vadd.f32 %v3285, %v3605
    %3607 = vmatprep.subr.mxu0 0.0
    %3608 = vmatpush1.msra.mxu0 %v515
    %3609 = vmatprep.subr.mxu0 0.0
    %3610 = vmatpush1.msra.mxu0 %v516
    %3611 = vmatprep.subr.mxu0 0.0
    %3612 = vmatpush1.msra.mxu0 %v517
    %3613 = vmatprep.subr.mxu0 0.0
    %3614 = vmatpush1.msra.mxu0 %v518
    %3615 = vmatprep.subr.mxu0 0.0
    %3616 = vmatpush1.msra.mxu0 0.0
    %3617 = vmatprep.subr.mxu0 0.0
    %3618 = vmatpush1.msra.mxu0 0.0
    %3619 = vmatprep.subr.mxu0 0.0
    %3620 = vmatpush1.msra.mxu0 0.0
    %3621 = vmatprep.subr.mxu0 0.0
    %3622 = vmatpush1.msra.mxu0 0.0
    %3623 = vmatprep.subr.mxu0 0.0
    %3624 = vmatpush1.msra.mxu0 0.0
    %3625 = vmatprep.subr.mxu0 0.0
    %3626 = vmatpush1.msra.mxu0 0.0
    %3627 = vmatprep.subr.mxu0 0.0
    %3628 = vmatpush1.msra.mxu0 0.0
    %3629 = vmatprep.subr.mxu0 0.0
    %3630 = vmatpush1.msra.mxu0 0.0
    %3631 = vmatprep.subr.mxu0 0.0
    %3632 = vmatpush1.msra.mxu0 0.0
    %3633 = vmatprep.subr.mxu0 0.0
    %3634 = vmatpush1.msra.mxu0 0.0
    %3635 = vmatprep.subr.mxu0 0.0
    %3636 = vmatpush1.msra.mxu0 0.0
    %3637 = vmatprep.subr.mxu0 0.0
    %3638 = vmatpush1.msra.mxu0 0.0
    %3639 = vmatprep.subr.mxu0 0.0
    %3640 = vmatpush1.msra.mxu0 0.0
    %3641 = vmatprep.subr.mxu0 0.0
    %3642 = vmatpush1.msra.mxu0 0.0
    %3643 = vmatprep.subr.mxu0 0.0
    %3644 = vmatpush1.msra.mxu0 0.0
    %3645 = vmatprep.subr.mxu0 0.0
    %3646 = vmatpush1.msra.mxu0 0.0
    %3647 = vmatprep.subr.mxu0 0.0
    %3648 = vmatpush1.msra.mxu0 0.0
    %3649 = vmatprep.subr.mxu0 0.0
    %3650 = vmatpush1.msra.mxu0 0.0
    %3651 = vmatprep.subr.mxu0 0.0
    %3652 = vmatpush1.msra.mxu0 0.0
    %3653 = vmatprep.subr.mxu0 0.0
    %3654 = vmatpush1.msra.mxu0 0.0
    %3655 = vmatprep.subr.mxu0 0.0
    %3656 = vmatpush1.msra.mxu0 0.0
    %3657 = vmatprep.subr.mxu0 0.0
    %3658 = vmatpush1.msra.mxu0 0.0
    %3659 = vmatprep.subr.mxu0 0.0
    %3660 = vmatpush1.msra.mxu0 0.0
    %3661 = vmatprep.subr.mxu0 0.0
    %3662 = vmatpush1.msra.mxu0 0.0
    %3663 = vmatprep.subr.mxu0 0.0
    %3664 = vmatpush1.msra.mxu0 0.0
    %3665 = vmatprep.subr.mxu0 0.0
    %3666 = vmatpush1.msra.mxu0 0.0
    %3667 = vmatprep.subr.mxu0 0.0
    %3668 = vmatpush1.msra.mxu0 0.0
    %3669 = vmatprep.subr.mxu0 0.0
    %3670 = vmatpush1.msra.mxu0 0.0
    %3671 = vmatprep.mubr.f32.mxu0 0.0
    %3672 = vmatmul.mubr.f32.gmra.mrb[0].mxu0 %v3530
    %v3673 = vpop.f32.mrb[0].mxu0
    %v3674 = vadd.f32 %v2310, %v3673
    %v3675 = vpop.f32.mrb[0].mxu0
    %3676 = vdwg.mxu0
    %3677 = vmatprep.subr.mxu0 0.0
    %3678 = vmatpush1.msra.mxu0 %v491
    %3679 = vmatprep.subr.mxu0 0.0
    %3680 = vmatpush1.msra.mxu0 %v492
    %3681 = vmatprep.subr.mxu0 0.0
    %3682 = vmatpush1.msra.mxu0 %v493
    %3683 = vmatprep.subr.mxu0 0.0
    %3684 = vmatpush1.msra.mxu0 %v494
    %3685 = vmatprep.subr.mxu0 0.0
    %3686 = vmatpush1.msra.mxu0 %v495
    %3687 = vmatprep.subr.mxu0 0.0
    %3688 = vmatpush1.msra.mxu0 %v496
    %3689 = vmatprep.subr.mxu0 0.0
    %3690 = vmatpush1.msra.mxu0 %v497
    %3691 = vmatprep.subr.mxu0 0.0
    %3692 = vmatpush1.msra.mxu0 %v498
    %3693 = vmatprep.subr.mxu0 0.0
    %3694 = vmatpush1.msra.mxu0 %v499
    %3695 = vmatprep.subr.mxu0 0.0
    %3696 = vmatpush1.msra.mxu0 %v500
    %3697 = vmatprep.subr.mxu0 0.0
    %3698 = vmatpush1.msra.mxu0 %v501
    %3699 = vmatprep.subr.mxu0 0.0
    %3700 = vmatpush1.msra.mxu0 %v502
    %3701 = vmatprep.subr.mxu0 0.0
    %3702 = vmatpush1.msra.mxu0 %v503
    %3703 = vmatprep.subr.mxu0 0.0
    %3704 = vmatpush1.msra.mxu0 %v504
    %3705 = vmatprep.subr.mxu0 0.0
    %3706 = vmatpush1.msra.mxu0 %v505
    %3707 = vmatprep.subr.mxu0 0.0
    %3708 = vmatpush1.msra.mxu0 %v506
    %3709 = vmatprep.subr.mxu0 0.0
    %3710 = vmatpush1.msra.mxu0 0.0
    %3711 = vmatprep.subr.mxu0 0.0
    %3712 = vmatpush1.msra.mxu0 0.0
    %3713 = vmatprep.subr.mxu0 0.0
    %3714 = vmatpush1.msra.mxu0 0.0
    %3715 = vmatprep.subr.mxu0 0.0
    %3716 = vmatpush1.msra.mxu0 0.0
    %3717 = vmatprep.subr.mxu0 0.0
    %3718 = vmatpush1.msra.mxu0 0.0
    %3719 = vmatprep.subr.mxu0 0.0
    %3720 = vmatpush1.msra.mxu0 0.0
    %3721 = vmatprep.subr.mxu0 0.0
    %3722 = vmatpush1.msra.mxu0 0.0
    %3723 = vmatprep.subr.mxu0 0.0
    %3724 = vmatpush1.msra.mxu0 0.0
    %3725 = vmatprep.subr.mxu0 0.0
    %3726 = vmatpush1.msra.mxu0 0.0
    %3727 = vmatprep.subr.mxu0 0.0
    %3728 = vmatpush1.msra.mxu0 0.0
    %3729 = vmatprep.subr.mxu0 0.0
    %3730 = vmatpush1.msra.mxu0 0.0
    %3731 = vmatprep.subr.mxu0 0.0
    %3732 = vmatpush1.msra.mxu0 0.0
    %3733 = vmatprep.subr.mxu0 0.0
    %3734 = vmatpush1.msra.mxu0 0.0
    %3735 = vmatprep.subr.mxu0 0.0
    %3736 = vmatpush1.msra.mxu0 0.0
    %3737 = vmatprep.subr.mxu0 0.0
    %3738 = vmatpush1.msra.mxu0 0.0
    %3739 = vmatprep.subr.mxu0 0.0
    %3740 = vmatpush1.msra.mxu0 0.0
    %3741 = vmatprep.mubr.f32.mxu0 0.0
    %3742 = vmatmul.mubr.f32.gmra.mrb[0].mxu0 %v3674
    %v3743 = vpop.f32.mrb[0].mxu0
    %v3744 = vadd.f32 0.0, %v3743
    %v3745 = vpop.f32.mrb[0].mxu0
    %3746 = vdwg.mxu0
    %v3747 = vsub.f32 %v3674, %v3744
    %v3748 = vmul.f32 %v3747, %v3747
    %3749 = vmatprep.subr.mxu0 0.0
    %3750 = vmatpush1.msra.mxu0 %v491
    %3751 = vmatprep.subr.mxu0 0.0
    %3752 = vmatpush1.msra.mxu0 %v492
    %3753 = vmatprep.subr.mxu0 0.0
    %3754 = vmatpush1.msra.mxu0 %v493
    %3755 = vmatprep.subr.mxu0 0.0
    %3756 = vmatpush1.msra.mxu0 %v494
    %3757 = vmatprep.subr.mxu0 0.0
    %3758 = vmatpush1.msra.mxu0 %v495
    %3759 = vmatprep.subr.mxu0 0.0
    %3760 = vmatpush1.msra.mxu0 %v496
    %3761 = vmatprep.subr.mxu0 0.0
    %3762 = vmatpush1.msra.mxu0 %v497
    %3763 = vmatprep.subr.mxu0 0.0
    %3764 = vmatpush1.msra.mxu0 %v498
    %3765 = vmatprep.subr.mxu0 0.0
    %3766 = vmatpush1.msra.mxu0 %v499
    %3767 = vmatprep.subr.mxu0 0.0
    %3768 = vmatpush1.msra.mxu0 %v500
    %3769 = vmatprep.subr.mxu0 0.0
    %3770 = vmatpush1.msra.mxu0 %v501
    %3771 = vmatprep.subr.mxu0 0.0
    %3772 = vmatpush1.msra.mxu0 %v502
    %3773 = vmatprep.subr.mxu0 0.0
    %3774 = vmatpush1.msra.mxu0 %v503
    %3775 = vmatprep.subr.mxu0 0.0
    %3776 = vmatpush1.msra.mxu0 %v504
    %3777 = vmatprep.subr.mxu0 0.0
    %3778 = vmatpush1.msra.mxu0 %v505
    %3779 = vmatprep.subr.mxu0 0.0
    %3780 = vmatpush1.msra.mxu0 %v506
    %3781 = vmatprep.subr.mxu0 0.0
    %3782 = vmatpush1.msra.mxu0 0.0
    %3783 = vmatprep.subr.mxu0 0.0
    %3784 = vmatpush1.msra.mxu0 0.0
    %3785 = vmatprep.subr.mxu0 0.0
    %3786 = vmatpush1.msra.mxu0 0.0
    %3787 = vmatprep.subr.mxu0 0.0
    %3788 = vmatpush1.msra.mxu0 0.0
    %3789 = vmatprep.subr.mxu0 0.0
    %3790 = vmatpush1.msra.mxu0 0.0
    %3791 = vmatprep.subr.mxu0 0.0
    %3792 = vmatpush1.msra.mxu0 0.0
    %3793 = vmatprep.subr.mxu0 0.0
    %3794 = vmatpush1.msra.mxu0 0.0
    %3795 = vmatprep.subr.mxu0 0.0
    %3796 = vmatpush1.msra.mxu0 0.0
    %3797 = vmatprep.subr.mxu0 0.0
    %3798 = vmatpush1.msra.mxu0 0.0
    %3799 = vmatprep.subr.mxu0 0.0
    %3800 = vmatpush1.msra.mxu0 0.0
    %3801 = vmatprep.subr.mxu0 0.0
    %3802 = vmatpush1.msra.mxu0 0.0
    %3803 = vmatprep.subr.mxu0 0.0
    %3804 = vmatpush1.msra.mxu0 0.0
    %3805 = vmatprep.subr.mxu0 0.0
    %3806 = vmatpush1.msra.mxu0 0.0
    %3807 = vmatprep.subr.mxu0 0.0
    %3808 = vmatpush1.msra.mxu0 0.0
    %3809 = vmatprep.subr.mxu0 0.0
    %3810 = vmatpush1.msra.mxu0 0.0
    %3811 = vmatprep.subr.mxu0 0.0
    %3812 = vmatpush1.msra.mxu0 0.0
    %3813 = vmatprep.mubr.f32.mxu0 0.0
    %3814 = vmatmul.mubr.f32.gmra.mrb[0].mxu0 %v3748
    %v3815 = vpop.f32.mrb[0].mxu0
    %v3816 = vadd.f32 1e-05, %v3815
    %v3817 = vpop.f32.mrb[0].mxu0
    %3818 = vdwg.mxu0
    %v3819 = vrsqrt.pop %v3816
    %v3820 = vmul.f32 %v3747, %v3819
    %v3821 = vmul.f32 %v3820, %v2532
    %v3822 = vadd.f32 %v3821, %v2537
    %v3823 = vadd.f32 %v1643, %v3822
    %v3824 = vxor.u32 %v3823, 2147483648
    %v3825 = vmul.f32 %v3824, 1.442695
    %v3826 = vpow.pop %v3825
    %v3827 = vadd.f32 %v3826, 1.0
    %v3828 = vrcp.pop %v3827
    %v3829 = vmul.f32 1.0, %v3828
    %v3830 = vtanh.pop %v3823
    %v3831 = vmul.f32 %v3829, %v3520
    %3833 = vrot.lane.b32.xlu0 %v3830, 64
    %v3834 = vpop.permute.xlu0 %3833
    %v3836 = vmul.f32 %v3829, %v3834
    %3838 = vrot.lane.b32.xlu0 %v3836, 96
    %v3839 = vpop.permute.xlu0 %3838
    %v3841 = vadd.f32 %v3831, %v3839
    %v3842 = vtanh.pop %v3841
    %3844 = vrot.lane.b32.xlu0 %v3842, 64
    %v3845 = vpop.permute.xlu0 %3844
    %v3847 = vmul.f32 %v3829, %v3845
    %3849 = vrot.lane.b32.xlu0 %v3847, 64
    %v3850 = vpop.permute.xlu0 %3849
    %v3851 = vsel %vm2311, %v3850, 0
    %3853 = vmatprep.subr.mxu0 0.0
    %3854 = vmatpush1.msra.mxu0 %v519
    %3855 = vmatprep.subr.mxu0 0.0
    %3856 = vmatpush1.msra.mxu0 %v520
    %3857 = vmatprep.subr.mxu0 0.0
    %3858 = vmatpush1.msra.mxu0 %v521
    %3859 = vmatprep.subr.mxu0 0.0
    %3860 = vmatpush1.msra.mxu0 %v522
    %3861 = vmatprep.subr.mxu0 0.0
    %3862 = vmatpush1.msra.mxu0 0.0
    %3863 = vmatprep.subr.mxu0 0.0
    %3864 = vmatpush1.msra.mxu0 0.0
    %3865 = vmatprep.subr.mxu0 0.0
    %3866 = vmatpush1.msra.mxu0 0.0
    %3867 = vmatprep.subr.mxu0 0.0
    %3868 = vmatpush1.msra.mxu0 0.0
    %3869 = vmatprep.subr.mxu0 0.0
    %3870 = vmatpush1.msra.mxu0 0.0
    %3871 = vmatprep.subr.mxu0 0.0
    %3872 = vmatpush1.msra.mxu0 0.0
    %3873 = vmatprep.subr.mxu0 0.0
    %3874 = vmatpush1.msra.mxu0 0.0
    %3875 = vmatprep.subr.mxu0 0.0
    %3876 = vmatpush1.msra.mxu0 0.0
    %3877 = vmatprep.subr.mxu0 0.0
    %3878 = vmatpush1.msra.mxu0 0.0
    %3879 = vmatprep.subr.mxu0 0.0
    %3880 = vmatpush1.msra.mxu0 0.0
    %3881 = vmatprep.subr.mxu0 0.0
    %3882 = vmatpush1.msra.mxu0 0.0
    %3883 = vmatprep.subr.mxu0 0.0
    %3884 = vmatpush1.msra.mxu0 0.0
    %3885 = vmatprep.subr.mxu0 0.0
    %3886 = vmatpush1.msra.mxu0 0.0
    %3887 = vmatprep.subr.mxu0 0.0
    %3888 = vmatpush1.msra.mxu0 0.0
    %3889 = vmatprep.subr.mxu0 0.0
    %3890 = vmatpush1.msra.mxu0 0.0
    %3891 = vmatprep.subr.mxu0 0.0
    %3892 = vmatpush1.msra.mxu0 0.0
    %3893 = vmatprep.subr.mxu0 0.0
    %3894 = vmatpush1.msra.mxu0 0.0
    %3895 = vmatprep.subr.mxu0 0.0
    %3896 = vmatpush1.msra.mxu0 0.0
    %3897 = vmatprep.subr.mxu0 0.0
    %3898 = vmatpush1.msra.mxu0 0.0
    %3899 = vmatprep.subr.mxu0 0.0
    %3900 = vmatpush1.msra.mxu0 0.0
    %3901 = vmatprep.subr.mxu0 0.0
    %3902 = vmatpush1.msra.mxu0 0.0
    %3903 = vmatprep.subr.mxu0 0.0
    %3904 = vmatpush1.msra.mxu0 0.0
    %3905 = vmatprep.subr.mxu0 0.0
    %3906 = vmatpush1.msra.mxu0 0.0
    %3907 = vmatprep.subr.mxu0 0.0
    %3908 = vmatpush1.msra.mxu0 0.0
    %3909 = vmatprep.subr.mxu0 0.0
    %3910 = vmatpush1.msra.mxu0 0.0
    %3911 = vmatprep.subr.mxu0 0.0
    %3912 = vmatpush1.msra.mxu0 0.0
    %3913 = vmatprep.subr.mxu0 0.0
    %3914 = vmatpush1.msra.mxu0 0.0
    %3915 = vmatprep.subr.mxu0 0.0
    %3916 = vmatpush1.msra.mxu0 0.0
    %3917 = vmatprep.mubr.f32.mxu0 0.0
    %3918 = vmatmul.mubr.f32.gmra.mrb[0].mxu0 %v3851
    %v3919 = vpop.f32.mrb[0].mxu0
    %v3920 = vadd.f32 0.0, %v3919
    %v3921 = vpop.f32.mrb[0].mxu0
    %3922 = vdwg.mxu0
    %vm3923 = vcmp.eq.s32.totalorder %v50, 4
    %v3924 = vsel %vm3923, 1, 0
    %v3925 = vcvt.s32.f32 %v3924
    %v3926 = vmul.f32 %v3920, %v3925
    %v3927 = vadd.f32 %v3606, %v3926
    %3928 = vmatprep.subr.mxu0 0.0
    %3929 = vmatpush1.msra.mxu0 %v515
    %3930 = vmatprep.subr.mxu0 0.0
    %3931 = vmatpush1.msra.mxu0 %v516
    %3932 = vmatprep.subr.mxu0 0.0
    %3933 = vmatpush1.msra.mxu0 %v517
    %3934 = vmatprep.subr.mxu0 0.0
    %3935 = vmatpush1.msra.mxu0 %v518
    %3936 = vmatprep.subr.mxu0 0.0
    %3937 = vmatpush1.msra.mxu0 0.0
    %3938 = vmatprep.subr.mxu0 0.0
    %3939 = vmatpush1.msra.mxu0 0.0
    %3940 = vmatprep.subr.mxu0 0.0
    %3941 = vmatpush1.msra.mxu0 0.0
    %3942 = vmatprep.subr.mxu0 0.0
    %3943 = vmatpush1.msra.mxu0 0.0
    %3944 = vmatprep.subr.mxu0 0.0
    %3945 = vmatpush1.msra.mxu0 0.0
    %3946 = vmatprep.subr.mxu0 0.0
    %3947 = vmatpush1.msra.mxu0 0.0
    %3948 = vmatprep.subr.mxu0 0.0
    %3949 = vmatpush1.msra.mxu0 0.0
    %3950 = vmatprep.subr.mxu0 0.0
    %3951 = vmatpush1.msra.mxu0 0.0
    %3952 = vmatprep.subr.mxu0 0.0
    %3953 = vmatpush1.msra.mxu0 0.0
    %3954 = vmatprep.subr.mxu0 0.0
    %3955 = vmatpush1.msra.mxu0 0.0
    %3956 = vmatprep.subr.mxu0 0.0
    %3957 = vmatpush1.msra.mxu0 0.0
    %3958 = vmatprep.subr.mxu0 0.0
    %3959 = vmatpush1.msra.mxu0 0.0
    %3960 = vmatprep.subr.mxu0 0.0
    %3961 = vmatpush1.msra.mxu0 0.0
    %3962 = vmatprep.subr.mxu0 0.0
    %3963 = vmatpush1.msra.mxu0 0.0
    %3964 = vmatprep.subr.mxu0 0.0
    %3965 = vmatpush1.msra.mxu0 0.0
    %3966 = vmatprep.subr.mxu0 0.0
    %3967 = vmatpush1.msra.mxu0 0.0
    %3968 = vmatprep.subr.mxu0 0.0
    %3969 = vmatpush1.msra.mxu0 0.0
    %3970 = vmatprep.subr.mxu0 0.0
    %3971 = vmatpush1.msra.mxu0 0.0
    %3972 = vmatprep.subr.mxu0 0.0
    %3973 = vmatpush1.msra.mxu0 0.0
    %3974 = vmatprep.subr.mxu0 0.0
    %3975 = vmatpush1.msra.mxu0 0.0
    %3976 = vmatprep.subr.mxu0 0.0
    %3977 = vmatpush1.msra.mxu0 0.0
    %3978 = vmatprep.subr.mxu0 0.0
    %3979 = vmatpush1.msra.mxu0 0.0
    %3980 = vmatprep.subr.mxu0 0.0
    %3981 = vmatpush1.msra.mxu0 0.0
    %3982 = vmatprep.subr.mxu0 0.0
    %3983 = vmatpush1.msra.mxu0 0.0
    %3984 = vmatprep.subr.mxu0 0.0
    %3985 = vmatpush1.msra.mxu0 0.0
    %3986 = vmatprep.subr.mxu0 0.0
    %3987 = vmatpush1.msra.mxu0 0.0
    %3988 = vmatprep.subr.mxu0 0.0
    %3989 = vmatpush1.msra.mxu0 0.0
    %3990 = vmatprep.subr.mxu0 0.0
    %3991 = vmatpush1.msra.mxu0 0.0
    %3992 = vmatprep.mubr.f32.mxu0 0.0
    %3993 = vmatmul.mubr.f32.gmra.mrb[0].mxu0 %v3851
    %v3994 = vpop.f32.mrb[0].mxu0
    %v3995 = vadd.f32 %v2310, %v3994
    %v3996 = vpop.f32.mrb[0].mxu0
    %3997 = vdwg.mxu0
    %3998 = vmatprep.subr.mxu0 0.0
    %3999 = vmatpush1.msra.mxu0 %v491
    %4000 = vmatprep.subr.mxu0 0.0
    %4001 = vmatpush1.msra.mxu0 %v492
    %4002 = vmatprep.subr.mxu0 0.0
    %4003 = vmatpush1.msra.mxu0 %v493
    %4004 = vmatprep.subr.mxu0 0.0
    %4005 = vmatpush1.msra.mxu0 %v494
    %4006 = vmatprep.subr.mxu0 0.0
    %4007 = vmatpush1.msra.mxu0 %v495
    %4008 = vmatprep.subr.mxu0 0.0
    %4009 = vmatpush1.msra.mxu0 %v496
    %4010 = vmatprep.subr.mxu0 0.0
    %4011 = vmatpush1.msra.mxu0 %v497
    %4012 = vmatprep.subr.mxu0 0.0
    %4013 = vmatpush1.msra.mxu0 %v498
    %4014 = vmatprep.subr.mxu0 0.0
    %4015 = vmatpush1.msra.mxu0 %v499
    %4016 = vmatprep.subr.mxu0 0.0
    %4017 = vmatpush1.msra.mxu0 %v500
    %4018 = vmatprep.subr.mxu0 0.0
    %4019 = vmatpush1.msra.mxu0 %v501
    %4020 = vmatprep.subr.mxu0 0.0
    %4021 = vmatpush1.msra.mxu0 %v502
    %4022 = vmatprep.subr.mxu0 0.0
    %4023 = vmatpush1.msra.mxu0 %v503
    %4024 = vmatprep.subr.mxu0 0.0
    %4025 = vmatpush1.msra.mxu0 %v504
    %4026 = vmatprep.subr.mxu0 0.0
    %4027 = vmatpush1.msra.mxu0 %v505
    %4028 = vmatprep.subr.mxu0 0.0
    %4029 = vmatpush1.msra.mxu0 %v506
    %4030 = vmatprep.subr.mxu0 0.0
    %4031 = vmatpush1.msra.mxu0 0.0
    %4032 = vmatprep.subr.mxu0 0.0
    %4033 = vmatpush1.msra.mxu0 0.0
    %4034 = vmatprep.subr.mxu0 0.0
    %4035 = vmatpush1.msra.mxu0 0.0
    %4036 = vmatprep.subr.mxu0 0.0
    %4037 = vmatpush1.msra.mxu0 0.0
    %4038 = vmatprep.subr.mxu0 0.0
    %4039 = vmatpush1.msra.mxu0 0.0
    %4040 = vmatprep.subr.mxu0 0.0
    %4041 = vmatpush1.msra.mxu0 0.0
    %4042 = vmatprep.subr.mxu0 0.0
    %4043 = vmatpush1.msra.mxu0 0.0
    %4044 = vmatprep.subr.mxu0 0.0
    %4045 = vmatpush1.msra.mxu0 0.0
    %4046 = vmatprep.subr.mxu0 0.0
    %4047 = vmatpush1.msra.mxu0 0.0
    %4048 = vmatprep.subr.mxu0 0.0
    %4049 = vmatpush1.msra.mxu0 0.0
    %4050 = vmatprep.subr.mxu0 0.0
    %4051 = vmatpush1.msra.mxu0 0.0
    %4052 = vmatprep.subr.mxu0 0.0
    %4053 = vmatpush1.msra.mxu0 0.0
    %4054 = vmatprep.subr.mxu0 0.0
    %4055 = vmatpush1.msra.mxu0 0.0
    %4056 = vmatprep.subr.mxu0 0.0
    %4057 = vmatpush1.msra.mxu0 0.0
    %4058 = vmatprep.subr.mxu0 0.0
    %4059 = vmatpush1.msra.mxu0 0.0
    %4060 = vmatprep.subr.mxu0 0.0
    %4061 = vmatpush1.msra.mxu0 0.0
    %4062 = vmatprep.mubr.f32.mxu0 0.0
    %4063 = vmatmul.mubr.f32.gmra.mrb[0].mxu0 %v3995
    %v4064 = vpop.f32.mrb[0].mxu0
    %v4065 = vadd.f32 0.0, %v4064
    %v4066 = vpop.f32.mrb[0].mxu0
    %4067 = vdwg.mxu0
    %v4068 = vsub.f32 %v3995, %v4065
    %v4069 = vmul.f32 %v4068, %v4068
    %4070 = vmatprep.subr.mxu0 0.0
    %4071 = vmatpush1.msra.mxu0 %v491
    %4072 = vmatprep.subr.mxu0 0.0
    %4073 = vmatpush1.msra.mxu0 %v492
    %4074 = vmatprep.subr.mxu0 0.0
    %4075 = vmatpush1.msra.mxu0 %v493
    %4076 = vmatprep.subr.mxu0 0.0
    %4077 = vmatpush1.msra.mxu0 %v494
    %4078 = vmatprep.subr.mxu0 0.0
    %4079 = vmatpush1.msra.mxu0 %v495
    %4080 = vmatprep.subr.mxu0 0.0
    %4081 = vmatpush1.msra.mxu0 %v496
    %4082 = vmatprep.subr.mxu0 0.0
    %4083 = vmatpush1.msra.mxu0 %v497
    %4084 = vmatprep.subr.mxu0 0.0
    %4085 = vmatpush1.msra.mxu0 %v498
    %4086 = vmatprep.subr.mxu0 0.0
    %4087 = vmatpush1.msra.mxu0 %v499
    %4088 = vmatprep.subr.mxu0 0.0
    %4089 = vmatpush1.msra.mxu0 %v500
    %4090 = vmatprep.subr.mxu0 0.0
    %4091 = vmatpush1.msra.mxu0 %v501
    %4092 = vmatprep.subr.mxu0 0.0
    %4093 = vmatpush1.msra.mxu0 %v502
    %4094 = vmatprep.subr.mxu0 0.0
    %4095 = vmatpush1.msra.mxu0 %v503
    %4096 = vmatprep.subr.mxu0 0.0
    %4097 = vmatpush1.msra.mxu0 %v504
    %4098 = vmatprep.subr.mxu0 0.0
    %4099 = vmatpush1.msra.mxu0 %v505
    %4100 = vmatprep.subr.mxu0 0.0
    %4101 = vmatpush1.msra.mxu0 %v506
    %4102 = vmatprep.subr.mxu0 0.0
    %4103 = vmatpush1.msra.mxu0 0.0
    %4104 = vmatprep.subr.mxu0 0.0
    %4105 = vmatpush1.msra.mxu0 0.0
    %4106 = vmatprep.subr.mxu0 0.0
    %4107 = vmatpush1.msra.mxu0 0.0
    %4108 = vmatprep.subr.mxu0 0.0
    %4109 = vmatpush1.msra.mxu0 0.0
    %4110 = vmatprep.subr.mxu0 0.0
    %4111 = vmatpush1.msra.mxu0 0.0
    %4112 = vmatprep.subr.mxu0 0.0
    %4113 = vmatpush1.msra.mxu0 0.0
    %4114 = vmatprep.subr.mxu0 0.0
    %4115 = vmatpush1.msra.mxu0 0.0
    %4116 = vmatprep.subr.mxu0 0.0
    %4117 = vmatpush1.msra.mxu0 0.0
    %4118 = vmatprep.subr.mxu0 0.0
    %4119 = vmatpush1.msra.mxu0 0.0
    %4120 = vmatprep.subr.mxu0 0.0
    %4121 = vmatpush1.msra.mxu0 0.0
    %4122 = vmatprep.subr.mxu0 0.0
    %4123 = vmatpush1.msra.mxu0 0.0
    %4124 = vmatprep.subr.mxu0 0.0
    %4125 = vmatpush1.msra.mxu0 0.0
    %4126 = vmatprep.subr.mxu0 0.0
    %4127 = vmatpush1.msra.mxu0 0.0
    %4128 = vmatprep.subr.mxu0 0.0
    %4129 = vmatpush1.msra.mxu0 0.0
    %4130 = vmatprep.subr.mxu0 0.0
    %4131 = vmatpush1.msra.mxu0 0.0
    %4132 = vmatprep.subr.mxu0 0.0
    %4133 = vmatpush1.msra.mxu0 0.0
    %4134 = vmatprep.mubr.f32.mxu0 0.0
    %4135 = vmatmul.mubr.f32.gmra.mrb[0].mxu0 %v4069
    %v4136 = vpop.f32.mrb[0].mxu0
    %v4137 = vadd.f32 1e-05, %v4136
    %v4138 = vpop.f32.mrb[0].mxu0
    %4139 = vdwg.mxu0
    %v4140 = vrsqrt.pop %v4137
    %v4141 = vmul.f32 %v4068, %v4140
    %v4142 = vmul.f32 %v4141, %v2532
    %v4143 = vadd.f32 %v4142, %v2537
    %v4144 = vadd.f32 %v1864, %v4143
    %v4145 = vxor.u32 %v4144, 2147483648
    %v4146 = vmul.f32 %v4145, 1.442695
    %v4147 = vpow.pop %v4146
    %v4148 = vadd.f32 %v4147, 1.0
    %v4149 = vrcp.pop %v4148
    %v4150 = vmul.f32 1.0, %v4149
    %v4151 = vtanh.pop %v4144
    %v4152 = vmul.f32 %v4150, %v3841
    %4154 = vrot.lane.b32.xlu0 %v4151, 64
    %v4155 = vpop.permute.xlu0 %4154
    %v4157 = vmul.f32 %v4150, %v4155
    %4159 = vrot.lane.b32.xlu0 %v4157, 96
    %v4160 = vpop.permute.xlu0 %4159
    %v4162 = vadd.f32 %v4152, %v4160
    %v4163 = vtanh.pop %v4162
    %4165 = vrot.lane.b32.xlu0 %v4163, 64
    %v4166 = vpop.permute.xlu0 %4165
    %v4168 = vmul.f32 %v4150, %v4166
    %4170 = vrot.lane.b32.xlu0 %v4168, 64
    %v4171 = vpop.permute.xlu0 %4170
    %v4172 = vsel %vm2311, %v4171, 0
    %4174 = vmatprep.subr.mxu0 0.0
    %4175 = vmatpush1.msra.mxu0 %v519
    %4176 = vmatprep.subr.mxu0 0.0
    %4177 = vmatpush1.msra.mxu0 %v520
    %4178 = vmatprep.subr.mxu0 0.0
    %4179 = vmatpush1.msra.mxu0 %v521
    %4180 = vmatprep.subr.mxu0 0.0
    %4181 = vmatpush1.msra.mxu0 %v522
    %4182 = vmatprep.subr.mxu0 0.0
    %4183 = vmatpush1.msra.mxu0 0.0
    %4184 = vmatprep.subr.mxu0 0.0
    %4185 = vmatpush1.msra.mxu0 0.0
    %4186 = vmatprep.subr.mxu0 0.0
    %4187 = vmatpush1.msra.mxu0 0.0
    %4188 = vmatprep.subr.mxu0 0.0
    %4189 = vmatpush1.msra.mxu0 0.0
    %4190 = vmatprep.subr.mxu0 0.0
    %4191 = vmatpush1.msra.mxu0 0.0
    %4192 = vmatprep.subr.mxu0 0.0
    %4193 = vmatpush1.msra.mxu0 0.0
    %4194 = vmatprep.subr.mxu0 0.0
    %4195 = vmatpush1.msra.mxu0 0.0
    %4196 = vmatprep.subr.mxu0 0.0
    %4197 = vmatpush1.msra.mxu0 0.0
    %4198 = vmatprep.subr.mxu0 0.0
    %4199 = vmatpush1.msra.mxu0 0.0
    %4200 = vmatprep.subr.mxu0 0.0
    %4201 = vmatpush1.msra.mxu0 0.0
    %4202 = vmatprep.subr.mxu0 0.0
    %4203 = vmatpush1.msra.mxu0 0.0
    %4204 = vmatprep.subr.mxu0 0.0
    %4205 = vmatpush1.msra.mxu0 0.0
    %4206 = vmatprep.subr.mxu0 0.0
    %4207 = vmatpush1.msra.mxu0 0.0
    %4208 = vmatprep.subr.mxu0 0.0
    %4209 = vmatpush1.msra.mxu0 0.0
    %4210 = vmatprep.subr.mxu0 0.0
    %4211 = vmatpush1.msra.mxu0 0.0
    %4212 = vmatprep.subr.mxu0 0.0
    %4213 = vmatpush1.msra.mxu0 0.0
    %4214 = vmatprep.subr.mxu0 0.0
    %4215 = vmatpush1.msra.mxu0 0.0
    %4216 = vmatprep.subr.mxu0 0.0
    %4217 = vmatpush1.msra.mxu0 0.0
    %4218 = vmatprep.subr.mxu0 0.0
    %4219 = vmatpush1.msra.mxu0 0.0
    %4220 = vmatprep.subr.mxu0 0.0
    %4221 = vmatpush1.msra.mxu0 0.0
    %4222 = vmatprep.subr.mxu0 0.0
    %4223 = vmatpush1.msra.mxu0 0.0
    %4224 = vmatprep.subr.mxu0 0.0
    %4225 = vmatpush1.msra.mxu0 0.0
    %4226 = vmatprep.subr.mxu0 0.0
    %4227 = vmatpush1.msra.mxu0 0.0
    %4228 = vmatprep.subr.mxu0 0.0
    %4229 = vmatpush1.msra.mxu0 0.0
    %4230 = vmatprep.subr.mxu0 0.0
    %4231 = vmatpush1.msra.mxu0 0.0
    %4232 = vmatprep.subr.mxu0 0.0
    %4233 = vmatpush1.msra.mxu0 0.0
    %4234 = vmatprep.subr.mxu0 0.0
    %4235 = vmatpush1.msra.mxu0 0.0
    %4236 = vmatprep.subr.mxu0 0.0
    %4237 = vmatpush1.msra.mxu0 0.0
    %4238 = vmatprep.mubr.f32.mxu0 0.0
    %4239 = vmatmul.mubr.f32.gmra.mrb[0].mxu0 %v4172
    %v4240 = vpop.f32.mrb[0].mxu0
    %v4241 = vadd.f32 0.0, %v4240
    %v4242 = vpop.f32.mrb[0].mxu0
    %4243 = vdwg.mxu0
    %vm4244 = vcmp.eq.s32.totalorder %v50, 5
    %v4245 = vsel %vm4244, 1, 0
    %v4246 = vcvt.s32.f32 %v4245
    %v4247 = vmul.f32 %v4241, %v4246
    %v4248 = vadd.f32 %v3927, %v4247
    %4249 = vmatprep.subr.mxu0 0.0
    %4250 = vmatpush1.msra.mxu0 %v515
    %4251 = vmatprep.subr.mxu0 0.0
    %4252 = vmatpush1.msra.mxu0 %v516
    %4253 = vmatprep.subr.mxu0 0.0
    %4254 = vmatpush1.msra.mxu0 %v517
    %4255 = vmatprep.subr.mxu0 0.0
    %4256 = vmatpush1.msra.mxu0 %v518
    %4257 = vmatprep.subr.mxu0 0.0
    %4258 = vmatpush1.msra.mxu0 0.0
    %4259 = vmatprep.subr.mxu0 0.0
    %4260 = vmatpush1.msra.mxu0 0.0
    %4261 = vmatprep.subr.mxu0 0.0
    %4262 = vmatpush1.msra.mxu0 0.0
    %4263 = vmatprep.subr.mxu0 0.0
    %4264 = vmatpush1.msra.mxu0 0.0
    %4265 = vmatprep.subr.mxu0 0.0
    %4266 = vmatpush1.msra.mxu0 0.0
    %4267 = vmatprep.subr.mxu0 0.0
    %4268 = vmatpush1.msra.mxu0 0.0
    %4269 = vmatprep.subr.mxu0 0.0
    %4270 = vmatpush1.msra.mxu0 0.0
    %4271 = vmatprep.subr.mxu0 0.0
    %4272 = vmatpush1.msra.mxu0 0.0
    %4273 = vmatprep.subr.mxu0 0.0
    %4274 = vmatpush1.msra.mxu0 0.0
    %4275 = vmatprep.subr.mxu0 0.0
    %4276 = vmatpush1.msra.mxu0 0.0
    %4277 = vmatprep.subr.mxu0 0.0
    %4278 = vmatpush1.msra.mxu0 0.0
    %4279 = vmatprep.subr.mxu0 0.0
    %4280 = vmatpush1.msra.mxu0 0.0
    %4281 = vmatprep.subr.mxu0 0.0
    %4282 = vmatpush1.msra.mxu0 0.0
    %4283 = vmatprep.subr.mxu0 0.0
    %4284 = vmatpush1.msra.mxu0 0.0
    %4285 = vmatprep.subr.mxu0 0.0
    %4286 = vmatpush1.msra.mxu0 0.0
    %4287 = vmatprep.subr.mxu0 0.0
    %4288 = vmatpush1.msra.mxu0 0.0
    %4289 = vmatprep.subr.mxu0 0.0
    %4290 = vmatpush1.msra.mxu0 0.0
    %4291 = vmatprep.subr.mxu0 0.0
    %4292 = vmatpush1.msra.mxu0 0.0
    %4293 = vmatprep.subr.mxu0 0.0
    %4294 = vmatpush1.msra.mxu0 0.0
    %4295 = vmatprep.subr.mxu0 0.0
    %4296 = vmatpush1.msra.mxu0 0.0
    %4297 = vmatprep.subr.mxu0 0.0
    %4298 = vmatpush1.msra.mxu0 0.0
    %4299 = vmatprep.subr.mxu0 0.0
    %4300 = vmatpush1.msra.mxu0 0.0
    %4301 = vmatprep.subr.mxu0 0.0
    %4302 = vmatpush1.msra.mxu0 0.0
    %4303 = vmatprep.subr.mxu0 0.0
    %4304 = vmatpush1.msra.mxu0 0.0
    %4305 = vmatprep.subr.mxu0 0.0
    %4306 = vmatpush1.msra.mxu0 0.0
    %4307 = vmatprep.subr.mxu0 0.0
    %4308 = vmatpush1.msra.mxu0 0.0
    %4309 = vmatprep.subr.mxu0 0.0
    %4310 = vmatpush1.msra.mxu0 0.0
    %4311 = vmatprep.subr.mxu0 0.0
    %4312 = vmatpush1.msra.mxu0 0.0
    %4313 = vmatprep.mubr.f32.mxu0 0.0
    %4314 = vmatmul.mubr.f32.gmra.mrb[0].mxu0 %v4172
    %v4315 = vpop.f32.mrb[0].mxu0
    %v4316 = vadd.f32 %v2310, %v4315
    %v4317 = vpop.f32.mrb[0].mxu0
    %4318 = vdwg.mxu0
    %4319 = vmatprep.subr.mxu0 0.0
    %4320 = vmatpush1.msra.mxu0 %v491
    %4321 = vmatprep.subr.mxu0 0.0
    %4322 = vmatpush1.msra.mxu0 %v492
    %4323 = vmatprep.subr.mxu0 0.0
    %4324 = vmatpush1.msra.mxu0 %v493
    %4325 = vmatprep.subr.mxu0 0.0
    %4326 = vmatpush1.msra.mxu0 %v494
    %4327 = vmatprep.subr.mxu0 0.0
    %4328 = vmatpush1.msra.mxu0 %v495
    %4329 = vmatprep.subr.mxu0 0.0
    %4330 = vmatpush1.msra.mxu0 %v496
    %4331 = vmatprep.subr.mxu0 0.0
    %4332 = vmatpush1.msra.mxu0 %v497
    %4333 = vmatprep.subr.mxu0 0.0
    %4334 = vmatpush1.msra.mxu0 %v498
    %4335 = vmatprep.subr.mxu0 0.0
    %4336 = vmatpush1.msra.mxu0 %v499
    %4337 = vmatprep.subr.mxu0 0.0
    %4338 = vmatpush1.msra.mxu0 %v500
    %4339 = vmatprep.subr.mxu0 0.0
    %4340 = vmatpush1.msra.mxu0 %v501
    %4341 = vmatprep.subr.mxu0 0.0
    %4342 = vmatpush1.msra.mxu0 %v502
    %4343 = vmatprep.subr.mxu0 0.0
    %4344 = vmatpush1.msra.mxu0 %v503
    %4345 = vmatprep.subr.mxu0 0.0
    %4346 = vmatpush1.msra.mxu0 %v504
    %4347 = vmatprep.subr.mxu0 0.0
    %4348 = vmatpush1.msra.mxu0 %v505
    %4349 = vmatprep.subr.mxu0 0.0
    %4350 = vmatpush1.msra.mxu0 %v506
    %4351 = vmatprep.subr.mxu0 0.0
    %4352 = vmatpush1.msra.mxu0 0.0
    %4353 = vmatprep.subr.mxu0 0.0
    %4354 = vmatpush1.msra.mxu0 0.0
    %4355 = vmatprep.subr.mxu0 0.0
    %4356 = vmatpush1.msra.mxu0 0.0
    %4357 = vmatprep.subr.mxu0 0.0
    %4358 = vmatpush1.msra.mxu0 0.0
    %4359 = vmatprep.subr.mxu0 0.0
    %4360 = vmatpush1.msra.mxu0 0.0
    %4361 = vmatprep.subr.mxu0 0.0
    %4362 = vmatpush1.msra.mxu0 0.0
    %4363 = vmatprep.subr.mxu0 0.0
    %4364 = vmatpush1.msra.mxu0 0.0
    %4365 = vmatprep.subr.mxu0 0.0
    %4366 = vmatpush1.msra.mxu0 0.0
    %4367 = vmatprep.subr.mxu0 0.0
    %4368 = vmatpush1.msra.mxu0 0.0
    %4369 = vmatprep.subr.mxu0 0.0
    %4370 = vmatpush1.msra.mxu0 0.0
    %4371 = vmatprep.subr.mxu0 0.0
    %4372 = vmatpush1.msra.mxu0 0.0
    %4373 = vmatprep.subr.mxu0 0.0
    %4374 = vmatpush1.msra.mxu0 0.0
    %4375 = vmatprep.subr.mxu0 0.0
    %4376 = vmatpush1.msra.mxu0 0.0
    %4377 = vmatprep.subr.mxu0 0.0
    %4378 = vmatpush1.msra.mxu0 0.0
    %4379 = vmatprep.subr.mxu0 0.0
    %4380 = vmatpush1.msra.mxu0 0.0
    %4381 = vmatprep.subr.mxu0 0.0
    %4382 = vmatpush1.msra.mxu0 0.0
    %4383 = vmatprep.mubr.f32.mxu0 0.0
    %4384 = vmatmul.mubr.f32.gmra.mrb[0].mxu0 %v4316
    %v4385 = vpop.f32.mrb[0].mxu0
    %v4386 = vadd.f32 0.0, %v4385
    %v4387 = vpop.f32.mrb[0].mxu0
    %4388 = vdwg.mxu0
    %v4389 = vsub.f32 %v4316, %v4386
    %v4390 = vmul.f32 %v4389, %v4389
    %4391 = vmatprep.subr.mxu0 0.0
    %4392 = vmatpush1.msra.mxu0 %v491
    %4393 = vmatprep.subr.mxu0 0.0
    %4394 = vmatpush1.msra.mxu0 %v492
    %4395 = vmatprep.subr.mxu0 0.0
    %4396 = vmatpush1.msra.mxu0 %v493
    %4397 = vmatprep.subr.mxu0 0.0
    %4398 = vmatpush1.msra.mxu0 %v494
    %4399 = vmatprep.subr.mxu0 0.0
    %4400 = vmatpush1.msra.mxu0 %v495
    %4401 = vmatprep.subr.mxu0 0.0
    %4402 = vmatpush1.msra.mxu0 %v496
    %4403 = vmatprep.subr.mxu0 0.0
    %4404 = vmatpush1.msra.mxu0 %v497
    %4405 = vmatprep.subr.mxu0 0.0
    %4406 = vmatpush1.msra.mxu0 %v498
    %4407 = vmatprep.subr.mxu0 0.0
    %4408 = vmatpush1.msra.mxu0 %v499
    %4409 = vmatprep.subr.mxu0 0.0
    %4410 = vmatpush1.msra.mxu0 %v500
    %4411 = vmatprep.subr.mxu0 0.0
    %4412 = vmatpush1.msra.mxu0 %v501
    %4413 = vmatprep.subr.mxu0 0.0
    %4414 = vmatpush1.msra.mxu0 %v502
    %4415 = vmatprep.subr.mxu0 0.0
    %4416 = vmatpush1.msra.mxu0 %v503
    %4417 = vmatprep.subr.mxu0 0.0
    %4418 = vmatpush1.msra.mxu0 %v504
    %4419 = vmatprep.subr.mxu0 0.0
    %4420 = vmatpush1.msra.mxu0 %v505
    %4421 = vmatprep.subr.mxu0 0.0
    %4422 = vmatpush1.msra.mxu0 %v506
    %4423 = vmatprep.subr.mxu0 0.0
    %4424 = vmatpush1.msra.mxu0 0.0
    %4425 = vmatprep.subr.mxu0 0.0
    %4426 = vmatpush1.msra.mxu0 0.0
    %4427 = vmatprep.subr.mxu0 0.0
    %4428 = vmatpush1.msra.mxu0 0.0
    %4429 = vmatprep.subr.mxu0 0.0
    %4430 = vmatpush1.msra.mxu0 0.0
    %4431 = vmatprep.subr.mxu0 0.0
    %4432 = vmatpush1.msra.mxu0 0.0
    %4433 = vmatprep.subr.mxu0 0.0
    %4434 = vmatpush1.msra.mxu0 0.0
    %4435 = vmatprep.subr.mxu0 0.0
    %4436 = vmatpush1.msra.mxu0 0.0
    %4437 = vmatprep.subr.mxu0 0.0
    %4438 = vmatpush1.msra.mxu0 0.0
    %4439 = vmatprep.subr.mxu0 0.0
    %4440 = vmatpush1.msra.mxu0 0.0
    %4441 = vmatprep.subr.mxu0 0.0
    %4442 = vmatpush1.msra.mxu0 0.0
    %4443 = vmatprep.subr.mxu0 0.0
    %4444 = vmatpush1.msra.mxu0 0.0
    %4445 = vmatprep.subr.mxu0 0.0
    %4446 = vmatpush1.msra.mxu0 0.0
    %4447 = vmatprep.subr.mxu0 0.0
    %4448 = vmatpush1.msra.mxu0 0.0
    %4449 = vmatprep.subr.mxu0 0.0
    %4450 = vmatpush1.msra.mxu0 0.0
    %4451 = vmatprep.subr.mxu0 0.0
    %4452 = vmatpush1.msra.mxu0 0.0
    %4453 = vmatprep.subr.mxu0 0.0
    %4454 = vmatpush1.msra.mxu0 0.0
    %4455 = vmatprep.mubr.f32.mxu0 0.0
    %4456 = vmatmul.mubr.f32.gmra.mrb[0].mxu0 %v4390
    %v4457 = vpop.f32.mrb[0].mxu0
    %v4458 = vadd.f32 1e-05, %v4457
    %v4459 = vpop.f32.mrb[0].mxu0
    %4460 = vdwg.mxu0
    %v4461 = vrsqrt.pop %v4458
    %v4462 = vmul.f32 %v4389, %v4461
    %v4463 = vmul.f32 %v4462, %v2532
    %v4464 = vadd.f32 %v4463, %v2537
    %v4465 = vadd.f32 %v2085, %v4464
    %v4466 = vxor.u32 %v4465, 2147483648
    %v4467 = vmul.f32 %v4466, 1.442695
    %v4468 = vpow.pop %v4467
    %v4469 = vadd.f32 %v4468, 1.0
    %v4470 = vrcp.pop %v4469
    %v4471 = vmul.f32 1.0, %v4470
    %v4472 = vtanh.pop %v4465
    %v4473 = vmul.f32 %v4471, %v4162
    %4475 = vrot.lane.b32.xlu0 %v4472, 64
    %v4476 = vpop.permute.xlu0 %4475
    %v4478 = vmul.f32 %v4471, %v4476
    %4480 = vrot.lane.b32.xlu0 %v4478, 96
    %v4481 = vpop.permute.xlu0 %4480
    %v4483 = vadd.f32 %v4473, %v4481
    %v4484 = vtanh.pop %v4483
    %4486 = vrot.lane.b32.xlu0 %v4484, 64
    %v4487 = vpop.permute.xlu0 %4486
    %v4489 = vmul.f32 %v4471, %v4487
    %4491 = vrot.lane.b32.xlu0 %v4489, 64
    %v4492 = vpop.permute.xlu0 %4491
    %v4493 = vsel %vm2311, %v4492, 0
    %4495 = vmatprep.subr.mxu0 0.0
    %4496 = vmatpush1.msra.mxu0 %v519
    %4497 = vmatprep.subr.mxu0 0.0
    %4498 = vmatpush1.msra.mxu0 %v520
    %4499 = vmatprep.subr.mxu0 0.0
    %4500 = vmatpush1.msra.mxu0 %v521
    %4501 = vmatprep.subr.mxu0 0.0
    %4502 = vmatpush1.msra.mxu0 %v522
    %4503 = vmatprep.subr.mxu0 0.0
    %4504 = vmatpush1.msra.mxu0 0.0
    %4505 = vmatprep.subr.mxu0 0.0
    %4506 = vmatpush1.msra.mxu0 0.0
    %4507 = vmatprep.subr.mxu0 0.0
    %4508 = vmatpush1.msra.mxu0 0.0
    %4509 = vmatprep.subr.mxu0 0.0
    %4510 = vmatpush1.msra.mxu0 0.0
    %4511 = vmatprep.subr.mxu0 0.0
    %4512 = vmatpush1.msra.mxu0 0.0
    %4513 = vmatprep.subr.mxu0 0.0
    %4514 = vmatpush1.msra.mxu0 0.0
    %4515 = vmatprep.subr.mxu0 0.0
    %4516 = vmatpush1.msra.mxu0 0.0
    %4517 = vmatprep.subr.mxu0 0.0
    %4518 = vmatpush1.msra.mxu0 0.0
    %4519 = vmatprep.subr.mxu0 0.0
    %4520 = vmatpush1.msra.mxu0 0.0
    %4521 = vmatprep.subr.mxu0 0.0
    %4522 = vmatpush1.msra.mxu0 0.0
    %4523 = vmatprep.subr.mxu0 0.0
    %4524 = vmatpush1.msra.mxu0 0.0
    %4525 = vmatprep.subr.mxu0 0.0
    %4526 = vmatpush1.msra.mxu0 0.0
    %4527 = vmatprep.subr.mxu0 0.0
    %4528 = vmatpush1.msra.mxu0 0.0
    %4529 = vmatprep.subr.mxu0 0.0
    %4530 = vmatpush1.msra.mxu0 0.0
    %4531 = vmatprep.subr.mxu0 0.0
    %4532 = vmatpush1.msra.mxu0 0.0
    %4533 = vmatprep.subr.mxu0 0.0
    %4534 = vmatpush1.msra.mxu0 0.0
    %4535 = vmatprep.subr.mxu0 0.0
    %4536 = vmatpush1.msra.mxu0 0.0
    %4537 = vmatprep.subr.mxu0 0.0
    %4538 = vmatpush1.msra.mxu0 0.0
    %4539 = vmatprep.subr.mxu0 0.0
    %4540 = vmatpush1.msra.mxu0 0.0
    %4541 = vmatprep.subr.mxu0 0.0
    %4542 = vmatpush1.msra.mxu0 0.0
    %4543 = vmatprep.subr.mxu0 0.0
    %4544 = vmatpush1.msra.mxu0 0.0
    %4545 = vmatprep.subr.mxu0 0.0
    %4546 = vmatpush1.msra.mxu0 0.0
    %4547 = vmatprep.subr.mxu0 0.0
    %4548 = vmatpush1.msra.mxu0 0.0
    %4549 = vmatprep.subr.mxu0 0.0
    %4550 = vmatpush1.msra.mxu0 0.0
    %4551 = vmatprep.subr.mxu0 0.0
    %4552 = vmatpush1.msra.mxu0 0.0
    %4553 = vmatprep.subr.mxu0 0.0
    %4554 = vmatpush1.msra.mxu0 0.0
    %4555 = vmatprep.subr.mxu0 0.0
    %4556 = vmatpush1.msra.mxu0 0.0
    %4557 = vmatprep.subr.mxu0 0.0
    %4558 = vmatpush1.msra.mxu0 0.0
    %4559 = vmatprep.mubr.f32.mxu0 0.0
    %4560 = vmatmul.mubr.f32.gmra.mrb[0].mxu0 %v4493
    %v4561 = vpop.f32.mrb[0].mxu0
    %v4562 = vadd.f32 0.0, %v4561
    %v4563 = vpop.f32.mrb[0].mxu0
    %4564 = vdwg.mxu0
    %vm4565 = vcmp.eq.s32.totalorder %v50, 6
    %v4566 = vsel %vm4565, 1, 0
    %v4567 = vcvt.s32.f32 %v4566
    %v4568 = vmul.f32 %v4562, %v4567
    %v4569 = vadd.f32 %v4248, %v4568
    %4570 = vmatprep.subr.mxu0 0.0
    %4571 = vmatpush1.msra.mxu0 %v515
    %4572 = vmatprep.subr.mxu0 0.0
    %4573 = vmatpush1.msra.mxu0 %v516
    %4574 = vmatprep.subr.mxu0 0.0
    %4575 = vmatpush1.msra.mxu0 %v517
    %4576 = vmatprep.subr.mxu0 0.0
    %4577 = vmatpush1.msra.mxu0 %v518
    %4578 = vmatprep.subr.mxu0 0.0
    %4579 = vmatpush1.msra.mxu0 0.0
    %4580 = vmatprep.subr.mxu0 0.0
    %4581 = vmatpush1.msra.mxu0 0.0
    %4582 = vmatprep.subr.mxu0 0.0
    %4583 = vmatpush1.msra.mxu0 0.0
    %4584 = vmatprep.subr.mxu0 0.0
    %4585 = vmatpush1.msra.mxu0 0.0
    %4586 = vmatprep.subr.mxu0 0.0
    %4587 = vmatpush1.msra.mxu0 0.0
    %4588 = vmatprep.subr.mxu0 0.0
    %4589 = vmatpush1.msra.mxu0 0.0
    %4590 = vmatprep.subr.mxu0 0.0
    %4591 = vmatpush1.msra.mxu0 0.0
    %4592 = vmatprep.subr.mxu0 0.0
    %4593 = vmatpush1.msra.mxu0 0.0
    %4594 = vmatprep.subr.mxu0 0.0
    %4595 = vmatpush1.msra.mxu0 0.0
    %4596 = vmatprep.subr.mxu0 0.0
    %4597 = vmatpush1.msra.mxu0 0.0
    %4598 = vmatprep.subr.mxu0 0.0
    %4599 = vmatpush1.msra.mxu0 0.0
    %4600 = vmatprep.subr.mxu0 0.0
    %4601 = vmatpush1.msra.mxu0 0.0
    %4602 = vmatprep.subr.mxu0 0.0
    %4603 = vmatpush1.msra.mxu0 0.0
    %4604 = vmatprep.subr.mxu0 0.0
    %4605 = vmatpush1.msra.mxu0 0.0
    %4606 = vmatprep.subr.mxu0 0.0
    %4607 = vmatpush1.msra.mxu0 0.0
    %4608 = vmatprep.subr.mxu0 0.0
    %4609 = vmatpush1.msra.mxu0 0.0
    %4610 = vmatprep.subr.mxu0 0.0
    %4611 = vmatpush1.msra.mxu0 0.0
    %4612 = vmatprep.subr.mxu0 0.0
    %4613 = vmatpush1.msra.mxu0 0.0
    %4614 = vmatprep.subr.mxu0 0.0
    %4615 = vmatpush1.msra.mxu0 0.0
    %4616 = vmatprep.subr.mxu0 0.0
    %4617 = vmatpush1.msra.mxu0 0.0
    %4618 = vmatprep.subr.mxu0 0.0
    %4619 = vmatpush1.msra.mxu0 0.0
    %4620 = vmatprep.subr.mxu0 0.0
    %4621 = vmatpush1.msra.mxu0 0.0
    %4622 = vmatprep.subr.mxu0 0.0
    %4623 = vmatpush1.msra.mxu0 0.0
    %4624 = vmatprep.subr.mxu0 0.0
    %4625 = vmatpush1.msra.mxu0 0.0
    %4626 = vmatprep.subr.mxu0 0.0
    %4627 = vmatpush1.msra.mxu0 0.0
    %4628 = vmatprep.subr.mxu0 0.0
    %4629 = vmatpush1.msra.mxu0 0.0
    %4630 = vmatprep.subr.mxu0 0.0
    %4631 = vmatpush1.msra.mxu0 0.0
    %4632 = vmatprep.subr.mxu0 0.0
    %4633 = vmatpush1.msra.mxu0 0.0
    %4634 = vmatprep.mubr.f32.mxu0 0.0
    %4635 = vmatmul.mubr.f32.gmra.mrb[0].mxu0 %v4493
    %v4636 = vpop.f32.mrb[0].mxu0
    %v4637 = vadd.f32 %v2310, %v4636
    %v4638 = vpop.f32.mrb[0].mxu0
    %4639 = vdwg.mxu0
    %4640 = vmatprep.subr.mxu0 0.0
    %4641 = vmatpush1.msra.mxu0 %v491
    %4642 = vmatprep.subr.mxu0 0.0
    %4643 = vmatpush1.msra.mxu0 %v492
    %4644 = vmatprep.subr.mxu0 0.0
    %4645 = vmatpush1.msra.mxu0 %v493
    %4646 = vmatprep.subr.mxu0 0.0
    %4647 = vmatpush1.msra.mxu0 %v494
    %4648 = vmatprep.subr.mxu0 0.0
    %4649 = vmatpush1.msra.mxu0 %v495
    %4650 = vmatprep.subr.mxu0 0.0
    %4651 = vmatpush1.msra.mxu0 %v496
    %4652 = vmatprep.subr.mxu0 0.0
    %4653 = vmatpush1.msra.mxu0 %v497
    %4654 = vmatprep.subr.mxu0 0.0
    %4655 = vmatpush1.msra.mxu0 %v498
    %4656 = vmatprep.subr.mxu0 0.0
    %4657 = vmatpush1.msra.mxu0 %v499
    %4658 = vmatprep.subr.mxu0 0.0
    %4659 = vmatpush1.msra.mxu0 %v500
    %4660 = vmatprep.subr.mxu0 0.0
    %4661 = vmatpush1.msra.mxu0 %v501
    %4662 = vmatprep.subr.mxu0 0.0
    %4663 = vmatpush1.msra.mxu0 %v502
    %4664 = vmatprep.subr.mxu0 0.0
    %4665 = vmatpush1.msra.mxu0 %v503
    %4666 = vmatprep.subr.mxu0 0.0
    %4667 = vmatpush1.msra.mxu0 %v504
    %4668 = vmatprep.subr.mxu0 0.0
    %4669 = vmatpush1.msra.mxu0 %v505
    %4670 = vmatprep.subr.mxu0 0.0
    %4671 = vmatpush1.msra.mxu0 %v506
    %4672 = vmatprep.subr.mxu0 0.0
    %4673 = vmatpush1.msra.mxu0 0.0
    %4674 = vmatprep.subr.mxu0 0.0
    %4675 = vmatpush1.msra.mxu0 0.0
    %4676 = vmatprep.subr.mxu0 0.0
    %4677 = vmatpush1.msra.mxu0 0.0
    %4678 = vmatprep.subr.mxu0 0.0
    %4679 = vmatpush1.msra.mxu0 0.0
    %4680 = vmatprep.subr.mxu0 0.0
    %4681 = vmatpush1.msra.mxu0 0.0
    %4682 = vmatprep.subr.mxu0 0.0
    %4683 = vmatpush1.msra.mxu0 0.0
    %4684 = vmatprep.subr.mxu0 0.0
    %4685 = vmatpush1.msra.mxu0 0.0
    %4686 = vmatprep.subr.mxu0 0.0
    %4687 = vmatpush1.msra.mxu0 0.0
    %4688 = vmatprep.subr.mxu0 0.0
    %4689 = vmatpush1.msra.mxu0 0.0
    %4690 = vmatprep.subr.mxu0 0.0
    %4691 = vmatpush1.msra.mxu0 0.0
    %4692 = vmatprep.subr.mxu0 0.0
    %4693 = vmatpush1.msra.mxu0 0.0
    %4694 = vmatprep.subr.mxu0 0.0
    %4695 = vmatpush1.msra.mxu0 0.0
    %4696 = vmatprep.subr.mxu0 0.0
    %4697 = vmatpush1.msra.mxu0 0.0
    %4698 = vmatprep.subr.mxu0 0.0
    %4699 = vmatpush1.msra.mxu0 0.0
    %4700 = vmatprep.subr.mxu0 0.0
    %4701 = vmatpush1.msra.mxu0 0.0
    %4702 = vmatprep.subr.mxu0 0.0
    %4703 = vmatpush1.msra.mxu0 0.0
    %4704 = vmatprep.mubr.f32.mxu0 0.0
    %4705 = vmatmul.mubr.f32.gmra.mrb[0].mxu0 %v4637
    %v4706 = vpop.f32.mrb[0].mxu0
    %v4707 = vadd.f32 0.0, %v4706
    %v4708 = vpop.f32.mrb[0].mxu0
    %4709 = vdwg.mxu0
    %v4710 = vsub.f32 %v4637, %v4707
    %v4711 = vmul.f32 %v4710, %v4710
    %4712 = vmatprep.subr.mxu0 0.0
    %4713 = vmatpush1.msra.mxu0 %v491
    %4714 = vmatprep.subr.mxu0 0.0
    %4715 = vmatpush1.msra.mxu0 %v492
    %4716 = vmatprep.subr.mxu0 0.0
    %4717 = vmatpush1.msra.mxu0 %v493
    %4718 = vmatprep.subr.mxu0 0.0
    %4719 = vmatpush1.msra.mxu0 %v494
    %4720 = vmatprep.subr.mxu0 0.0
    %4721 = vmatpush1.msra.mxu0 %v495
    %4722 = vmatprep.subr.mxu0 0.0
    %4723 = vmatpush1.msra.mxu0 %v496
    %4724 = vmatprep.subr.mxu0 0.0
    %4725 = vmatpush1.msra.mxu0 %v497
    %4726 = vmatprep.subr.mxu0 0.0
    %4727 = vmatpush1.msra.mxu0 %v498
    %4728 = vmatprep.subr.mxu0 0.0
    %4729 = vmatpush1.msra.mxu0 %v499
    %4730 = vmatprep.subr.mxu0 0.0
    %4731 = vmatpush1.msra.mxu0 %v500
    %4732 = vmatprep.subr.mxu0 0.0
    %4733 = vmatpush1.msra.mxu0 %v501
    %4734 = vmatprep.subr.mxu0 0.0
    %4735 = vmatpush1.msra.mxu0 %v502
    %4736 = vmatprep.subr.mxu0 0.0
    %4737 = vmatpush1.msra.mxu0 %v503
    %4738 = vmatprep.subr.mxu0 0.0
    %4739 = vmatpush1.msra.mxu0 %v504
    %4740 = vmatprep.subr.mxu0 0.0
    %4741 = vmatpush1.msra.mxu0 %v505
    %4742 = vmatprep.subr.mxu0 0.0
    %4743 = vmatpush1.msra.mxu0 %v506
    %4744 = vmatprep.subr.mxu0 0.0
    %4745 = vmatpush1.msra.mxu0 0.0
    %4746 = vmatprep.subr.mxu0 0.0
    %4747 = vmatpush1.msra.mxu0 0.0
    %4748 = vmatprep.subr.mxu0 0.0
    %4749 = vmatpush1.msra.mxu0 0.0
    %4750 = vmatprep.subr.mxu0 0.0
    %4751 = vmatpush1.msra.mxu0 0.0
    %4752 = vmatprep.subr.mxu0 0.0
    %4753 = vmatpush1.msra.mxu0 0.0
    %4754 = vmatprep.subr.mxu0 0.0
    %4755 = vmatpush1.msra.mxu0 0.0
    %4756 = vmatprep.subr.mxu0 0.0
    %4757 = vmatpush1.msra.mxu0 0.0
    %4758 = vmatprep.subr.mxu0 0.0
    %4759 = vmatpush1.msra.mxu0 0.0
    %4760 = vmatprep.subr.mxu0 0.0
    %4761 = vmatpush1.msra.mxu0 0.0
    %4762 = vmatprep.subr.mxu0 0.0
    %4763 = vmatpush1.msra.mxu0 0.0
    %4764 = vmatprep.subr.mxu0 0.0
    %4765 = vmatpush1.msra.mxu0 0.0
    %4766 = vmatprep.subr.mxu0 0.0
    %4767 = vmatpush1.msra.mxu0 0.0
    %4768 = vmatprep.subr.mxu0 0.0
    %4769 = vmatpush1.msra.mxu0 0.0
    %4770 = vmatprep.subr.mxu0 0.0
    %4771 = vmatpush1.msra.mxu0 0.0
    %4772 = vmatprep.subr.mxu0 0.0
    %4773 = vmatpush1.msra.mxu0 0.0
    %4774 = vmatprep.subr.mxu0 0.0
    %4775 = vmatpush1.msra.mxu0 0.0
    %4776 = vmatprep.mubr.f32.mxu0 0.0
    %4777 = vmatmul.mubr.f32.gmra.mrb[0].mxu0 %v4711
    %v4778 = vpop.f32.mrb[0].mxu0
    %v4779 = vadd.f32 1e-05, %v4778
    %v4780 = vpop.f32.mrb[0].mxu0
    %4781 = vdwg.mxu0
    %v4782 = vrsqrt.pop %v4779
    %v4783 = vmul.f32 %v4710, %v4782
    %v4784 = vmul.f32 %v4783, %v2532
    %v4785 = vadd.f32 %v4784, %v2537
    %v4786 = vadd.f32 %v2306, %v4785
    %v4787 = vxor.u32 %v4786, 2147483648
    %v4788 = vmul.f32 %v4787, 1.442695
    %v4789 = vpow.pop %v4788
    %v4790 = vadd.f32 %v4789, 1.0
    %v4791 = vrcp.pop %v4790
    %v4792 = vmul.f32 1.0, %v4791
    %v4793 = vtanh.pop %v4786
    %v4794 = vmul.f32 %v4792, %v4483
    %4796 = vrot.lane.b32.xlu0 %v4793, 64
    %v4797 = vpop.permute.xlu0 %4796
    %v4799 = vmul.f32 %v4792, %v4797
    %4801 = vrot.lane.b32.xlu0 %v4799, 96
    %v4802 = vpop.permute.xlu0 %4801
    %v4804 = vadd.f32 %v4794, %v4802
    %v4805 = vtanh.pop %v4804
    %4807 = vrot.lane.b32.xlu0 %v4805, 64
    %v4808 = vpop.permute.xlu0 %4807
    %v4810 = vmul.f32 %v4792, %v4808
    %4812 = vrot.lane.b32.xlu0 %v4810, 64
    %v4813 = vpop.permute.xlu0 %4812
    %v4814 = vsel %vm2311, %v4813, 0
    %4816 = vmatprep.subr.mxu0 0.0
    %4817 = vmatpush1.msra.mxu0 %v519
    %4818 = vmatprep.subr.mxu0 0.0
    %4819 = vmatpush1.msra.mxu0 %v520
    %4820 = vmatprep.subr.mxu0 0.0
    %4821 = vmatpush1.msra.mxu0 %v521
    %4822 = vmatprep.subr.mxu0 0.0
    %4823 = vmatpush1.msra.mxu0 %v522
    %4824 = vmatprep.subr.mxu0 0.0
    %4825 = vmatpush1.msra.mxu0 0.0
    %4826 = vmatprep.subr.mxu0 0.0
    %4827 = vmatpush1.msra.mxu0 0.0
    %4828 = vmatprep.subr.mxu0 0.0
    %4829 = vmatpush1.msra.mxu0 0.0
    %4830 = vmatprep.subr.mxu0 0.0
    %4831 = vmatpush1.msra.mxu0 0.0
    %4832 = vmatprep.subr.mxu0 0.0
    %4833 = vmatpush1.msra.mxu0 0.0
    %4834 = vmatprep.subr.mxu0 0.0
    %4835 = vmatpush1.msra.mxu0 0.0
    %4836 = vmatprep.subr.mxu0 0.0
    %4837 = vmatpush1.msra.mxu0 0.0
    %4838 = vmatprep.subr.mxu0 0.0
    %4839 = vmatpush1.msra.mxu0 0.0
    %4840 = vmatprep.subr.mxu0 0.0
    %4841 = vmatpush1.msra.mxu0 0.0
    %4842 = vmatprep.subr.mxu0 0.0
    %4843 = vmatpush1.msra.mxu0 0.0
    %4844 = vmatprep.subr.mxu0 0.0
    %4845 = vmatpush1.msra.mxu0 0.0
    %4846 = vmatprep.subr.mxu0 0.0
    %4847 = vmatpush1.msra.mxu0 0.0
    %4848 = vmatprep.subr.mxu0 0.0
    %4849 = vmatpush1.msra.mxu0 0.0
    %4850 = vmatprep.subr.mxu0 0.0
    %4851 = vmatpush1.msra.mxu0 0.0
    %4852 = vmatprep.subr.mxu0 0.0
    %4853 = vmatpush1.msra.mxu0 0.0
    %4854 = vmatprep.subr.mxu0 0.0
    %4855 = vmatpush1.msra.mxu0 0.0
    %4856 = vmatprep.subr.mxu0 0.0
    %4857 = vmatpush1.msra.mxu0 0.0
    %4858 = vmatprep.subr.mxu0 0.0
    %4859 = vmatpush1.msra.mxu0 0.0
    %4860 = vmatprep.subr.mxu0 0.0
    %4861 = vmatpush1.msra.mxu0 0.0
    %4862 = vmatprep.subr.mxu0 0.0
    %4863 = vmatpush1.msra.mxu0 0.0
    %4864 = vmatprep.subr.mxu0 0.0
    %4865 = vmatpush1.msra.mxu0 0.0
    %4866 = vmatprep.subr.mxu0 0.0
    %4867 = vmatpush1.msra.mxu0 0.0
    %4868 = vmatprep.subr.mxu0 0.0
    %4869 = vmatpush1.msra.mxu0 0.0
    %4870 = vmatprep.subr.mxu0 0.0
    %4871 = vmatpush1.msra.mxu0 0.0
    %4872 = vmatprep.subr.mxu0 0.0
    %4873 = vmatpush1.msra.mxu0 0.0
    %4874 = vmatprep.subr.mxu0 0.0
    %4875 = vmatpush1.msra.mxu0 0.0
    %4876 = vmatprep.subr.mxu0 0.0
    %4877 = vmatpush1.msra.mxu0 0.0
    %4878 = vmatprep.subr.mxu0 0.0
    %4879 = vmatpush1.msra.mxu0 0.0
    %4880 = vmatprep.mubr.f32.mxu0 0.0
    %4881 = vmatmul.mubr.f32.gmra.mrb[0].mxu0 %v4814
    %v4882 = vpop.f32.mrb[0].mxu0
    %v4883 = vadd.f32 0.0, %v4882
    %v4884 = vpop.f32.mrb[0].mxu0
    %4885 = vdwg.mxu0
    %vm4886 = vcmp.eq.s32.totalorder %v50, 7
    %v4887 = vsel %vm4886, 1, 0
    %v4888 = vcvt.s32.f32 %v4887
    %v4889 = vmul.f32 %v4883, %v4888
    %v4890 = vadd.f32 %v4569, %v4889
    %v4891 = vlaneseq
    %v4892 = vshrl.u32 %v4891, 7
    %v4893 = vsub.s32 0, %v4892
    %v4894 = vrot.slane %v513, %v4893
    %v4895 = vadd.f32 %v4890, %v4894
    %v4896 = vrcp.pop 1.5
    %v4897 = vmul.f32 %v4895, %v4896
    %v4898 = vmul.f32 %v4897, %v4896
    %v4899 = vxor.u32 %v4898, 2147483648
    %v4900 = vmul.f32 %v4899, 1.442695
    %v4901 = vpow.pop %v4900
    %v4902 = vadd.f32 %v4901, 1.0
    %v4903 = vrcp.pop %v4902
    %v4904 = vmul.f32 1.0, %v4903
    %vm4905 = vcmask 58368
    %4906 = vst.msk [vmem:[#allocation5] sm:$0x3] %vm4905, %v4904
    // Predicated region
    $region22: #{tpu_custom_call.1} parent=1 // pred_check
      _
    $region23: #{tpu_custom_call.1} parent=1 // pred_check_branch
      %4908 = sbr.rel (0) target = $region25
    $region24: #{tpu_custom_call.1} parent=1 // pred_region
      %s4910 = ssub.s32 32, 32
      %4911 = vsyncadd [#allocation4], %s4910
      %s4913 = sshll.u32 [#allocation5], 4
      %s4914 = int_to_ptr.vmem [resolvable:$true] %s4913
      %4916 = dma.vmem_to_hbm [thread:$0]  %s4914, 32, %s4, [#allocation4]
    $region25: #{tpu_custom_call.1} parent=1 // pred_fallthru
      _
    // Predicated region
    $region26: #{tpu_custom_call.1} parent=1 // pred_check
      _
    $region27: #{tpu_custom_call.1} parent=1 // pred_check_branch
      %4918 = sbr.rel (0) target = $region29
    $region28: #{tpu_custom_call.1} parent=1 // pred_region
      %4919 = dma.done [#allocation4], 32
    $region29: #{tpu_custom_call.1} parent=1 // pred_fallthru
      _
    %4920 = vsyncpa [#allocation3], 1
    %4921 = vsyncpa [#allocation4], 1

</llo_original>
